<compile_context>
chip_gen: v5e
topology: v5e:2x2
jax: 0.10.0
libtpu: 0.0.40
codegen_flags: <defaults>
</compile_context>

<pallas_src>
import math

import jax
import jax.numpy as jnp
import numpy as np
from jax.experimental import pallas as pl
from jax.experimental.pallas import tpu as pltpu  # noqa: F401  (kept for TPU backend import)

N_FEATS = 4      # n_leads
N_HIDDEN = 64
N_LATENT = 8
N_LAYERS = 2
N_HEADS = 4

H = N_HIDDEN
H2 = 2 * H           # 128
H3 = 3 * H           # 192

# ---- static offsets inside the packed blobs -------------------------------------
# bias / alpha blob (1, 1243)
OFF_BREC = 0                      # [bhh0 | bih1 | bhh1]            (576)
OFF_BIH0 = 576                    # bih0                            (192)
OFF_BQKV = 768                    # in_proj bias                    (192)
OFF_BO = 960                      # out_proj bias                   (64)
OFF_BE1 = 1024                    # enc_b1                          (64)
OFF_BE2 = 1088                    # enc_b2                          (64)
OFF_BE3 = 1152                    # enc_b3                          (16)
OFF_BD1 = 1168                    # dec_b1                          (64)
OFF_BD2 = 1232                    # dec_b2                          (8)
OFF_AE1 = 1240                    # PReLU alphas (scalars)
OFF_AE2 = 1241
OFF_AD1 = 1242
BIAS_TOTAL = 1243

# main 64-row weight blob (64, 408)
WM_QKV = 0                        # in_proj_w.T   (64, 192)
WM_WO = 192                       # out_proj_w.T  (64, 64)
WM_E1 = 256                       # enc_w1.T      (64, 64)
WM_E2 = 320                       # enc_w2.T      (64, 64)
WM_E3 = 384                       # enc_w3.T      (64, 16)
WM_D2 = 400                       # dec_w2.T      (64, 8)
WM_TOTAL = 408

# small blob (8, 256): rows 0..3 / cols 0..191 = gru_wih_0.T ; cols 192..255 = dec_w1.T
WS_WD1 = 192


# ---------------------------------------------------------------------------
# Single fused forward kernel
# ---------------------------------------------------------------------------
def _make_fused_kernel(B, T):
    F, L, NH = N_FEATS, N_LATENT, N_HEADS
    HD = H // NH
    scale = 1.0 / math.sqrt(HD)

    def kernel(x_ref, eps_ref, wsmall_ref, wrec_ref, wmain_ref, bias_ref, out_ref):

        def mm(a, b):
            return jnp.dot(a, b, preferred_element_type=jnp.float32)

        def bias(off, width):
            return bias_ref[:, off:off + width]          # (1, width)

        def prelu(v, a):
            return jnp.where(v >= 0.0, v, a * v)

        # ---------------- GRU: wavefront over the two layers -----------------
        # Layer-0 input projection hoisted out of the recurrence (time-major rows).
        gi0_all = mm(x_ref[...], wsmall_ref[:F, :H3]) + bias(OFF_BIH0, H3)   # (T*B, 3H)

        w_rec = wrec_ref[...]                 # (128, 576) = [[Whh0 Wih1 0],[0 0 Whh1]]
        b_rec = bias(OFF_BREC, 3 * H3)        # (1, 576)   =  bhh0 | bih1 | bhh1

        def gru_cell(gi, gh, h_prev):
            # PyTorch gate order (r, z, n); fused r|z sigmoid over one 128-lane vreg.
            rz = jax.nn.sigmoid(gi[:, :H2] + gh[:, :H2])
            r, z = rz[:, :H], rz[:, H:]
            n = jnp.tanh(gi[:, H2:] + r * gh[:, H2:])
            return (1.0 - z) * n + z * h_prev

        h0 = jnp.zeros((B, H), jnp.float32)
        h1 = jnp.zeros((B, H), jnp.float32)
        h1_steps = []
        for s in range(T + 1):                # statically unrolled wavefront (T+1 steps)
            if s == 0:
                g = jnp.zeros((B, 3 * H3), jnp.float32) + b_rec   # both states are zero
            else:
                # one fused MXU issue: [h0|h1] (B,128) x (128,576) -> [gh0 | gi1 | gh1]
                g = mm(jnp.concatenate([h0, h1], axis=1), w_rec) + b_rec
            if s < T:                         # layer-0, time step s
                h0 = gru_cell(gi0_all[s * B:(s + 1) * B, :], g[:, :H3], h0)
            if s >= 1:                        # layer-1, time step s-1
                h1 = gru_cell(g[:, H3:2 * H3], g[:, 2 * H3:], h1)
                h1_steps.append(h1)

        # Batch-major (B*T, H) activation matrix, assembled once AFTER the recurrence
        # from the register-resident per-step values (no strided stores in the loop).
        h_flat = jnp.concatenate(
            [h1_steps[t][b:b + 1, :] for b in range(B) for t in range(T)], axis=0)

        # ---------------- Multi-head self-attention --------------------------
        qkv = mm(h_flat, wmain_ref[:, WM_QKV:WM_QKV + H3]) + bias(OFF_BQKV, H3)
        q3 = qkv[:, :H].reshape(B, T, H)
        k3 = qkv[:, H:H2].reshape(B, T, H)
        v3 = qkv[:, H2:].reshape(B, T, H)
        wo = wmain_ref[:, WM_WO:WM_WO + H]                 # (64, 64)

        acc = None
        for head in range(NH):                             # 4 independent head chains
            lo, hi = head * HD, (head + 1) * HD
            sc = jnp.einsum('btd,bsd->bts', q3[:, :, lo:hi], k3[:, :, lo:hi],
                            preferred_element_type=jnp.float32) * scale
            sc = sc - jnp.max(sc, axis=-1, keepdims=True)
            p = jnp.exp(sc)
            p = p / jnp.sum(p, axis=-1, keepdims=True)     # exact divide (off crit path)
            oh = jnp.einsum('bts,bsd->btd', p, v3[:, :, lo:hi],
                            preferred_element_type=jnp.float32)
            contrib = mm(oh.reshape(B * T, HD), wo[lo:hi, :])   # per-head out-proj slice
            acc = contrib if acc is None else acc + contrib
        attn = acc + bias(OFF_BO, H)

        # ---------------- Encoder / reparam / decoder ------------------------
        e1 = prelu(mm(attn, wmain_ref[:, WM_E1:WM_E1 + H]) + bias(OFF_BE1, H),
                   bias_ref[:, OFF_AE1:OFF_AE1 + 1])
        e2 = prelu(mm(e1, wmain_ref[:, WM_E2:WM_E2 + H]) + bias(OFF_BE2, H),
                   bias_ref[:, OFF_AE2:OFF_AE2 + 1])
        stats = mm(e2, wmain_ref[:, WM_E3:WM_E3 + 2 * L]) + bias(OFF_BE3, 2 * L)
        mu = stats[:, :L]
        logvar = stats[:, L:]
        z = mu + eps_ref[...] * jnp.exp(0.5 * logvar)
        d1 = prelu(mm(z, wsmall_ref[:, WS_WD1:WS_WD1 + H]) + bias(OFF_BD1, H),
                   bias_ref[:, OFF_AD1:OFF_AD1 + 1])
        xs = mm(d1, wmain_ref[:, WM_D2:WM_D2 + 2 * F]) + bias(OFF_BD2, 2 * F)

        # Single fused output: [mu | logvar | x_mean | x_logvar]  -> one epilogue DMA.
        out_ref[...] = jnp.concatenate([stats, xs], axis=1)

    return kernel


# ---------------------------------------------------------------------------
# One-time parameter packing (OUTSIDE the jitted hot path)
# ---------------------------------------------------------------------------
def pack_params(p):
    f32 = jnp.float32
    F, L = N_FEATS, N_LATENT

    # small blob (8, 256): gru_wih_0.T (4,192) and dec_w1.T (8,64)
    w_small = jnp.zeros((8, 256), f32)
    w_small = w_small.at[:F, :H3].set(p['gru_wih_0'].T.astype(f32))
    w_small = w_small.at[:, WS_WD1:WS_WD1 + H].set(p['dec_w1'].T.astype(f32))

    # block recurrent weight (128, 576): [[Whh0 Wih1 0],[0 0 Whh1]]
    z64 = jnp.zeros((H, H3), f32)
    w_rec = jnp.concatenate([
        jnp.concatenate([p['gru_whh_0'].T, p['gru_wih_1'].T, z64], axis=1),
        jnp.concatenate([z64, z64, p['gru_whh_1'].T], axis=1)], axis=0).astype(f32)

    # main 64-row blob (64, 408)
    w_main = jnp.concatenate([
        p['in_proj_w'].T, p['out_proj_w'].T,
        p['enc_w1'].T, p['enc_w2'].T, p['enc_w3'].T, p['dec_w2'].T],
        axis=1).astype(f32)
    assert w_main.shape == (H, WM_TOTAL)

    # bias / alpha blob (1, 1243)
    bias = jnp.concatenate([
        p['gru_bhh_0'], p['gru_bih_1'], p['gru_bhh_1'],      # b_rec (576)
        p['gru_bih_0'],                                      # bih0  (192)
        p['in_proj_b'], p['out_proj_b'],                     # bqkv, bo
        p['enc_b1'], p['enc_b2'], p['enc_b3'],
        p['dec_b1'], p['dec_b2'],
        p['enc_a1'].reshape(-1), p['enc_a2'].reshape(-1), p['dec_a1'].reshape(-1),
    ]).reshape(1, -1).astype(f32)
    assert bias.shape == (1, BIAS_TOTAL)

    return w_small, w_rec, w_main, bias


@jax.jit
def vae_forward_pallas(x, packed, eps):
    B, T, F = x.shape
    L = N_LATENT
    w_small, w_rec, w_main, bias = packed

    # Time-major flatten of x so the GRU layer-0 input projection is one fused matmul.
    x_tm = jnp.transpose(x, (1, 0, 2)).reshape(T * B, F)

    out = pl.pallas_call(
        _make_fused_kernel(B, T),
        out_shape=jax.ShapeDtypeStruct((B * T, 2 * L + 2 * F), jnp.float32),
    )(x_tm, eps, w_small, w_rec, w_main, bias)

    mu = out[:, :L].reshape(B, T, L)
    logvar = out[:, L:2 * L].reshape(B, T, L)
    x_mean = out[:, 2 * L:2 * L + F].reshape(B, T, F)
    x_logvar = out[:, 2 * L + F:].reshape(B, T, F)
    return x_mean, x_logvar, mu, logvar


# ---------------------------------------------------------------------------
# Pure-JAX reference (for correctness checking)
# ---------------------------------------------------------------------------
def vae_forward_ref(x, params, eps):
    B, T, F = x.shape
    L = N_LATENT

    h_seq = x
    for layer in range(N_LAYERS):
        W_ih, W_hh = params[f'gru_wih_{layer}'], params[f'gru_whh_{layer}']
        b_ih, b_hh = params[f'gru_bih_{layer}'], params[f'gru_bhh_{layer}']

        def step(h_prev, x_t, W_ih=W_ih, W_hh=W_hh, b_ih=b_ih, b_hh=b_hh):
            gi = x_t @ W_ih.T + b_ih
            gh = h_prev @ W_hh.T + b_hh
            r = jax.nn.sigmoid(gi[:, :H] + gh[:, :H])
            z = jax.nn.sigmoid(gi[:, H:2 * H] + gh[:, H:2 * H])
            n = jnp.tanh(gi[:, 2 * H:] + r * gh[:, 2 * H:])
            h_new = (1.0 - z) * n + z * h_prev
            return h_new, h_new

        h0 = jnp.zeros((B, H), jnp.float32)
        _, out = jax.lax.scan(step, h0, jnp.transpose(h_seq, (1, 0, 2)))
        h_seq = jnp.transpose(out, (1, 0, 2))

    E, nh = H, N_HEADS
    hd = E // nh
    wq, wk, wv = (params['in_proj_w'][:E], params['in_proj_w'][E:2 * E],
                  params['in_proj_w'][2 * E:])
    bq, bk, bv = (params['in_proj_b'][:E], params['in_proj_b'][E:2 * E],
                  params['in_proj_b'][2 * E:])
    q = (h_seq @ wq.T + bq).reshape(B, T, nh, hd).transpose(0, 2, 1, 3)
    k = (h_seq @ wk.T + bk).reshape(B, T, nh, hd).transpose(0, 2, 1, 3)
    v = (h_seq @ wv.T + bv).reshape(B, T, nh, hd).transpose(0, 2, 1, 3)
    s = jnp.einsum('bhtd,bhsd->bhts', q, k) / math.sqrt(hd)
    p = jax.nn.softmax(s, axis=-1)
    o = jnp.einsum('bhts,bhsd->bhtd', p, v).transpose(0, 2, 1, 3).reshape(B, T, E)
    attn = o @ params['out_proj_w'].T + params['out_proj_b']

    def prelu(x, a):
        return jnp.where(x >= 0.0, x, a * x)

    h_flat = attn.reshape(B * T, H)
    e1 = prelu(h_flat @ params['enc_w1'].T + params['enc_b1'], params['enc_a1'][0, 0])
    e2 = prelu(e1 @ params['enc_w2'].T + params['enc_b2'], params['enc_a2'][0, 0])
    stats = e2 @ params['enc_w3'].T + params['enc_b3']
    mu, logvar = stats[:, :L], stats[:, L:]
    z = mu + eps * jnp.exp(0.5 * logvar)
    d1 = prelu(z @ params['dec_w1'].T + params['dec_b1'], params['dec_a1'][0, 0])
    xs = d1 @ params['dec_w2'].T + params['dec_b2']
    x_mean, x_logvar = xs[:, :F], xs[:, F:]
    return (x_mean.reshape(B, T, F), x_logvar.reshape(B, T, F),
            mu.reshape(B, T, L), logvar.reshape(B, T, L))


# ---------------------------------------------------------------------------
# Deterministic parameter init (synthetic, matches PyTorch module shapes)
# ---------------------------------------------------------------------------
def init_params(key):
    F, L = N_FEATS, N_LATENT
    keys = iter(jax.random.split(key, 64))

    def u(shape, scale):
        return jax.random.uniform(next(keys), shape, jnp.float32, -scale, scale)

    p = {}
    s = 1.0 / math.sqrt(H)
    for layer in range(N_LAYERS):
        in_dim = F if layer == 0 else H
        p[f'gru_wih_{layer}'] = u((3 * H, in_dim), s)
        p[f'gru_whh_{layer}'] = u((3 * H, H), s)
        p[f'gru_bih_{layer}'] = u((3 * H,), s)
        p[f'gru_bhh_{layer}'] = u((3 * H,), s)

    p['in_proj_w'] = u((3 * H, H), s)
    p['in_proj_b'] = u((3 * H,), s)
    p['out_proj_w'] = u((H, H), s)
    p['out_proj_b'] = u((H,), s)

    p['enc_w1'] = u((H, H), s); p['enc_b1'] = u((H,), s)
    p['enc_a1'] = jnp.full((1, 1), 0.25, jnp.float32)
    p['enc_w2'] = u((H, H), s); p['enc_b2'] = u((H,), s)
    p['enc_a2'] = jnp.full((1, 1), 0.25, jnp.float32)
    p['enc_w3'] = u((2 * L, H), s); p['enc_b3'] = u((2 * L,), s)

    sl = 1.0 / math.sqrt(L)
    p['dec_w1'] = u((H, L), sl); p['dec_b1'] = u((H,), sl)
    p['dec_a1'] = jnp.full((1, 1), 0.25, jnp.float32)
    p['dec_w2'] = u((2 * F, H), s); p['dec_b2'] = u((2 * F,), s)
    return p


if __name__ == "__main__":
    key = jax.random.PRNGKey(0)
    k_param, k_x, k_eps = jax.random.split(key, 3)

    B, T = 2, 8
    x = jax.random.normal(k_x, (B, T, N_FEATS), jnp.float32)
    params = init_params(k_param)
    # TODO(synk): torch.randn_like inside forward is sampled here in JAX (deterministic
    # key) and passed into the fused kernel instead of drawing randoms inside the kernel.
    eps = jax.random.normal(k_eps, (B * T, N_LATENT), jnp.float32)

    packed = pack_params(params)          # one-time packing, outside the hot path

    outs = vae_forward_pallas(x, packed, eps)
    outs = jax.block_until_ready(outs)

    refs = vae_forward_ref(x, params, eps)
    for o, r in zip(outs, refs):
        np.testing.assert_allclose(np.asarray(o), np.asarray(r), rtol=2e-3, atol=2e-3)

    print("KERNEL_OK")
</pallas_src>

<mosaic_0001>
module attributes {stable_mosaic.version = 11 : i64} {
  func.func @kernel(%arg0: memref<16x4xf32, #tpu.memory_space<vmem>>, %arg1: memref<16x8xf32, #tpu.memory_space<vmem>>, %arg2: memref<8x256xf32, #tpu.memory_space<vmem>>, %arg3: memref<128x576xf32, #tpu.memory_space<vmem>>, %arg4: memref<64x408xf32, #tpu.memory_space<vmem>>, %arg5: memref<1x1243xf32, #tpu.memory_space<vmem>>, %arg6: memref<16x24xf32, #tpu.memory_space<vmem>>) attributes {dimension_semantics = [], scalar_prefetch = 0 : i64, scratch_operands = 0 : i64, tpu.core_type = #tpu.core_type<tc>} {
    %c0 = arith.constant 0 : index
    %c0_0 = arith.constant 0 : index
    %0 = vector.load %arg0[%c0, %c0_0] : memref<16x4xf32, #tpu.memory_space<vmem>>, vector<16x4xf32>
    %c0_1 = arith.constant 0 : index
    %c0_2 = arith.constant 0 : index
    %1 = vector.load %arg2[%c0_1, %c0_2] : memref<8x256xf32, #tpu.memory_space<vmem>>, vector<4x192xf32>
    %cst = arith.constant dense<0.000000e+00> : vector<16x192xf32>
    %2 = tpu.matmul %0, %1, %cst {dimension_numbers = #tpu.dot_dimension_numbers<[1], [0], [0], [1], [0, 0, 1, 1], [], []>} : vector<16x4xf32>, vector<4x192xf32>, vector<16x192xf32> -> vector<16x192xf32>
    %c0_3 = arith.constant 0 : index
    %c576 = arith.constant 576 : index
    %3 = vector.load %arg5[%c0_3, %c576] : memref<1x1243xf32, #tpu.memory_space<vmem>>, vector<1x192xf32>
    %4 = vector.broadcast %3 : vector<1x192xf32> to vector<16x192xf32>
    %5 = arith.addf %2, %4 : vector<16x192xf32>
    %c0_4 = arith.constant 0 : index
    %c0_5 = arith.constant 0 : index
    %6 = vector.load %arg3[%c0_4, %c0_5] : memref<128x576xf32, #tpu.memory_space<vmem>>, vector<128x576xf32>
    %c0_6 = arith.constant 0 : index
    %c0_7 = arith.constant 0 : index
    %7 = vector.load %arg5[%c0_6, %c0_7] : memref<1x1243xf32, #tpu.memory_space<vmem>>, vector<1x576xf32>
    %cst_8 = arith.constant 0.000000e+00 : f32
    %8 = vector.broadcast %cst_8 : f32 to vector<2x64xf32>
    %cst_9 = arith.constant 0.000000e+00 : f32
    %9 = vector.broadcast %cst_9 : f32 to vector<2x64xf32>
    %cst_10 = arith.constant 0.000000e+00 : f32
    %10 = vector.broadcast %cst_10 : f32 to vector<2x576xf32>
    %11 = vector.broadcast %7 : vector<1x576xf32> to vector<2x576xf32>
    %12 = arith.addf %10, %11 : vector<2x576xf32>
    %13 = vector.extract_strided_slice %5 {offsets = [0, 0], sizes = [2, 192], strides = [1, 1]} : vector<16x192xf32> to vector<2x192xf32>
    %14 = vector.extract_strided_slice %12 {offsets = [0, 0], sizes = [2, 192], strides = [1, 1]} : vector<2x576xf32> to vector<2x192xf32>
    %15 = vector.extract_strided_slice %13 {offsets = [0, 0], sizes = [2, 128], strides = [1, 1]} : vector<2x192xf32> to vector<2x128xf32>
    %16 = vector.extract_strided_slice %14 {offsets = [0, 0], sizes = [2, 128], strides = [1, 1]} : vector<2x192xf32> to vector<2x128xf32>
    %17 = arith.addf %15, %16 : vector<2x128xf32>
    %18 = arith.negf %17 : vector<2x128xf32>
    %19 = math.exp %18 : vector<2x128xf32>
    %cst_11 = arith.constant 1.000000e+00 : f32
    %20 = vector.broadcast %cst_11 : f32 to vector<2x128xf32>
    %21 = arith.addf %20, %19 : vector<2x128xf32>
    %22 = arith.divf %20, %21 : vector<2x128xf32>
    %23 = vector.extract_strided_slice %22 {offsets = [0, 0], sizes = [2, 64], strides = [1, 1]} : vector<2x128xf32> to vector<2x64xf32>
    %24 = vector.extract_strided_slice %22 {offsets = [0, 64], sizes = [2, 64], strides = [1, 1]} : vector<2x128xf32> to vector<2x64xf32>
    %25 = vector.extract_strided_slice %13 {offsets = [0, 128], sizes = [2, 64], strides = [1, 1]} : vector<2x192xf32> to vector<2x64xf32>
    %26 = vector.extract_strided_slice %14 {offsets = [0, 128], sizes = [2, 64], strides = [1, 1]} : vector<2x192xf32> to vector<2x64xf32>
    %27 = arith.mulf %23, %26 : vector<2x64xf32>
    %28 = arith.addf %25, %27 : vector<2x64xf32>
    %29 = math.tanh %28 : vector<2x64xf32>
    %cst_12 = arith.constant 1.000000e+00 : f32
    %30 = vector.broadcast %cst_12 : f32 to vector<2x64xf32>
    %31 = arith.subf %30, %24 : vector<2x64xf32>
    %32 = arith.mulf %31, %29 : vector<2x64xf32>
    %33 = arith.mulf %24, %8 : vector<2x64xf32>
    %34 = arith.addf %32, %33 : vector<2x64xf32>
    %35 = tpu.concatenate %34, %9 in 1 : vector<2x64xf32>, vector<2x64xf32> -> vector<2x128xf32>
    %cst_13 = arith.constant dense<0.000000e+00> : vector<2x576xf32>
    %36 = tpu.matmul %35, %6, %cst_13 {dimension_numbers = #tpu.dot_dimension_numbers<[1], [0], [0], [1], [0, 0, 1, 1], [], []>} : vector<2x128xf32>, vector<128x576xf32>, vector<2x576xf32> -> vector<2x576xf32>
    %37 = vector.broadcast %7 : vector<1x576xf32> to vector<2x576xf32>
    %38 = arith.addf %36, %37 : vector<2x576xf32>
    %39 = vector.extract_strided_slice %5 {offsets = [2, 0], sizes = [2, 192], strides = [1, 1]} : vector<16x192xf32> to vector<2x192xf32>
    %40 = vector.extract_strided_slice %38 {offsets = [0, 0], sizes = [2, 192], strides = [1, 1]} : vector<2x576xf32> to vector<2x192xf32>
    %41 = vector.extract_strided_slice %39 {offsets = [0, 0], sizes = [2, 128], strides = [1, 1]} : vector<2x192xf32> to vector<2x128xf32>
    %42 = vector.extract_strided_slice %40 {offsets = [0, 0], sizes = [2, 128], strides = [1, 1]} : vector<2x192xf32> to vector<2x128xf32>
    %43 = arith.addf %41, %42 : vector<2x128xf32>
    %44 = arith.negf %43 : vector<2x128xf32>
    %45 = math.exp %44 : vector<2x128xf32>
    %cst_14 = arith.constant 1.000000e+00 : f32
    %46 = vector.broadcast %cst_14 : f32 to vector<2x128xf32>
    %47 = arith.addf %46, %45 : vector<2x128xf32>
    %48 = arith.divf %46, %47 : vector<2x128xf32>
    %49 = vector.extract_strided_slice %48 {offsets = [0, 0], sizes = [2, 64], strides = [1, 1]} : vector<2x128xf32> to vector<2x64xf32>
    %50 = vector.extract_strided_slice %48 {offsets = [0, 64], sizes = [2, 64], strides = [1, 1]} : vector<2x128xf32> to vector<2x64xf32>
    %51 = vector.extract_strided_slice %39 {offsets = [0, 128], sizes = [2, 64], strides = [1, 1]} : vector<2x192xf32> to vector<2x64xf32>
    %52 = vector.extract_strided_slice %40 {offsets = [0, 128], sizes = [2, 64], strides = [1, 1]} : vector<2x192xf32> to vector<2x64xf32>
    %53 = arith.mulf %49, %52 : vector<2x64xf32>
    %54 = arith.addf %51, %53 : vector<2x64xf32>
    %55 = math.tanh %54 : vector<2x64xf32>
    %cst_15 = arith.constant 1.000000e+00 : f32
    %56 = vector.broadcast %cst_15 : f32 to vector<2x64xf32>
    %57 = arith.subf %56, %50 : vector<2x64xf32>
    %58 = arith.mulf %57, %55 : vector<2x64xf32>
    %59 = arith.mulf %50, %34 : vector<2x64xf32>
    %60 = arith.addf %58, %59 : vector<2x64xf32>
    %61 = vector.extract_strided_slice %38 {offsets = [0, 192], sizes = [2, 192], strides = [1, 1]} : vector<2x576xf32> to vector<2x192xf32>
    %62 = vector.extract_strided_slice %38 {offsets = [0, 384], sizes = [2, 192], strides = [1, 1]} : vector<2x576xf32> to vector<2x192xf32>
    %63 = vector.extract_strided_slice %61 {offsets = [0, 0], sizes = [2, 128], strides = [1, 1]} : vector<2x192xf32> to vector<2x128xf32>
    %64 = vector.extract_strided_slice %62 {offsets = [0, 0], sizes = [2, 128], strides = [1, 1]} : vector<2x192xf32> to vector<2x128xf32>
    %65 = arith.addf %63, %64 : vector<2x128xf32>
    %66 = arith.negf %65 : vector<2x128xf32>
    %67 = math.exp %66 : vector<2x128xf32>
    %cst_16 = arith.constant 1.000000e+00 : f32
    %68 = vector.broadcast %cst_16 : f32 to vector<2x128xf32>
    %69 = arith.addf %68, %67 : vector<2x128xf32>
    %70 = arith.divf %68, %69 : vector<2x128xf32>
    %71 = vector.extract_strided_slice %70 {offsets = [0, 0], sizes = [2, 64], strides = [1, 1]} : vector<2x128xf32> to vector<2x64xf32>
    %72 = vector.extract_strided_slice %70 {offsets = [0, 64], sizes = [2, 64], strides = [1, 1]} : vector<2x128xf32> to vector<2x64xf32>
    %73 = vector.extract_strided_slice %61 {offsets = [0, 128], sizes = [2, 64], strides = [1, 1]} : vector<2x192xf32> to vector<2x64xf32>
    %74 = vector.extract_strided_slice %62 {offsets = [0, 128], sizes = [2, 64], strides = [1, 1]} : vector<2x192xf32> to vector<2x64xf32>
    %75 = arith.mulf %71, %74 : vector<2x64xf32>
    %76 = arith.addf %73, %75 : vector<2x64xf32>
    %77 = math.tanh %76 : vector<2x64xf32>
    %cst_17 = arith.constant 1.000000e+00 : f32
    %78 = vector.broadcast %cst_17 : f32 to vector<2x64xf32>
    %79 = arith.subf %78, %72 : vector<2x64xf32>
    %80 = arith.mulf %79, %77 : vector<2x64xf32>
    %81 = arith.mulf %72, %9 : vector<2x64xf32>
    %82 = arith.addf %80, %81 : vector<2x64xf32>
    %83 = tpu.concatenate %60, %82 in 1 : vector<2x64xf32>, vector<2x64xf32> -> vector<2x128xf32>
    %cst_18 = arith.constant dense<0.000000e+00> : vector<2x576xf32>
    %84 = tpu.matmul %83, %6, %cst_18 {dimension_numbers = #tpu.dot_dimension_numbers<[1], [0], [0], [1], [0, 0, 1, 1], [], []>} : vector<2x128xf32>, vector<128x576xf32>, vector<2x576xf32> -> vector<2x576xf32>
    %85 = vector.broadcast %7 : vector<1x576xf32> to vector<2x576xf32>
    %86 = arith.addf %84, %85 : vector<2x576xf32>
    %87 = vector.extract_strided_slice %5 {offsets = [4, 0], sizes = [2, 192], strides = [1, 1]} : vector<16x192xf32> to vector<2x192xf32>
    %88 = vector.extract_strided_slice %86 {offsets = [0, 0], sizes = [2, 192], strides = [1, 1]} : vector<2x576xf32> to vector<2x192xf32>
    %89 = vector.extract_strided_slice %87 {offsets = [0, 0], sizes = [2, 128], strides = [1, 1]} : vector<2x192xf32> to vector<2x128xf32>
    %90 = vector.extract_strided_slice %88 {offsets = [0, 0], sizes = [2, 128], strides = [1, 1]} : vector<2x192xf32> to vector<2x128xf32>
    %91 = arith.addf %89, %90 : vector<2x128xf32>
    %92 = arith.negf %91 : vector<2x128xf32>
    %93 = math.exp %92 : vector<2x128xf32>
    %cst_19 = arith.constant 1.000000e+00 : f32
    %94 = vector.broadcast %cst_19 : f32 to vector<2x128xf32>
    %95 = arith.addf %94, %93 : vector<2x128xf32>
    %96 = arith.divf %94, %95 : vector<2x128xf32>
    %97 = vector.extract_strided_slice %96 {offsets = [0, 0], sizes = [2, 64], strides = [1, 1]} : vector<2x128xf32> to vector<2x64xf32>
    %98 = vector.extract_strided_slice %96 {offsets = [0, 64], sizes = [2, 64], strides = [1, 1]} : vector<2x128xf32> to vector<2x64xf32>
    %99 = vector.extract_strided_slice %87 {offsets = [0, 128], sizes = [2, 64], strides = [1, 1]} : vector<2x192xf32> to vector<2x64xf32>
    %100 = vector.extract_strided_slice %88 {offsets = [0, 128], sizes = [2, 64], strides = [1, 1]} : vector<2x192xf32> to vector<2x64xf32>
    %101 = arith.mulf %97, %100 : vector<2x64xf32>
    %102 = arith.addf %99, %101 : vector<2x64xf32>
    %103 = math.tanh %102 : vector<2x64xf32>
    %cst_20 = arith.constant 1.000000e+00 : f32
    %104 = vector.broadcast %cst_20 : f32 to vector<2x64xf32>
    %105 = arith.subf %104, %98 : vector<2x64xf32>
    %106 = arith.mulf %105, %103 : vector<2x64xf32>
    %107 = arith.mulf %98, %60 : vector<2x64xf32>
    %108 = arith.addf %106, %107 : vector<2x64xf32>
    %109 = vector.extract_strided_slice %86 {offsets = [0, 192], sizes = [2, 192], strides = [1, 1]} : vector<2x576xf32> to vector<2x192xf32>
    %110 = vector.extract_strided_slice %86 {offsets = [0, 384], sizes = [2, 192], strides = [1, 1]} : vector<2x576xf32> to vector<2x192xf32>
    %111 = vector.extract_strided_slice %109 {offsets = [0, 0], sizes = [2, 128], strides = [1, 1]} : vector<2x192xf32> to vector<2x128xf32>
    %112 = vector.extract_strided_slice %110 {offsets = [0, 0], sizes = [2, 128], strides = [1, 1]} : vector<2x192xf32> to vector<2x128xf32>
    %113 = arith.addf %111, %112 : vector<2x128xf32>
    %114 = arith.negf %113 : vector<2x128xf32>
    %115 = math.exp %114 : vector<2x128xf32>
    %cst_21 = arith.constant 1.000000e+00 : f32
    %116 = vector.broadcast %cst_21 : f32 to vector<2x128xf32>
    %117 = arith.addf %116, %115 : vector<2x128xf32>
    %118 = arith.divf %116, %117 : vector<2x128xf32>
    %119 = vector.extract_strided_slice %118 {offsets = [0, 0], sizes = [2, 64], strides = [1, 1]} : vector<2x128xf32> to vector<2x64xf32>
    %120 = vector.extract_strided_slice %118 {offsets = [0, 64], sizes = [2, 64], strides = [1, 1]} : vector<2x128xf32> to vector<2x64xf32>
    %121 = vector.extract_strided_slice %109 {offsets = [0, 128], sizes = [2, 64], strides = [1, 1]} : vector<2x192xf32> to vector<2x64xf32>
    %122 = vector.extract_strided_slice %110 {offsets = [0, 128], sizes = [2, 64], strides = [1, 1]} : vector<2x192xf32> to vector<2x64xf32>
    %123 = arith.mulf %119, %122 : vector<2x64xf32>
    %124 = arith.addf %121, %123 : vector<2x64xf32>
    %125 = math.tanh %124 : vector<2x64xf32>
    %cst_22 = arith.constant 1.000000e+00 : f32
    %126 = vector.broadcast %cst_22 : f32 to vector<2x64xf32>
    %127 = arith.subf %126, %120 : vector<2x64xf32>
    %128 = arith.mulf %127, %125 : vector<2x64xf32>
    %129 = arith.mulf %120, %82 : vector<2x64xf32>
    %130 = arith.addf %128, %129 : vector<2x64xf32>
    %131 = tpu.concatenate %108, %130 in 1 : vector<2x64xf32>, vector<2x64xf32> -> vector<2x128xf32>
    %cst_23 = arith.constant dense<0.000000e+00> : vector<2x576xf32>
    %132 = tpu.matmul %131, %6, %cst_23 {dimension_numbers = #tpu.dot_dimension_numbers<[1], [0], [0], [1], [0, 0, 1, 1], [], []>} : vector<2x128xf32>, vector<128x576xf32>, vector<2x576xf32> -> vector<2x576xf32>
    %133 = vector.broadcast %7 : vector<1x576xf32> to vector<2x576xf32>
    %134 = arith.addf %132, %133 : vector<2x576xf32>
    %135 = vector.extract_strided_slice %5 {offsets = [6, 0], sizes = [2, 192], strides = [1, 1]} : vector<16x192xf32> to vector<2x192xf32>
    %136 = vector.extract_strided_slice %134 {offsets = [0, 0], sizes = [2, 192], strides = [1, 1]} : vector<2x576xf32> to vector<2x192xf32>
    %137 = vector.extract_strided_slice %135 {offsets = [0, 0], sizes = [2, 128], strides = [1, 1]} : vector<2x192xf32> to vector<2x128xf32>
    %138 = vector.extract_strided_slice %136 {offsets = [0, 0], sizes = [2, 128], strides = [1, 1]} : vector<2x192xf32> to vector<2x128xf32>
    %139 = arith.addf %137, %138 : vector<2x128xf32>
    %140 = arith.negf %139 : vector<2x128xf32>
    %141 = math.exp %140 : vector<2x128xf32>
    %cst_24 = arith.constant 1.000000e+00 : f32
    %142 = vector.broadcast %cst_24 : f32 to vector<2x128xf32>
    %143 = arith.addf %142, %141 : vector<2x128xf32>
    %144 = arith.divf %142, %143 : vector<2x128xf32>
    %145 = vector.extract_strided_slice %144 {offsets = [0, 0], sizes = [2, 64], strides = [1, 1]} : vector<2x128xf32> to vector<2x64xf32>
    %146 = vector.extract_strided_slice %144 {offsets = [0, 64], sizes = [2, 64], strides = [1, 1]} : vector<2x128xf32> to vector<2x64xf32>
    %147 = vector.extract_strided_slice %135 {offsets = [0, 128], sizes = [2, 64], strides = [1, 1]} : vector<2x192xf32> to vector<2x64xf32>
    %148 = vector.extract_strided_slice %136 {offsets = [0, 128], sizes = [2, 64], strides = [1, 1]} : vector<2x192xf32> to vector<2x64xf32>
    %149 = arith.mulf %145, %148 : vector<2x64xf32>
    %150 = arith.addf %147, %149 : vector<2x64xf32>
    %151 = math.tanh %150 : vector<2x64xf32>
    %cst_25 = arith.constant 1.000000e+00 : f32
    %152 = vector.broadcast %cst_25 : f32 to vector<2x64xf32>
    %153 = arith.subf %152, %146 : vector<2x64xf32>
    %154 = arith.mulf %153, %151 : vector<2x64xf32>
    %155 = arith.mulf %146, %108 : vector<2x64xf32>
    %156 = arith.addf %154, %155 : vector<2x64xf32>
    %157 = vector.extract_strided_slice %134 {offsets = [0, 192], sizes = [2, 192], strides = [1, 1]} : vector<2x576xf32> to vector<2x192xf32>
    %158 = vector.extract_strided_slice %134 {offsets = [0, 384], sizes = [2, 192], strides = [1, 1]} : vector<2x576xf32> to vector<2x192xf32>
    %159 = vector.extract_strided_slice %157 {offsets = [0, 0], sizes = [2, 128], strides = [1, 1]} : vector<2x192xf32> to vector<2x128xf32>
    %160 = vector.extract_strided_slice %158 {offsets = [0, 0], sizes = [2, 128], strides = [1, 1]} : vector<2x192xf32> to vector<2x128xf32>
    %161 = arith.addf %159, %160 : vector<2x128xf32>
    %162 = arith.negf %161 : vector<2x128xf32>
    %163 = math.exp %162 : vector<2x128xf32>
    %cst_26 = arith.constant 1.000000e+00 : f32
    %164 = vector.broadcast %cst_26 : f32 to vector<2x128xf32>
    %165 = arith.addf %164, %163 : vector<2x128xf32>
    %166 = arith.divf %164, %165 : vector<2x128xf32>
    %167 = vector.extract_strided_slice %166 {offsets = [0, 0], sizes = [2, 64], strides = [1, 1]} : vector<2x128xf32> to vector<2x64xf32>
    %168 = vector.extract_strided_slice %166 {offsets = [0, 64], sizes = [2, 64], strides = [1, 1]} : vector<2x128xf32> to vector<2x64xf32>
    %169 = vector.extract_strided_slice %157 {offsets = [0, 128], sizes = [2, 64], strides = [1, 1]} : vector<2x192xf32> to vector<2x64xf32>
    %170 = vector.extract_strided_slice %158 {offsets = [0, 128], sizes = [2, 64], strides = [1, 1]} : vector<2x192xf32> to vector<2x64xf32>
    %171 = arith.mulf %167, %170 : vector<2x64xf32>
    %172 = arith.addf %169, %171 : vector<2x64xf32>
    %173 = math.tanh %172 : vector<2x64xf32>
    %cst_27 = arith.constant 1.000000e+00 : f32
    %174 = vector.broadcast %cst_27 : f32 to vector<2x64xf32>
    %175 = arith.subf %174, %168 : vector<2x64xf32>
    %176 = arith.mulf %175, %173 : vector<2x64xf32>
    %177 = arith.mulf %168, %130 : vector<2x64xf32>
    %178 = arith.addf %176, %177 : vector<2x64xf32>
    %179 = tpu.concatenate %156, %178 in 1 : vector<2x64xf32>, vector<2x64xf32> -> vector<2x128xf32>
    %cst_28 = arith.constant dense<0.000000e+00> : vector<2x576xf32>
    %180 = tpu.matmul %179, %6, %cst_28 {dimension_numbers = #tpu.dot_dimension_numbers<[1], [0], [0], [1], [0, 0, 1, 1], [], []>} : vector<2x128xf32>, vector<128x576xf32>, vector<2x576xf32> -> vector<2x576xf32>
    %181 = vector.broadcast %7 : vector<1x576xf32> to vector<2x576xf32>
    %182 = arith.addf %180, %181 : vector<2x576xf32>
    %183 = vector.extract_strided_slice %5 {offsets = [8, 0], sizes = [2, 192], strides = [1, 1]} : vector<16x192xf32> to vector<2x192xf32>
    %184 = vector.extract_strided_slice %182 {offsets = [0, 0], sizes = [2, 192], strides = [1, 1]} : vector<2x576xf32> to vector<2x192xf32>
    %185 = vector.extract_strided_slice %183 {offsets = [0, 0], sizes = [2, 128], strides = [1, 1]} : vector<2x192xf32> to vector<2x128xf32>
    %186 = vector.extract_strided_slice %184 {offsets = [0, 0], sizes = [2, 128], strides = [1, 1]} : vector<2x192xf32> to vector<2x128xf32>
    %187 = arith.addf %185, %186 : vector<2x128xf32>
    %188 = arith.negf %187 : vector<2x128xf32>
    %189 = math.exp %188 : vector<2x128xf32>
    %cst_29 = arith.constant 1.000000e+00 : f32
    %190 = vector.broadcast %cst_29 : f32 to vector<2x128xf32>
    %191 = arith.addf %190, %189 : vector<2x128xf32>
    %192 = arith.divf %190, %191 : vector<2x128xf32>
    %193 = vector.extract_strided_slice %192 {offsets = [0, 0], sizes = [2, 64], strides = [1, 1]} : vector<2x128xf32> to vector<2x64xf32>
    %194 = vector.extract_strided_slice %192 {offsets = [0, 64], sizes = [2, 64], strides = [1, 1]} : vector<2x128xf32> to vector<2x64xf32>
    %195 = vector.extract_strided_slice %183 {offsets = [0, 128], sizes = [2, 64], strides = [1, 1]} : vector<2x192xf32> to vector<2x64xf32>
    %196 = vector.extract_strided_slice %184 {offsets = [0, 128], sizes = [2, 64], strides = [1, 1]} : vector<2x192xf32> to vector<2x64xf32>
    %197 = arith.mulf %193, %196 : vector<2x64xf32>
    %198 = arith.addf %195, %197 : vector<2x64xf32>
    %199 = math.tanh %198 : vector<2x64xf32>
    %cst_30 = arith.constant 1.000000e+00 : f32
    %200 = vector.broadcast %cst_30 : f32 to vector<2x64xf32>
    %201 = arith.subf %200, %194 : vector<2x64xf32>
    %202 = arith.mulf %201, %199 : vector<2x64xf32>
    %203 = arith.mulf %194, %156 : vector<2x64xf32>
    %204 = arith.addf %202, %203 : vector<2x64xf32>
    %205 = vector.extract_strided_slice %182 {offsets = [0, 192], sizes = [2, 192], strides = [1, 1]} : vector<2x576xf32> to vector<2x192xf32>
    %206 = vector.extract_strided_slice %182 {offsets = [0, 384], sizes = [2, 192], strides = [1, 1]} : vector<2x576xf32> to vector<2x192xf32>
    %207 = vector.extract_strided_slice %205 {offsets = [0, 0], sizes = [2, 128], strides = [1, 1]} : vector<2x192xf32> to vector<2x128xf32>
    %208 = vector.extract_strided_slice %206 {offsets = [0, 0], sizes = [2, 128], strides = [1, 1]} : vector<2x192xf32> to vector<2x128xf32>
    %209 = arith.addf %207, %208 : vector<2x128xf32>
    %210 = arith.negf %209 : vector<2x128xf32>
    %211 = math.exp %210 : vector<2x128xf32>
    %cst_31 = arith.constant 1.000000e+00 : f32
    %212 = vector.broadcast %cst_31 : f32 to vector<2x128xf32>
    %213 = arith.addf %212, %211 : vector<2x128xf32>
    %214 = arith.divf %212, %213 : vector<2x128xf32>
    %215 = vector.extract_strided_slice %214 {offsets = [0, 0], sizes = [2, 64], strides = [1, 1]} : vector<2x128xf32> to vector<2x64xf32>
    %216 = vector.extract_strided_slice %214 {offsets = [0, 64], sizes = [2, 64], strides = [1, 1]} : vector<2x128xf32> to vector<2x64xf32>
    %217 = vector.extract_strided_slice %205 {offsets = [0, 128], sizes = [2, 64], strides = [1, 1]} : vector<2x192xf32> to vector<2x64xf32>
    %218 = vector.extract_strided_slice %206 {offsets = [0, 128], sizes = [2, 64], strides = [1, 1]} : vector<2x192xf32> to vector<2x64xf32>
    %219 = arith.mulf %215, %218 : vector<2x64xf32>
    %220 = arith.addf %217, %219 : vector<2x64xf32>
    %221 = math.tanh %220 : vector<2x64xf32>
    %cst_32 = arith.constant 1.000000e+00 : f32
    %222 = vector.broadcast %cst_32 : f32 to vector<2x64xf32>
    %223 = arith.subf %222, %216 : vector<2x64xf32>
    %224 = arith.mulf %223, %221 : vector<2x64xf32>
    %225 = arith.mulf %216, %178 : vector<2x64xf32>
    %226 = arith.addf %224, %225 : vector<2x64xf32>
    %227 = tpu.concatenate %204, %226 in 1 : vector<2x64xf32>, vector<2x64xf32> -> vector<2x128xf32>
    %cst_33 = arith.constant dense<0.000000e+00> : vector<2x576xf32>
    %228 = tpu.matmul %227, %6, %cst_33 {dimension_numbers = #tpu.dot_dimension_numbers<[1], [0], [0], [1], [0, 0, 1, 1], [], []>} : vector<2x128xf32>, vector<128x576xf32>, vector<2x576xf32> -> vector<2x576xf32>
    %229 = vector.broadcast %7 : vector<1x576xf32> to vector<2x576xf32>
    %230 = arith.addf %228, %229 : vector<2x576xf32>
    %231 = vector.extract_strided_slice %5 {offsets = [10, 0], sizes = [2, 192], strides = [1, 1]} : vector<16x192xf32> to vector<2x192xf32>
    %232 = vector.extract_strided_slice %230 {offsets = [0, 0], sizes = [2, 192], strides = [1, 1]} : vector<2x576xf32> to vector<2x192xf32>
    %233 = vector.extract_strided_slice %231 {offsets = [0, 0], sizes = [2, 128], strides = [1, 1]} : vector<2x192xf32> to vector<2x128xf32>
    %234 = vector.extract_strided_slice %232 {offsets = [0, 0], sizes = [2, 128], strides = [1, 1]} : vector<2x192xf32> to vector<2x128xf32>
    %235 = arith.addf %233, %234 : vector<2x128xf32>
    %236 = arith.negf %235 : vector<2x128xf32>
    %237 = math.exp %236 : vector<2x128xf32>
    %cst_34 = arith.constant 1.000000e+00 : f32
    %238 = vector.broadcast %cst_34 : f32 to vector<2x128xf32>
    %239 = arith.addf %238, %237 : vector<2x128xf32>
    %240 = arith.divf %238, %239 : vector<2x128xf32>
    %241 = vector.extract_strided_slice %240 {offsets = [0, 0], sizes = [2, 64], strides = [1, 1]} : vector<2x128xf32> to vector<2x64xf32>
    %242 = vector.extract_strided_slice %240 {offsets = [0, 64], sizes = [2, 64], strides = [1, 1]} : vector<2x128xf32> to vector<2x64xf32>
    %243 = vector.extract_strided_slice %231 {offsets = [0, 128], sizes = [2, 64], strides = [1, 1]} : vector<2x192xf32> to vector<2x64xf32>
    %244 = vector.extract_strided_slice %232 {offsets = [0, 128], sizes = [2, 64], strides = [1, 1]} : vector<2x192xf32> to vector<2x64xf32>
    %245 = arith.mulf %241, %244 : vector<2x64xf32>
    %246 = arith.addf %243, %245 : vector<2x64xf32>
    %247 = math.tanh %246 : vector<2x64xf32>
    %cst_35 = arith.constant 1.000000e+00 : f32
    %248 = vector.broadcast %cst_35 : f32 to vector<2x64xf32>
    %249 = arith.subf %248, %242 : vector<2x64xf32>
    %250 = arith.mulf %249, %247 : vector<2x64xf32>
    %251 = arith.mulf %242, %204 : vector<2x64xf32>
    %252 = arith.addf %250, %251 : vector<2x64xf32>
    %253 = vector.extract_strided_slice %230 {offsets = [0, 192], sizes = [2, 192], strides = [1, 1]} : vector<2x576xf32> to vector<2x192xf32>
    %254 = vector.extract_strided_slice %230 {offsets = [0, 384], sizes = [2, 192], strides = [1, 1]} : vector<2x576xf32> to vector<2x192xf32>
    %255 = vector.extract_strided_slice %253 {offsets = [0, 0], sizes = [2, 128], strides = [1, 1]} : vector<2x192xf32> to vector<2x128xf32>
    %256 = vector.extract_strided_slice %254 {offsets = [0, 0], sizes = [2, 128], strides = [1, 1]} : vector<2x192xf32> to vector<2x128xf32>
    %257 = arith.addf %255, %256 : vector<2x128xf32>
    %258 = arith.negf %257 : vector<2x128xf32>
    %259 = math.exp %258 : vector<2x128xf32>
    %cst_36 = arith.constant 1.000000e+00 : f32
    %260 = vector.broadcast %cst_36 : f32 to vector<2x128xf32>
    %261 = arith.addf %260, %259 : vector<2x128xf32>
    %262 = arith.divf %260, %261 : vector<2x128xf32>
    %263 = vector.extract_strided_slice %262 {offsets = [0, 0], sizes = [2, 64], strides = [1, 1]} : vector<2x128xf32> to vector<2x64xf32>
    %264 = vector.extract_strided_slice %262 {offsets = [0, 64], sizes = [2, 64], strides = [1, 1]} : vector<2x128xf32> to vector<2x64xf32>
    %265 = vector.extract_strided_slice %253 {offsets = [0, 128], sizes = [2, 64], strides = [1, 1]} : vector<2x192xf32> to vector<2x64xf32>
    %266 = vector.extract_strided_slice %254 {offsets = [0, 128], sizes = [2, 64], strides = [1, 1]} : vector<2x192xf32> to vector<2x64xf32>
    %267 = arith.mulf %263, %266 : vector<2x64xf32>
    %268 = arith.addf %265, %267 : vector<2x64xf32>
    %269 = math.tanh %268 : vector<2x64xf32>
    %cst_37 = arith.constant 1.000000e+00 : f32
    %270 = vector.broadcast %cst_37 : f32 to vector<2x64xf32>
    %271 = arith.subf %270, %264 : vector<2x64xf32>
    %272 = arith.mulf %271, %269 : vector<2x64xf32>
    %273 = arith.mulf %264, %226 : vector<2x64xf32>
    %274 = arith.addf %272, %273 : vector<2x64xf32>
    %275 = tpu.concatenate %252, %274 in 1 : vector<2x64xf32>, vector<2x64xf32> -> vector<2x128xf32>
    %cst_38 = arith.constant dense<0.000000e+00> : vector<2x576xf32>
    %276 = tpu.matmul %275, %6, %cst_38 {dimension_numbers = #tpu.dot_dimension_numbers<[1], [0], [0], [1], [0, 0, 1, 1], [], []>} : vector<2x128xf32>, vector<128x576xf32>, vector<2x576xf32> -> vector<2x576xf32>
    %277 = vector.broadcast %7 : vector<1x576xf32> to vector<2x576xf32>
    %278 = arith.addf %276, %277 : vector<2x576xf32>
    %279 = vector.extract_strided_slice %5 {offsets = [12, 0], sizes = [2, 192], strides = [1, 1]} : vector<16x192xf32> to vector<2x192xf32>
    %280 = vector.extract_strided_slice %278 {offsets = [0, 0], sizes = [2, 192], strides = [1, 1]} : vector<2x576xf32> to vector<2x192xf32>
    %281 = vector.extract_strided_slice %279 {offsets = [0, 0], sizes = [2, 128], strides = [1, 1]} : vector<2x192xf32> to vector<2x128xf32>
    %282 = vector.extract_strided_slice %280 {offsets = [0, 0], sizes = [2, 128], strides = [1, 1]} : vector<2x192xf32> to vector<2x128xf32>
    %283 = arith.addf %281, %282 : vector<2x128xf32>
    %284 = arith.negf %283 : vector<2x128xf32>
    %285 = math.exp %284 : vector<2x128xf32>
    %cst_39 = arith.constant 1.000000e+00 : f32
    %286 = vector.broadcast %cst_39 : f32 to vector<2x128xf32>
    %287 = arith.addf %286, %285 : vector<2x128xf32>
    %288 = arith.divf %286, %287 : vector<2x128xf32>
    %289 = vector.extract_strided_slice %288 {offsets = [0, 0], sizes = [2, 64], strides = [1, 1]} : vector<2x128xf32> to vector<2x64xf32>
    %290 = vector.extract_strided_slice %288 {offsets = [0, 64], sizes = [2, 64], strides = [1, 1]} : vector<2x128xf32> to vector<2x64xf32>
    %291 = vector.extract_strided_slice %279 {offsets = [0, 128], sizes = [2, 64], strides = [1, 1]} : vector<2x192xf32> to vector<2x64xf32>
    %292 = vector.extract_strided_slice %280 {offsets = [0, 128], sizes = [2, 64], strides = [1, 1]} : vector<2x192xf32> to vector<2x64xf32>
    %293 = arith.mulf %289, %292 : vector<2x64xf32>
    %294 = arith.addf %291, %293 : vector<2x64xf32>
    %295 = math.tanh %294 : vector<2x64xf32>
    %cst_40 = arith.constant 1.000000e+00 : f32
    %296 = vector.broadcast %cst_40 : f32 to vector<2x64xf32>
    %297 = arith.subf %296, %290 : vector<2x64xf32>
    %298 = arith.mulf %297, %295 : vector<2x64xf32>
    %299 = arith.mulf %290, %252 : vector<2x64xf32>
    %300 = arith.addf %298, %299 : vector<2x64xf32>
    %301 = vector.extract_strided_slice %278 {offsets = [0, 192], sizes = [2, 192], strides = [1, 1]} : vector<2x576xf32> to vector<2x192xf32>
    %302 = vector.extract_strided_slice %278 {offsets = [0, 384], sizes = [2, 192], strides = [1, 1]} : vector<2x576xf32> to vector<2x192xf32>
    %303 = vector.extract_strided_slice %301 {offsets = [0, 0], sizes = [2, 128], strides = [1, 1]} : vector<2x192xf32> to vector<2x128xf32>
    %304 = vector.extract_strided_slice %302 {offsets = [0, 0], sizes = [2, 128], strides = [1, 1]} : vector<2x192xf32> to vector<2x128xf32>
    %305 = arith.addf %303, %304 : vector<2x128xf32>
    %306 = arith.negf %305 : vector<2x128xf32>
    %307 = math.exp %306 : vector<2x128xf32>
    %cst_41 = arith.constant 1.000000e+00 : f32
    %308 = vector.broadcast %cst_41 : f32 to vector<2x128xf32>
    %309 = arith.addf %308, %307 : vector<2x128xf32>
    %310 = arith.divf %308, %309 : vector<2x128xf32>
    %311 = vector.extract_strided_slice %310 {offsets = [0, 0], sizes = [2, 64], strides = [1, 1]} : vector<2x128xf32> to vector<2x64xf32>
    %312 = vector.extract_strided_slice %310 {offsets = [0, 64], sizes = [2, 64], strides = [1, 1]} : vector<2x128xf32> to vector<2x64xf32>
    %313 = vector.extract_strided_slice %301 {offsets = [0, 128], sizes = [2, 64], strides = [1, 1]} : vector<2x192xf32> to vector<2x64xf32>
    %314 = vector.extract_strided_slice %302 {offsets = [0, 128], sizes = [2, 64], strides = [1, 1]} : vector<2x192xf32> to vector<2x64xf32>
    %315 = arith.mulf %311, %314 : vector<2x64xf32>
    %316 = arith.addf %313, %315 : vector<2x64xf32>
    %317 = math.tanh %316 : vector<2x64xf32>
    %cst_42 = arith.constant 1.000000e+00 : f32
    %318 = vector.broadcast %cst_42 : f32 to vector<2x64xf32>
    %319 = arith.subf %318, %312 : vector<2x64xf32>
    %320 = arith.mulf %319, %317 : vector<2x64xf32>
    %321 = arith.mulf %312, %274 : vector<2x64xf32>
    %322 = arith.addf %320, %321 : vector<2x64xf32>
    %323 = tpu.concatenate %300, %322 in 1 : vector<2x64xf32>, vector<2x64xf32> -> vector<2x128xf32>
    %cst_43 = arith.constant dense<0.000000e+00> : vector<2x576xf32>
    %324 = tpu.matmul %323, %6, %cst_43 {dimension_numbers = #tpu.dot_dimension_numbers<[1], [0], [0], [1], [0, 0, 1, 1], [], []>} : vector<2x128xf32>, vector<128x576xf32>, vector<2x576xf32> -> vector<2x576xf32>
    %325 = vector.broadcast %7 : vector<1x576xf32> to vector<2x576xf32>
    %326 = arith.addf %324, %325 : vector<2x576xf32>
    %327 = vector.extract_strided_slice %5 {offsets = [14, 0], sizes = [2, 192], strides = [1, 1]} : vector<16x192xf32> to vector<2x192xf32>
    %328 = vector.extract_strided_slice %326 {offsets = [0, 0], sizes = [2, 192], strides = [1, 1]} : vector<2x576xf32> to vector<2x192xf32>
    %329 = vector.extract_strided_slice %327 {offsets = [0, 0], sizes = [2, 128], strides = [1, 1]} : vector<2x192xf32> to vector<2x128xf32>
    %330 = vector.extract_strided_slice %328 {offsets = [0, 0], sizes = [2, 128], strides = [1, 1]} : vector<2x192xf32> to vector<2x128xf32>
    %331 = arith.addf %329, %330 : vector<2x128xf32>
    %332 = arith.negf %331 : vector<2x128xf32>
    %333 = math.exp %332 : vector<2x128xf32>
    %cst_44 = arith.constant 1.000000e+00 : f32
    %334 = vector.broadcast %cst_44 : f32 to vector<2x128xf32>
    %335 = arith.addf %334, %333 : vector<2x128xf32>
    %336 = arith.divf %334, %335 : vector<2x128xf32>
    %337 = vector.extract_strided_slice %336 {offsets = [0, 0], sizes = [2, 64], strides = [1, 1]} : vector<2x128xf32> to vector<2x64xf32>
    %338 = vector.extract_strided_slice %336 {offsets = [0, 64], sizes = [2, 64], strides = [1, 1]} : vector<2x128xf32> to vector<2x64xf32>
    %339 = vector.extract_strided_slice %327 {offsets = [0, 128], sizes = [2, 64], strides = [1, 1]} : vector<2x192xf32> to vector<2x64xf32>
    %340 = vector.extract_strided_slice %328 {offsets = [0, 128], sizes = [2, 64], strides = [1, 1]} : vector<2x192xf32> to vector<2x64xf32>
    %341 = arith.mulf %337, %340 : vector<2x64xf32>
    %342 = arith.addf %339, %341 : vector<2x64xf32>
    %343 = math.tanh %342 : vector<2x64xf32>
    %cst_45 = arith.constant 1.000000e+00 : f32
    %344 = vector.broadcast %cst_45 : f32 to vector<2x64xf32>
    %345 = arith.subf %344, %338 : vector<2x64xf32>
    %346 = arith.mulf %345, %343 : vector<2x64xf32>
    %347 = arith.mulf %338, %300 : vector<2x64xf32>
    %348 = arith.addf %346, %347 : vector<2x64xf32>
    %349 = vector.extract_strided_slice %326 {offsets = [0, 192], sizes = [2, 192], strides = [1, 1]} : vector<2x576xf32> to vector<2x192xf32>
    %350 = vector.extract_strided_slice %326 {offsets = [0, 384], sizes = [2, 192], strides = [1, 1]} : vector<2x576xf32> to vector<2x192xf32>
    %351 = vector.extract_strided_slice %349 {offsets = [0, 0], sizes = [2, 128], strides = [1, 1]} : vector<2x192xf32> to vector<2x128xf32>
    %352 = vector.extract_strided_slice %350 {offsets = [0, 0], sizes = [2, 128], strides = [1, 1]} : vector<2x192xf32> to vector<2x128xf32>
    %353 = arith.addf %351, %352 : vector<2x128xf32>
    %354 = arith.negf %353 : vector<2x128xf32>
    %355 = math.exp %354 : vector<2x128xf32>
    %cst_46 = arith.constant 1.000000e+00 : f32
    %356 = vector.broadcast %cst_46 : f32 to vector<2x128xf32>
    %357 = arith.addf %356, %355 : vector<2x128xf32>
    %358 = arith.divf %356, %357 : vector<2x128xf32>
    %359 = vector.extract_strided_slice %358 {offsets = [0, 0], sizes = [2, 64], strides = [1, 1]} : vector<2x128xf32> to vector<2x64xf32>
    %360 = vector.extract_strided_slice %358 {offsets = [0, 64], sizes = [2, 64], strides = [1, 1]} : vector<2x128xf32> to vector<2x64xf32>
    %361 = vector.extract_strided_slice %349 {offsets = [0, 128], sizes = [2, 64], strides = [1, 1]} : vector<2x192xf32> to vector<2x64xf32>
    %362 = vector.extract_strided_slice %350 {offsets = [0, 128], sizes = [2, 64], strides = [1, 1]} : vector<2x192xf32> to vector<2x64xf32>
    %363 = arith.mulf %359, %362 : vector<2x64xf32>
    %364 = arith.addf %361, %363 : vector<2x64xf32>
    %365 = math.tanh %364 : vector<2x64xf32>
    %cst_47 = arith.constant 1.000000e+00 : f32
    %366 = vector.broadcast %cst_47 : f32 to vector<2x64xf32>
    %367 = arith.subf %366, %360 : vector<2x64xf32>
    %368 = arith.mulf %367, %365 : vector<2x64xf32>
    %369 = arith.mulf %360, %322 : vector<2x64xf32>
    %370 = arith.addf %368, %369 : vector<2x64xf32>
    %371 = tpu.concatenate %348, %370 in 1 : vector<2x64xf32>, vector<2x64xf32> -> vector<2x128xf32>
    %cst_48 = arith.constant dense<0.000000e+00> : vector<2x576xf32>
    %372 = tpu.matmul %371, %6, %cst_48 {dimension_numbers = #tpu.dot_dimension_numbers<[1], [0], [0], [1], [0, 0, 1, 1], [], []>} : vector<2x128xf32>, vector<128x576xf32>, vector<2x576xf32> -> vector<2x576xf32>
    %373 = vector.broadcast %7 : vector<1x576xf32> to vector<2x576xf32>
    %374 = arith.addf %372, %373 : vector<2x576xf32>
    %375 = vector.extract_strided_slice %374 {offsets = [0, 192], sizes = [2, 192], strides = [1, 1]} : vector<2x576xf32> to vector<2x192xf32>
    %376 = vector.extract_strided_slice %374 {offsets = [0, 384], sizes = [2, 192], strides = [1, 1]} : vector<2x576xf32> to vector<2x192xf32>
    %377 = vector.extract_strided_slice %375 {offsets = [0, 0], sizes = [2, 128], strides = [1, 1]} : vector<2x192xf32> to vector<2x128xf32>
    %378 = vector.extract_strided_slice %376 {offsets = [0, 0], sizes = [2, 128], strides = [1, 1]} : vector<2x192xf32> to vector<2x128xf32>
    %379 = arith.addf %377, %378 : vector<2x128xf32>
    %380 = arith.negf %379 : vector<2x128xf32>
    %381 = math.exp %380 : vector<2x128xf32>
    %cst_49 = arith.constant 1.000000e+00 : f32
    %382 = vector.broadcast %cst_49 : f32 to vector<2x128xf32>
    %383 = arith.addf %382, %381 : vector<2x128xf32>
    %384 = arith.divf %382, %383 : vector<2x128xf32>
    %385 = vector.extract_strided_slice %384 {offsets = [0, 0], sizes = [2, 64], strides = [1, 1]} : vector<2x128xf32> to vector<2x64xf32>
    %386 = vector.extract_strided_slice %384 {offsets = [0, 64], sizes = [2, 64], strides = [1, 1]} : vector<2x128xf32> to vector<2x64xf32>
    %387 = vector.extract_strided_slice %375 {offsets = [0, 128], sizes = [2, 64], strides = [1, 1]} : vector<2x192xf32> to vector<2x64xf32>
    %388 = vector.extract_strided_slice %376 {offsets = [0, 128], sizes = [2, 64], strides = [1, 1]} : vector<2x192xf32> to vector<2x64xf32>
    %389 = arith.mulf %385, %388 : vector<2x64xf32>
    %390 = arith.addf %387, %389 : vector<2x64xf32>
    %391 = math.tanh %390 : vector<2x64xf32>
    %cst_50 = arith.constant 1.000000e+00 : f32
    %392 = vector.broadcast %cst_50 : f32 to vector<2x64xf32>
    %393 = arith.subf %392, %386 : vector<2x64xf32>
    %394 = arith.mulf %393, %391 : vector<2x64xf32>
    %395 = arith.mulf %386, %370 : vector<2x64xf32>
    %396 = arith.addf %394, %395 : vector<2x64xf32>
    %397 = vector.extract_strided_slice %82 {offsets = [0, 0], sizes = [1, 64], strides = [1, 1]} : vector<2x64xf32> to vector<1x64xf32>
    %398 = vector.extract_strided_slice %130 {offsets = [0, 0], sizes = [1, 64], strides = [1, 1]} : vector<2x64xf32> to vector<1x64xf32>
    %399 = vector.extract_strided_slice %178 {offsets = [0, 0], sizes = [1, 64], strides = [1, 1]} : vector<2x64xf32> to vector<1x64xf32>
    %400 = vector.extract_strided_slice %226 {offsets = [0, 0], sizes = [1, 64], strides = [1, 1]} : vector<2x64xf32> to vector<1x64xf32>
    %401 = vector.extract_strided_slice %274 {offsets = [0, 0], sizes = [1, 64], strides = [1, 1]} : vector<2x64xf32> to vector<1x64xf32>
    %402 = vector.extract_strided_slice %322 {offsets = [0, 0], sizes = [1, 64], strides = [1, 1]} : vector<2x64xf32> to vector<1x64xf32>
    %403 = vector.extract_strided_slice %370 {offsets = [0, 0], sizes = [1, 64], strides = [1, 1]} : vector<2x64xf32> to vector<1x64xf32>
    %404 = vector.extract_strided_slice %396 {offsets = [0, 0], sizes = [1, 64], strides = [1, 1]} : vector<2x64xf32> to vector<1x64xf32>
    %405 = vector.extract_strided_slice %82 {offsets = [1, 0], sizes = [1, 64], strides = [1, 1]} : vector<2x64xf32> to vector<1x64xf32>
    %406 = vector.extract_strided_slice %130 {offsets = [1, 0], sizes = [1, 64], strides = [1, 1]} : vector<2x64xf32> to vector<1x64xf32>
    %407 = vector.extract_strided_slice %178 {offsets = [1, 0], sizes = [1, 64], strides = [1, 1]} : vector<2x64xf32> to vector<1x64xf32>
    %408 = vector.extract_strided_slice %226 {offsets = [1, 0], sizes = [1, 64], strides = [1, 1]} : vector<2x64xf32> to vector<1x64xf32>
    %409 = vector.extract_strided_slice %274 {offsets = [1, 0], sizes = [1, 64], strides = [1, 1]} : vector<2x64xf32> to vector<1x64xf32>
    %410 = vector.extract_strided_slice %322 {offsets = [1, 0], sizes = [1, 64], strides = [1, 1]} : vector<2x64xf32> to vector<1x64xf32>
    %411 = vector.extract_strided_slice %370 {offsets = [1, 0], sizes = [1, 64], strides = [1, 1]} : vector<2x64xf32> to vector<1x64xf32>
    %412 = vector.extract_strided_slice %396 {offsets = [1, 0], sizes = [1, 64], strides = [1, 1]} : vector<2x64xf32> to vector<1x64xf32>
    %413 = tpu.concatenate %397, %398, %399, %400, %401, %402, %403, %404, %405, %406, %407, %408, %409, %410, %411, %412 in 0 : vector<1x64xf32>, vector<1x64xf32>, vector<1x64xf32>, vector<1x64xf32>, vector<1x64xf32>, vector<1x64xf32>, vector<1x64xf32>, vector<1x64xf32>, vector<1x64xf32>, vector<1x64xf32>, vector<1x64xf32>, vector<1x64xf32>, vector<1x64xf32>, vector<1x64xf32>, vector<1x64xf32>, vector<1x64xf32> -> vector<16x64xf32>
    %c0_51 = arith.constant 0 : index
    %c0_52 = arith.constant 0 : index
    %414 = vector.load %arg4[%c0_51, %c0_52] : memref<64x408xf32, #tpu.memory_space<vmem>>, vector<64x192xf32>
    %cst_53 = arith.constant dense<0.000000e+00> : vector<16x192xf32>
    %415 = tpu.matmul %413, %414, %cst_53 {dimension_numbers = #tpu.dot_dimension_numbers<[1], [0], [0], [1], [0, 0, 1, 1], [], []>} : vector<16x64xf32>, vector<64x192xf32>, vector<16x192xf32> -> vector<16x192xf32>
    %c0_54 = arith.constant 0 : index
    %c768 = arith.constant 768 : index
    %416 = vector.load %arg5[%c0_54, %c768] : memref<1x1243xf32, #tpu.memory_space<vmem>>, vector<1x192xf32>
    %417 = vector.broadcast %416 : vector<1x192xf32> to vector<16x192xf32>
    %418 = arith.addf %415, %417 : vector<16x192xf32>
    %419 = vector.extract_strided_slice %418 {offsets = [0, 0], sizes = [16, 64], strides = [1, 1]} : vector<16x192xf32> to vector<16x64xf32>
    %420 = vector.shape_cast %419 : vector<16x64xf32> to vector<2x8x64xf32>
    %421 = vector.extract_strided_slice %418 {offsets = [0, 64], sizes = [16, 64], strides = [1, 1]} : vector<16x192xf32> to vector<16x64xf32>
    %422 = vector.shape_cast %421 : vector<16x64xf32> to vector<2x8x64xf32>
    %423 = vector.extract_strided_slice %418 {offsets = [0, 128], sizes = [16, 64], strides = [1, 1]} : vector<16x192xf32> to vector<16x64xf32>
    %424 = vector.shape_cast %423 : vector<16x64xf32> to vector<2x8x64xf32>
    %c0_55 = arith.constant 0 : index
    %c192 = arith.constant 192 : index
    %425 = vector.load %arg4[%c0_55, %c192] : memref<64x408xf32, #tpu.memory_space<vmem>>, vector<64x64xf32>
    %426 = vector.extract_strided_slice %420 {offsets = [0, 0, 0], sizes = [2, 8, 16], strides = [1, 1, 1]} : vector<2x8x64xf32> to vector<2x8x16xf32>
    %427 = vector.extract_strided_slice %422 {offsets = [0, 0, 0], sizes = [2, 8, 16], strides = [1, 1, 1]} : vector<2x8x64xf32> to vector<2x8x16xf32>
    "tpu.trace_start"() <{level = 10 : i32, message = "btd,bsd->bts"}> : () -> ()
    %cst_56 = arith.constant dense<0.000000e+00> : vector<2x8x8xf32>
    %428 = tpu.matmul %426, %427, %cst_56 {dimension_numbers = #tpu.dot_dimension_numbers<[2], [2], [1], [1], [0, 0, 0, 1, 1, 1], [0], [0]>} : vector<2x8x16xf32>, vector<2x8x16xf32>, vector<2x8x8xf32> -> vector<2x8x8xf32>
    "tpu.trace_stop"() : () -> ()
    %cst_57 = arith.constant 2.500000e-01 : f32
    %429 = vector.broadcast %cst_57 : f32 to vector<2x8x8xf32>
    %430 = arith.mulf %428, %429 : vector<2x8x8xf32>
    %cst_58 = arith.constant dense<0xFF800000> : vector<2x8xf32>
    %431 = vector.multi_reduction <maximumf>, %430, %cst_58 [2] : vector<2x8x8xf32> to vector<2x8xf32>
    %432 = vector.shape_cast %431 : vector<2x8xf32> to vector<2x8x1xf32>
    %433 = vector.broadcast %432 : vector<2x8x1xf32> to vector<2x8x8xf32>
    %434 = arith.subf %430, %433 : vector<2x8x8xf32>
    %435 = math.exp %434 : vector<2x8x8xf32>
    %cst_59 = arith.constant dense<0.000000e+00> : vector<2x8xf32>
    %436 = vector.multi_reduction <add>, %435, %cst_59 [2] : vector<2x8x8xf32> to vector<2x8xf32>
    %437 = vector.shape_cast %436 : vector<2x8xf32> to vector<2x8x1xf32>
    %438 = vector.broadcast %437 : vector<2x8x1xf32> to vector<2x8x8xf32>
    %439 = arith.divf %435, %438 : vector<2x8x8xf32>
    %440 = vector.extract_strided_slice %424 {offsets = [0, 0, 0], sizes = [2, 8, 16], strides = [1, 1, 1]} : vector<2x8x64xf32> to vector<2x8x16xf32>
    "tpu.trace_start"() <{level = 10 : i32, message = "bts,bsd->btd"}> : () -> ()
    %cst_60 = arith.constant dense<0.000000e+00> : vector<2x8x16xf32>
    %441 = tpu.matmul %439, %440, %cst_60 {dimension_numbers = #tpu.dot_dimension_numbers<[2], [1], [1], [2], [0, 0, 0, 1, 1, 2], [0], [0]>} : vector<2x8x8xf32>, vector<2x8x16xf32>, vector<2x8x16xf32> -> vector<2x8x16xf32>
    "tpu.trace_stop"() : () -> ()
    %442 = vector.shape_cast %441 : vector<2x8x16xf32> to vector<16x16xf32>
    %443 = vector.extract_strided_slice %425 {offsets = [0, 0], sizes = [16, 64], strides = [1, 1]} : vector<64x64xf32> to vector<16x64xf32>
    %cst_61 = arith.constant dense<0.000000e+00> : vector<16x64xf32>
    %444 = tpu.matmul %442, %443, %cst_61 {dimension_numbers = #tpu.dot_dimension_numbers<[1], [0], [0], [1], [0, 0, 1, 1], [], []>} : vector<16x16xf32>, vector<16x64xf32>, vector<16x64xf32> -> vector<16x64xf32>
    %445 = vector.extract_strided_slice %420 {offsets = [0, 0, 16], sizes = [2, 8, 16], strides = [1, 1, 1]} : vector<2x8x64xf32> to vector<2x8x16xf32>
    %446 = vector.extract_strided_slice %422 {offsets = [0, 0, 16], sizes = [2, 8, 16], strides = [1, 1, 1]} : vector<2x8x64xf32> to vector<2x8x16xf32>
    "tpu.trace_start"() <{level = 10 : i32, message = "btd,bsd->bts"}> : () -> ()
    %cst_62 = arith.constant dense<0.000000e+00> : vector<2x8x8xf32>
    %447 = tpu.matmul %445, %446, %cst_62 {dimension_numbers = #tpu.dot_dimension_numbers<[2], [2], [1], [1], [0, 0, 0, 1, 1, 1], [0], [0]>} : vector<2x8x16xf32>, vector<2x8x16xf32>, vector<2x8x8xf32> -> vector<2x8x8xf32>
    "tpu.trace_stop"() : () -> ()
    %cst_63 = arith.constant 2.500000e-01 : f32
    %448 = vector.broadcast %cst_63 : f32 to vector<2x8x8xf32>
    %449 = arith.mulf %447, %448 : vector<2x8x8xf32>
    %cst_64 = arith.constant dense<0xFF800000> : vector<2x8xf32>
    %450 = vector.multi_reduction <maximumf>, %449, %cst_64 [2] : vector<2x8x8xf32> to vector<2x8xf32>
    %451 = vector.shape_cast %450 : vector<2x8xf32> to vector<2x8x1xf32>
    %452 = vector.broadcast %451 : vector<2x8x1xf32> to vector<2x8x8xf32>
    %453 = arith.subf %449, %452 : vector<2x8x8xf32>
    %454 = math.exp %453 : vector<2x8x8xf32>
    %cst_65 = arith.constant dense<0.000000e+00> : vector<2x8xf32>
    %455 = vector.multi_reduction <add>, %454, %cst_65 [2] : vector<2x8x8xf32> to vector<2x8xf32>
    %456 = vector.shape_cast %455 : vector<2x8xf32> to vector<2x8x1xf32>
    %457 = vector.broadcast %456 : vector<2x8x1xf32> to vector<2x8x8xf32>
    %458 = arith.divf %454, %457 : vector<2x8x8xf32>
    %459 = vector.extract_strided_slice %424 {offsets = [0, 0, 16], sizes = [2, 8, 16], strides = [1, 1, 1]} : vector<2x8x64xf32> to vector<2x8x16xf32>
    "tpu.trace_start"() <{level = 10 : i32, message = "bts,bsd->btd"}> : () -> ()
    %cst_66 = arith.constant dense<0.000000e+00> : vector<2x8x16xf32>
    %460 = tpu.matmul %458, %459, %cst_66 {dimension_numbers = #tpu.dot_dimension_numbers<[2], [1], [1], [2], [0, 0, 0, 1, 1, 2], [0], [0]>} : vector<2x8x8xf32>, vector<2x8x16xf32>, vector<2x8x16xf32> -> vector<2x8x16xf32>
    "tpu.trace_stop"() : () -> ()
    %461 = vector.shape_cast %460 : vector<2x8x16xf32> to vector<16x16xf32>
    %462 = vector.extract_strided_slice %425 {offsets = [16, 0], sizes = [16, 64], strides = [1, 1]} : vector<64x64xf32> to vector<16x64xf32>
    %cst_67 = arith.constant dense<0.000000e+00> : vector<16x64xf32>
    %463 = tpu.matmul %461, %462, %cst_67 {dimension_numbers = #tpu.dot_dimension_numbers<[1], [0], [0], [1], [0, 0, 1, 1], [], []>} : vector<16x16xf32>, vector<16x64xf32>, vector<16x64xf32> -> vector<16x64xf32>
    %464 = arith.addf %444, %463 : vector<16x64xf32>
    %465 = vector.extract_strided_slice %420 {offsets = [0, 0, 32], sizes = [2, 8, 16], strides = [1, 1, 1]} : vector<2x8x64xf32> to vector<2x8x16xf32>
    %466 = vector.extract_strided_slice %422 {offsets = [0, 0, 32], sizes = [2, 8, 16], strides = [1, 1, 1]} : vector<2x8x64xf32> to vector<2x8x16xf32>
    "tpu.trace_start"() <{level = 10 : i32, message = "btd,bsd->bts"}> : () -> ()
    %cst_68 = arith.constant dense<0.000000e+00> : vector<2x8x8xf32>
    %467 = tpu.matmul %465, %466, %cst_68 {dimension_numbers = #tpu.dot_dimension_numbers<[2], [2], [1], [1], [0, 0, 0, 1, 1, 1], [0], [0]>} : vector<2x8x16xf32>, vector<2x8x16xf32>, vector<2x8x8xf32> -> vector<2x8x8xf32>
    "tpu.trace_stop"() : () -> ()
    %cst_69 = arith.constant 2.500000e-01 : f32
    %468 = vector.broadcast %cst_69 : f32 to vector<2x8x8xf32>
    %469 = arith.mulf %467, %468 : vector<2x8x8xf32>
    %cst_70 = arith.constant dense<0xFF800000> : vector<2x8xf32>
    %470 = vector.multi_reduction <maximumf>, %469, %cst_70 [2] : vector<2x8x8xf32> to vector<2x8xf32>
    %471 = vector.shape_cast %470 : vector<2x8xf32> to vector<2x8x1xf32>
    %472 = vector.broadcast %471 : vector<2x8x1xf32> to vector<2x8x8xf32>
    %473 = arith.subf %469, %472 : vector<2x8x8xf32>
    %474 = math.exp %473 : vector<2x8x8xf32>
    %cst_71 = arith.constant dense<0.000000e+00> : vector<2x8xf32>
    %475 = vector.multi_reduction <add>, %474, %cst_71 [2] : vector<2x8x8xf32> to vector<2x8xf32>
    %476 = vector.shape_cast %475 : vector<2x8xf32> to vector<2x8x1xf32>
    %477 = vector.broadcast %476 : vector<2x8x1xf32> to vector<2x8x8xf32>
    %478 = arith.divf %474, %477 : vector<2x8x8xf32>
    %479 = vector.extract_strided_slice %424 {offsets = [0, 0, 32], sizes = [2, 8, 16], strides = [1, 1, 1]} : vector<2x8x64xf32> to vector<2x8x16xf32>
    "tpu.trace_start"() <{level = 10 : i32, message = "bts,bsd->btd"}> : () -> ()
    %cst_72 = arith.constant dense<0.000000e+00> : vector<2x8x16xf32>
    %480 = tpu.matmul %478, %479, %cst_72 {dimension_numbers = #tpu.dot_dimension_numbers<[2], [1], [1], [2], [0, 0, 0, 1, 1, 2], [0], [0]>} : vector<2x8x8xf32>, vector<2x8x16xf32>, vector<2x8x16xf32> -> vector<2x8x16xf32>
    "tpu.trace_stop"() : () -> ()
    %481 = vector.shape_cast %480 : vector<2x8x16xf32> to vector<16x16xf32>
    %482 = vector.extract_strided_slice %425 {offsets = [32, 0], sizes = [16, 64], strides = [1, 1]} : vector<64x64xf32> to vector<16x64xf32>
    %cst_73 = arith.constant dense<0.000000e+00> : vector<16x64xf32>
    %483 = tpu.matmul %481, %482, %cst_73 {dimension_numbers = #tpu.dot_dimension_numbers<[1], [0], [0], [1], [0, 0, 1, 1], [], []>} : vector<16x16xf32>, vector<16x64xf32>, vector<16x64xf32> -> vector<16x64xf32>
    %484 = arith.addf %464, %483 : vector<16x64xf32>
    %485 = vector.extract_strided_slice %420 {offsets = [0, 0, 48], sizes = [2, 8, 16], strides = [1, 1, 1]} : vector<2x8x64xf32> to vector<2x8x16xf32>
    %486 = vector.extract_strided_slice %422 {offsets = [0, 0, 48], sizes = [2, 8, 16], strides = [1, 1, 1]} : vector<2x8x64xf32> to vector<2x8x16xf32>
    "tpu.trace_start"() <{level = 10 : i32, message = "btd,bsd->bts"}> : () -> ()
    %cst_74 = arith.constant dense<0.000000e+00> : vector<2x8x8xf32>
    %487 = tpu.matmul %485, %486, %cst_74 {dimension_numbers = #tpu.dot_dimension_numbers<[2], [2], [1], [1], [0, 0, 0, 1, 1, 1], [0], [0]>} : vector<2x8x16xf32>, vector<2x8x16xf32>, vector<2x8x8xf32> -> vector<2x8x8xf32>
    "tpu.trace_stop"() : () -> ()
    %cst_75 = arith.constant 2.500000e-01 : f32
    %488 = vector.broadcast %cst_75 : f32 to vector<2x8x8xf32>
    %489 = arith.mulf %487, %488 : vector<2x8x8xf32>
    %cst_76 = arith.constant dense<0xFF800000> : vector<2x8xf32>
    %490 = vector.multi_reduction <maximumf>, %489, %cst_76 [2] : vector<2x8x8xf32> to vector<2x8xf32>
    %491 = vector.shape_cast %490 : vector<2x8xf32> to vector<2x8x1xf32>
    %492 = vector.broadcast %491 : vector<2x8x1xf32> to vector<2x8x8xf32>
    %493 = arith.subf %489, %492 : vector<2x8x8xf32>
    %494 = math.exp %493 : vector<2x8x8xf32>
    %cst_77 = arith.constant dense<0.000000e+00> : vector<2x8xf32>
    %495 = vector.multi_reduction <add>, %494, %cst_77 [2] : vector<2x8x8xf32> to vector<2x8xf32>
    %496 = vector.shape_cast %495 : vector<2x8xf32> to vector<2x8x1xf32>
    %497 = vector.broadcast %496 : vector<2x8x1xf32> to vector<2x8x8xf32>
    %498 = arith.divf %494, %497 : vector<2x8x8xf32>
    %499 = vector.extract_strided_slice %424 {offsets = [0, 0, 48], sizes = [2, 8, 16], strides = [1, 1, 1]} : vector<2x8x64xf32> to vector<2x8x16xf32>
    "tpu.trace_start"() <{level = 10 : i32, message = "bts,bsd->btd"}> : () -> ()
    %cst_78 = arith.constant dense<0.000000e+00> : vector<2x8x16xf32>
    %500 = tpu.matmul %498, %499, %cst_78 {dimension_numbers = #tpu.dot_dimension_numbers<[2], [1], [1], [2], [0, 0, 0, 1, 1, 2], [0], [0]>} : vector<2x8x8xf32>, vector<2x8x16xf32>, vector<2x8x16xf32> -> vector<2x8x16xf32>
    "tpu.trace_stop"() : () -> ()
    %501 = vector.shape_cast %500 : vector<2x8x16xf32> to vector<16x16xf32>
    %502 = vector.extract_strided_slice %425 {offsets = [48, 0], sizes = [16, 64], strides = [1, 1]} : vector<64x64xf32> to vector<16x64xf32>
    %cst_79 = arith.constant dense<0.000000e+00> : vector<16x64xf32>
    %503 = tpu.matmul %501, %502, %cst_79 {dimension_numbers = #tpu.dot_dimension_numbers<[1], [0], [0], [1], [0, 0, 1, 1], [], []>} : vector<16x16xf32>, vector<16x64xf32>, vector<16x64xf32> -> vector<16x64xf32>
    %504 = arith.addf %484, %503 : vector<16x64xf32>
    %c0_80 = arith.constant 0 : index
    %c960 = arith.constant 960 : index
    %505 = vector.load %arg5[%c0_80, %c960] : memref<1x1243xf32, #tpu.memory_space<vmem>>, vector<1x64xf32>
    %506 = vector.broadcast %505 : vector<1x64xf32> to vector<16x64xf32>
    %507 = arith.addf %504, %506 : vector<16x64xf32>
    %c0_81 = arith.constant 0 : index
    %c256 = arith.constant 256 : index
    %508 = vector.load %arg4[%c0_81, %c256] : memref<64x408xf32, #tpu.memory_space<vmem>>, vector<64x64xf32>
    %cst_82 = arith.constant dense<0.000000e+00> : vector<16x64xf32>
    %509 = tpu.matmul %507, %508, %cst_82 {dimension_numbers = #tpu.dot_dimension_numbers<[1], [0], [0], [1], [0, 0, 1, 1], [], []>} : vector<16x64xf32>, vector<64x64xf32>, vector<16x64xf32> -> vector<16x64xf32>
    %c0_83 = arith.constant 0 : index
    %c1024 = arith.constant 1024 : index
    %510 = vector.load %arg5[%c0_83, %c1024] : memref<1x1243xf32, #tpu.memory_space<vmem>>, vector<1x64xf32>
    %511 = vector.broadcast %510 : vector<1x64xf32> to vector<16x64xf32>
    %512 = arith.addf %509, %511 : vector<16x64xf32>
    %c0_84 = arith.constant 0 : index
    %c1240 = arith.constant 1240 : index
    %513 = vector.load %arg5[%c0_84, %c1240] : memref<1x1243xf32, #tpu.memory_space<vmem>>, vector<1x1xf32>
    %cst_85 = arith.constant 0.000000e+00 : f32
    %514 = vector.broadcast %cst_85 : f32 to vector<16x64xf32>
    %515 = arith.cmpf oge, %512, %514 : vector<16x64xf32>
    %516 = vector.broadcast %513 : vector<1x1xf32> to vector<16x64xf32>
    %517 = arith.mulf %516, %512 : vector<16x64xf32>
    %518 = arith.select %515, %512, %517 : vector<16x64xi1>, vector<16x64xf32>
    %c0_86 = arith.constant 0 : index
    %c320 = arith.constant 320 : index
    %519 = vector.load %arg4[%c0_86, %c320] : memref<64x408xf32, #tpu.memory_space<vmem>>, vector<64x64xf32>
    %cst_87 = arith.constant dense<0.000000e+00> : vector<16x64xf32>
    %520 = tpu.matmul %518, %519, %cst_87 {dimension_numbers = #tpu.dot_dimension_numbers<[1], [0], [0], [1], [0, 0, 1, 1], [], []>} : vector<16x64xf32>, vector<64x64xf32>, vector<16x64xf32> -> vector<16x64xf32>
    %c0_88 = arith.constant 0 : index
    %c1088 = arith.constant 1088 : index
    %521 = vector.load %arg5[%c0_88, %c1088] : memref<1x1243xf32, #tpu.memory_space<vmem>>, vector<1x64xf32>
    %522 = vector.broadcast %521 : vector<1x64xf32> to vector<16x64xf32>
    %523 = arith.addf %520, %522 : vector<16x64xf32>
    %c0_89 = arith.constant 0 : index
    %c1241 = arith.constant 1241 : index
    %524 = vector.load %arg5[%c0_89, %c1241] : memref<1x1243xf32, #tpu.memory_space<vmem>>, vector<1x1xf32>
    %cst_90 = arith.constant 0.000000e+00 : f32
    %525 = vector.broadcast %cst_90 : f32 to vector<16x64xf32>
    %526 = arith.cmpf oge, %523, %525 : vector<16x64xf32>
    %527 = vector.broadcast %524 : vector<1x1xf32> to vector<16x64xf32>
    %528 = arith.mulf %527, %523 : vector<16x64xf32>
    %529 = arith.select %526, %523, %528 : vector<16x64xi1>, vector<16x64xf32>
    %c0_91 = arith.constant 0 : index
    %c384 = arith.constant 384 : index
    %530 = vector.load %arg4[%c0_91, %c384] : memref<64x408xf32, #tpu.memory_space<vmem>>, vector<64x16xf32>
    %cst_92 = arith.constant dense<0.000000e+00> : vector<16x16xf32>
    %531 = tpu.matmul %529, %530, %cst_92 {dimension_numbers = #tpu.dot_dimension_numbers<[1], [0], [0], [1], [0, 0, 1, 1], [], []>} : vector<16x64xf32>, vector<64x16xf32>, vector<16x16xf32> -> vector<16x16xf32>
    %c0_93 = arith.constant 0 : index
    %c1152 = arith.constant 1152 : index
    %532 = vector.load %arg5[%c0_93, %c1152] : memref<1x1243xf32, #tpu.memory_space<vmem>>, vector<1x16xf32>
    %533 = vector.broadcast %532 : vector<1x16xf32> to vector<16x16xf32>
    %534 = arith.addf %531, %533 : vector<16x16xf32>
    %535 = vector.extract_strided_slice %534 {offsets = [0, 0], sizes = [16, 8], strides = [1, 1]} : vector<16x16xf32> to vector<16x8xf32>
    %536 = vector.extract_strided_slice %534 {offsets = [0, 8], sizes = [16, 8], strides = [1, 1]} : vector<16x16xf32> to vector<16x8xf32>
    %c0_94 = arith.constant 0 : index
    %c0_95 = arith.constant 0 : index
    %537 = vector.load %arg1[%c0_94, %c0_95] : memref<16x8xf32, #tpu.memory_space<vmem>>, vector<16x8xf32>
    %cst_96 = arith.constant 5.000000e-01 : f32
    %538 = vector.broadcast %cst_96 : f32 to vector<16x8xf32>
    %539 = arith.mulf %538, %536 : vector<16x8xf32>
    %540 = math.exp %539 : vector<16x8xf32>
    %541 = arith.mulf %537, %540 : vector<16x8xf32>
    %542 = arith.addf %535, %541 : vector<16x8xf32>
    %c0_97 = arith.constant 0 : index
    %c192_98 = arith.constant 192 : index
    %543 = vector.load %arg2[%c0_97, %c192_98] : memref<8x256xf32, #tpu.memory_space<vmem>>, vector<8x64xf32>
    %cst_99 = arith.constant dense<0.000000e+00> : vector<16x64xf32>
    %544 = tpu.matmul %542, %543, %cst_99 {dimension_numbers = #tpu.dot_dimension_numbers<[1], [0], [0], [1], [0, 0, 1, 1], [], []>} : vector<16x8xf32>, vector<8x64xf32>, vector<16x64xf32> -> vector<16x64xf32>
    %c0_100 = arith.constant 0 : index
    %c1168 = arith.constant 1168 : index
    %545 = vector.load %arg5[%c0_100, %c1168] : memref<1x1243xf32, #tpu.memory_space<vmem>>, vector<1x64xf32>
    %546 = vector.broadcast %545 : vector<1x64xf32> to vector<16x64xf32>
    %547 = arith.addf %544, %546 : vector<16x64xf32>
    %c0_101 = arith.constant 0 : index
    %c1242 = arith.constant 1242 : index
    %548 = vector.load %arg5[%c0_101, %c1242] : memref<1x1243xf32, #tpu.memory_space<vmem>>, vector<1x1xf32>
    %cst_102 = arith.constant 0.000000e+00 : f32
    %549 = vector.broadcast %cst_102 : f32 to vector<16x64xf32>
    %550 = arith.cmpf oge, %547, %549 : vector<16x64xf32>
    %551 = vector.broadcast %548 : vector<1x1xf32> to vector<16x64xf32>
    %552 = arith.mulf %551, %547 : vector<16x64xf32>
    %553 = arith.select %550, %547, %552 : vector<16x64xi1>, vector<16x64xf32>
    %c0_103 = arith.constant 0 : index
    %c400 = arith.constant 400 : index
    %554 = vector.load %arg4[%c0_103, %c400] : memref<64x408xf32, #tpu.memory_space<vmem>>, vector<64x8xf32>
    %cst_104 = arith.constant dense<0.000000e+00> : vector<16x8xf32>
    %555 = tpu.matmul %553, %554, %cst_104 {dimension_numbers = #tpu.dot_dimension_numbers<[1], [0], [0], [1], [0, 0, 1, 1], [], []>} : vector<16x64xf32>, vector<64x8xf32>, vector<16x8xf32> -> vector<16x8xf32>
    %c0_105 = arith.constant 0 : index
    %c1232 = arith.constant 1232 : index
    %556 = vector.load %arg5[%c0_105, %c1232] : memref<1x1243xf32, #tpu.memory_space<vmem>>, vector<1x8xf32>
    %557 = vector.broadcast %556 : vector<1x8xf32> to vector<16x8xf32>
    %558 = arith.addf %555, %557 : vector<16x8xf32>
    %559 = tpu.concatenate %534, %558 in 1 : vector<16x16xf32>, vector<16x8xf32> -> vector<16x24xf32>
    %c0_106 = arith.constant 0 : index
    %c0_107 = arith.constant 0 : index
    %560 = vector.load %arg6[%c0_106, %c0_107] : memref<16x24xf32, #tpu.memory_space<vmem>>, vector<16x24xf32>
    tpu.vector_store %arg6[%c0_106, %c0_107], %559 {strides = array<i32>} : memref<16x24xf32, #tpu.memory_space<vmem>>, vector<16x24xf32>,
    return
  }
}

</mosaic_0001>

<llo_original>
// kernel: vae_forward_pallas.1
$region0: #{vae_forward_pallas.1}
  #allocation0 [shape = 'u32[]', space=smem, size = 0x4, offset = 0x4, fixed_abs, tag = 'smem constant byte address 0x4 - core index']
  #allocation1 [shape = 'u32[72,128]{1,0:T(1,128)}', space=vmem, size = 0x9000, scoped, tag = 'internal scratch']
  %s0 = inlined_call_operand.vmem [shape: f32[16,4], index: 0, kind: input, shape index: {}]
  %s1 = inlined_call_operand.vmem [shape: f32[16,8], index: 1, kind: input, shape index: {}]
  %s2 = inlined_call_operand.vmem [shape: f32[8,256], index: 2, kind: input, shape index: {}]
  %s3 = inlined_call_operand.vmem [shape: f32[128,576], index: 3, kind: input, shape index: {}]
  %s4 = inlined_call_operand.vmem [shape: f32[64,408], index: 4, kind: input, shape index: {}]
  %s5 = inlined_call_operand.vmem [shape: f32[1,1243], index: 5, kind: input, shape index: {}]
  %s6 = inlined_call_operand.vmem [shape: f32[16,24], index: 6, kind: output, shape index: {}]
  %s7 = sld [smem:[#allocation0]]
  $region34: #{vae_forward_pallas.1} parent=0
    _
  %s9 = ssub.s32 1, %s7
  %s10 = scalar_select 0, %s9, %s7
  // Predicated region
  $region2: #{vae_forward_pallas.1} parent=0 // pred_check
    _
  $region3: #{vae_forward_pallas.1} parent=0 // pred_check_branch
    %12 = sbr.rel (0) target = $region5
  $region4: #{vae_forward_pallas.1} parent=0 // pred_region
    _
  $region5: #{vae_forward_pallas.1} parent=0 // pred_fallthru
    _
  // Predicated region
  $region6: #{vae_forward_pallas.1} parent=0 // pred_check
    _
  $region7: #{vae_forward_pallas.1} parent=0 // pred_check_branch
    %14 = sbr.rel (0) target = $region9
  $region8: #{vae_forward_pallas.1} parent=0 // pred_region
    _
  $region9: #{vae_forward_pallas.1} parent=0 // pred_fallthru
    _
  // Predicated region
  $region10: #{vae_forward_pallas.1} parent=0 // pred_check
    _
  $region11: #{vae_forward_pallas.1} parent=0 // pred_check_branch
    %16 = sbr.rel (0) target = $region13
  $region12: #{vae_forward_pallas.1} parent=0 // pred_region
    _
  $region13: #{vae_forward_pallas.1} parent=0 // pred_fallthru
    _
  // Predicated region
  $region14: #{vae_forward_pallas.1} parent=0 // pred_check
    _
  $region15: #{vae_forward_pallas.1} parent=0 // pred_check_branch
    %18 = sbr.rel (0) target = $region17
  $region16: #{vae_forward_pallas.1} parent=0 // pred_region
    _
  $region17: #{vae_forward_pallas.1} parent=0 // pred_fallthru
    _
  // Predicated region
  $region18: #{vae_forward_pallas.1} parent=0 // pred_check
    _
  $region19: #{vae_forward_pallas.1} parent=0 // pred_check_branch
    %20 = sbr.rel (0) target = $region21
  $region20: #{vae_forward_pallas.1} parent=0 // pred_region
    _
  $region21: #{vae_forward_pallas.1} parent=0 // pred_fallthru
    _
  // Predicated region
  $region22: #{vae_forward_pallas.1} parent=0 // pred_check
    _
  $region23: #{vae_forward_pallas.1} parent=0 // pred_check_branch
    %22 = sbr.rel (0) target = $region25
  $region24: #{vae_forward_pallas.1} parent=0 // pred_region
    _
  $region25: #{vae_forward_pallas.1} parent=0 // pred_fallthru
    _
  %v23 = vld [vmem:[%s0] sm:$0xff]
  %v24 = vld [vmem:[%s0 + $0x8] sm:$0xff]
  %v25 = vld [vmem:[%s2] sm:$0xf]
  %v26 = vld [vmem:[%s2 + $0x8] sm:$0xf]
  %v27 = vld [vmem:[%s5 + $0x4] sm:$0x3]
  %v29 = vperm.slane %v27, 0
  %v30 = vperm.slane %v27, 1
  %31 = vrot.lane.b32.xlu0 %v29, 64
  %v32 = vpop.permute.xlu0 %31
  %33 = vrot.lane.b32.xlu0 %v30, 64
  %v34 = vpop.permute.xlu0 %33
  %vm35 = vcmask 523264
  %v36 = vsel %vm35, %v32, %v34
  %vm39 = vcmask 31744
  %v41 = vsel %vm39, %v23, 0
  %v44 = vsel %vm39, %v24, 0
  %vm46 = vcmask 1043456
  %v48 = vsel %vm46, %v25, 0
  %v51 = vsel %vm46, %v26, 0
  %53 = vmatpush.msra.mxu0 0.0
  %54 = vmatpush.msra.mxu0 0.0
  %55 = vmatpush.msra.mxu0 0.0
  %56 = vmatpush.msra.mxu0 0.0
  %57 = vmatpush.msra.mxu0 0.0
  %58 = vmatpush.msra.mxu0 0.0
  %59 = vmatpush.msra.mxu0 0.0
  %60 = vmatpush.msra.mxu0 0.0
  %61 = vmatpush.msra.mxu0 0.0
  %62 = vmatpush.msra.mxu0 0.0
  %63 = vmatpush.msra.mxu0 0.0
  %64 = vmatpush.msra.mxu0 0.0
  %65 = vmatpush.msra.mxu0 0.0
  %66 = vmatpush.msra.mxu0 0.0
  %67 = vmatpush.msra.mxu0 0.0
  %68 = vmatpush.msra.mxu0 %v48
  %69 = vmatmul.f32.gmra.mxu0 %v41
  %v70 = vpop.f32.mrf.mxu0
  %v71 = vadd.f32 %v36, %v70
  %72 = vmatmul.f32.gmra.mxu0 %v44
  %v73 = vpop.f32.mrf.mxu0
  %v74 = vadd.f32 %v36, %v73
  %75 = vdwg.mxu0
  %76 = vmatpush.msra.mxu0 0.0
  %77 = vmatpush.msra.mxu0 0.0
  %78 = vmatpush.msra.mxu0 0.0
  %79 = vmatpush.msra.mxu0 0.0
  %80 = vmatpush.msra.mxu0 0.0
  %81 = vmatpush.msra.mxu0 0.0
  %82 = vmatpush.msra.mxu0 0.0
  %83 = vmatpush.msra.mxu0 0.0
  %84 = vmatpush.msra.mxu0 0.0
  %85 = vmatpush.msra.mxu0 0.0
  %86 = vmatpush.msra.mxu0 0.0
  %87 = vmatpush.msra.mxu0 0.0
  %88 = vmatpush.msra.mxu0 0.0
  %89 = vmatpush.msra.mxu0 0.0
  %90 = vmatpush.msra.mxu0 0.0
  %91 = vmatpush.msra.mxu0 %v51
  %92 = vmatmul.f32.gmra.mxu0 %v41
  %v93 = vpop.f32.mrf.mxu0
  %v94 = vadd.f32 %v34, %v93
  %95 = vmatmul.f32.gmra.mxu0 %v44
  %v96 = vpop.f32.mrf.mxu0
  %v97 = vadd.f32 %v34, %v96
  %98 = vdwg.mxu0
  %v99 = vld [vmem:[%s3] sm:$0xff]
  %v100 = vld [vmem:[%s3 + $0x8] sm:$0xff]
  %v101 = vld [vmem:[%s3 + $0x10] sm:$0xff]
  %v102 = vld [vmem:[%s3 + $0x18] sm:$0xff]
  %v103 = vld [vmem:[%s3 + $0x20] sm:$0xff]
  %v104 = vld [vmem:[%s3 + $0x28] sm:$0xff]
  %v105 = vld [vmem:[%s3 + $0x30] sm:$0xff]
  %v106 = vld [vmem:[%s3 + $0x38] sm:$0xff]
  %v107 = vld [vmem:[%s3 + $0x40] sm:$0xff]
  %v108 = vld [vmem:[%s3 + $0x48] sm:$0xff]
  %v109 = vld [vmem:[%s3 + $0x50] sm:$0xff]
  %v110 = vld [vmem:[%s3 + $0x58] sm:$0xff]
  %v111 = vld [vmem:[%s3 + $0x60] sm:$0xff]
  %v112 = vld [vmem:[%s3 + $0x68] sm:$0xff]
  %v113 = vld [vmem:[%s3 + $0x70] sm:$0xff]
  %v114 = vld [vmem:[%s3 + $0x78] sm:$0xff]
  %v115 = vld [vmem:[%s3 + $0x80] sm:$0xff]
  %v116 = vld [vmem:[%s3 + $0x88] sm:$0xff]
  %v117 = vld [vmem:[%s3 + $0x90] sm:$0xff]
  %v118 = vld [vmem:[%s3 + $0x98] sm:$0xff]
  %v119 = vld [vmem:[%s3 + $0xa0] sm:$0xff]
  %v120 = vld [vmem:[%s3 + $0xa8] sm:$0xff]
  %v121 = vld [vmem:[%s3 + $0xb0] sm:$0xff]
  %v122 = vld [vmem:[%s3 + $0xb8] sm:$0xff]
  %v123 = vld [vmem:[%s3 + $0xc0] sm:$0xff]
  %v124 = vld [vmem:[%s3 + $0xc8] sm:$0xff]
  %v125 = vld [vmem:[%s3 + $0xd0] sm:$0xff]
  %v126 = vld [vmem:[%s3 + $0xd8] sm:$0xff]
  %v127 = vld [vmem:[%s3 + $0xe0] sm:$0xff]
  %v128 = vld [vmem:[%s3 + $0xe8] sm:$0xff]
  %v129 = vld [vmem:[%s3 + $0xf0] sm:$0xff]
  %v130 = vld [vmem:[%s3 + $0xf8] sm:$0xff]
  %v131 = vld [vmem:[%s3 + $0x100] sm:$0xff]
  %v132 = vld [vmem:[%s3 + $0x108] sm:$0xff]
  %v133 = vld [vmem:[%s3 + $0x110] sm:$0xff]
  %v134 = vld [vmem:[%s3 + $0x118] sm:$0xff]
  %v135 = vld [vmem:[%s3 + $0x120] sm:$0xff]
  %v136 = vld [vmem:[%s3 + $0x128] sm:$0xff]
  %v137 = vld [vmem:[%s3 + $0x130] sm:$0xff]
  %v138 = vld [vmem:[%s3 + $0x138] sm:$0xff]
  %v139 = vld [vmem:[%s3 + $0x140] sm:$0xff]
  %v140 = vld [vmem:[%s3 + $0x148] sm:$0xff]
  %v141 = vld [vmem:[%s3 + $0x150] sm:$0xff]
  %v142 = vld [vmem:[%s3 + $0x158] sm:$0xff]
  %v143 = vld [vmem:[%s3 + $0x160] sm:$0xff]
  %v144 = vld [vmem:[%s3 + $0x168] sm:$0xff]
  %v145 = vld [vmem:[%s3 + $0x170] sm:$0xff]
  %v146 = vld [vmem:[%s3 + $0x178] sm:$0xff]
  %v147 = vld [vmem:[%s3 + $0x180] sm:$0xff]
  %v148 = vld [vmem:[%s3 + $0x188] sm:$0xff]
  %v149 = vld [vmem:[%s3 + $0x190] sm:$0xff]
  %v150 = vld [vmem:[%s3 + $0x198] sm:$0xff]
  %v151 = vld [vmem:[%s3 + $0x1a0] sm:$0xff]
  %v152 = vld [vmem:[%s3 + $0x1a8] sm:$0xff]
  %v153 = vld [vmem:[%s3 + $0x1b0] sm:$0xff]
  %v154 = vld [vmem:[%s3 + $0x1b8] sm:$0xff]
  %v155 = vld [vmem:[%s3 + $0x1c0] sm:$0xff]
  %v156 = vld [vmem:[%s3 + $0x1c8] sm:$0xff]
  %v157 = vld [vmem:[%s3 + $0x1d0] sm:$0xff]
  %v158 = vld [vmem:[%s3 + $0x1d8] sm:$0xff]
  %v159 = vld [vmem:[%s3 + $0x1e0] sm:$0xff]
  %v160 = vld [vmem:[%s3 + $0x1e8] sm:$0xff]
  %v161 = vld [vmem:[%s3 + $0x1f0] sm:$0xff]
  %v162 = vld [vmem:[%s3 + $0x1f8] sm:$0xff]
  %v163 = vld [vmem:[%s3 + $0x200] sm:$0xff]
  %v164 = vld [vmem:[%s3 + $0x208] sm:$0xff]
  %v165 = vld [vmem:[%s3 + $0x210] sm:$0xff]
  %v166 = vld [vmem:[%s3 + $0x218] sm:$0xff]
  %v167 = vld [vmem:[%s3 + $0x220] sm:$0xff]
  %v168 = vld [vmem:[%s3 + $0x228] sm:$0xff]
  %v169 = vld [vmem:[%s3 + $0x230] sm:$0xff]
  %v170 = vld [vmem:[%s3 + $0x238] sm:$0xff]
  %v171 = vld [vmem:[%s3 + $0x240] sm:$0xff]
  %v172 = vld [vmem:[%s3 + $0x248] sm:$0xff]
  %v173 = vld [vmem:[%s3 + $0x250] sm:$0xff]
  %v174 = vld [vmem:[%s3 + $0x258] sm:$0xff]
  %v175 = vld [vmem:[%s3 + $0x260] sm:$0xff]
  %v176 = vld [vmem:[%s3 + $0x268] sm:$0xff]
  %v177 = vld [vmem:[%s3 + $0x270] sm:$0xff]
  %v178 = vld [vmem:[%s3 + $0x278] sm:$0xff]
  %v179 = vld [vmem:[%s5] sm:$0x1f]
  %v181 = vperm.slane %v179, 0
  %v182 = vperm.slane %v179, 1
  %v183 = vperm.slane %v179, 2
  %v184 = vperm.slane %v179, 3
  %v185 = vperm.slane %v179, 4
  %v191 = vadd.f32 %v181, 0.0
  %v192 = vadd.f32 %v182, 0.0
  %v193 = vadd.f32 %v71, %v191
  %v194 = vxor.u32 %v193, 2147483648
  %v195 = vmul.f32 %v194, 1.442695
  %v196 = vpow.pop %v195
  %v197 = vadd.f32 %v196, 1.0
  %v198 = vrcp.pop %v197
  %v199 = vmul.f32 %v197, %v198
  %v200 = vsub.f32 1.0, %v199
  %v201 = vmul.f32 %v198, %v200
  %v202 = vadd.f32 %v198, %v201
  %vm203 = vweird.f32 %v197
  %vm204 = vweird.f32 %v198
  %vm205 = vmor %vm203, %vm204
  %v206 = vsel %vm205, %v198, %v202
  %v207 = vand.u32 2147483647, %v197
  %vm208 = vcmp.eq.f32.partialorder %v207, 8.507059e+37
  %v209 = vand.u32 %v197, 2147483648
  %v210 = vor.u32 1.1754944e-38, %v209
  %v211 = vsel %vm208, %v210, %v206
  %v212 = vmul.f32 1.0, %v211
  %v213 = vmul.f32 %v212, %v192
  %v214 = vadd.f32 %v94, %v213
  %v215 = vtanh.pop %v214
  %v216 = vsub.f32 1.0, %v212
  %218 = vrot.lane.b32.xlu0 %v215, 64
  %v219 = vpop.permute.xlu0 %218
  %v221 = vmul.f32 %v216, %v219
  %v222 = vmul.f32 %v212, 0.0
  %v223 = vadd.f32 %v221, %v222
  %225 = vrot.lane.b32.xlu0 %v223, 64
  %v226 = vpop.permute.xlu0 %225
  %v228 = vsel %vm35, %v226, 0.0
  %229 = vmatpush.msra.mxu0 %v174
  %230 = vmatpush.msra.mxu0 %v169
  %231 = vmatpush.msra.mxu0 %v164
  %232 = vmatpush.msra.mxu0 %v159
  %233 = vmatpush.msra.mxu0 %v154
  %234 = vmatpush.msra.mxu0 %v149
  %235 = vmatpush.msra.mxu0 %v144
  %236 = vmatpush.msra.mxu0 %v139
  %237 = vmatpush.msra.mxu0 %v134
  %238 = vmatpush.msra.mxu0 %v129
  %239 = vmatpush.msra.mxu0 %v124
  %240 = vmatpush.msra.mxu0 %v119
  %241 = vmatpush.msra.mxu0 %v114
  %242 = vmatpush.msra.mxu0 %v109
  %243 = vmatpush.msra.mxu0 %v104
  %244 = vmatpush.msra.mxu0 %v99
  %245 = vmatmul.f32.gmra.mxu0 %v228
  %v246 = vpop.f32.mrf.mxu0
  %v247 = vadd.f32 %v181, %v246
  %248 = vdwg.mxu0
  %249 = vmatpush.msra.mxu0 %v175
  %250 = vmatpush.msra.mxu0 %v170
  %251 = vmatpush.msra.mxu0 %v165
  %252 = vmatpush.msra.mxu0 %v160
  %253 = vmatpush.msra.mxu0 %v155
  %254 = vmatpush.msra.mxu0 %v150
  %255 = vmatpush.msra.mxu0 %v145
  %256 = vmatpush.msra.mxu0 %v140
  %257 = vmatpush.msra.mxu0 %v135
  %258 = vmatpush.msra.mxu0 %v130
  %259 = vmatpush.msra.mxu0 %v125
  %260 = vmatpush.msra.mxu0 %v120
  %261 = vmatpush.msra.mxu0 %v115
  %262 = vmatpush.msra.mxu0 %v110
  %263 = vmatpush.msra.mxu0 %v105
  %264 = vmatpush.msra.mxu0 %v100
  %265 = vmatmul.f32.gmra.mxu0 %v228
  %v266 = vpop.f32.mrf.mxu0
  %v267 = vadd.f32 %v182, %v266
  %268 = vdwg.mxu0
  %269 = vmatpush.msra.mxu0 %v176
  %270 = vmatpush.msra.mxu0 %v171
  %271 = vmatpush.msra.mxu0 %v166
  %272 = vmatpush.msra.mxu0 %v161
  %273 = vmatpush.msra.mxu0 %v156
  %274 = vmatpush.msra.mxu0 %v151
  %275 = vmatpush.msra.mxu0 %v146
  %276 = vmatpush.msra.mxu0 %v141
  %277 = vmatpush.msra.mxu0 %v136
  %278 = vmatpush.msra.mxu0 %v131
  %279 = vmatpush.msra.mxu0 %v126
  %280 = vmatpush.msra.mxu0 %v121
  %281 = vmatpush.msra.mxu0 %v116
  %282 = vmatpush.msra.mxu0 %v111
  %283 = vmatpush.msra.mxu0 %v106
  %284 = vmatpush.msra.mxu0 %v101
  %285 = vmatmul.f32.gmra.mxu0 %v228
  %v286 = vpop.f32.mrf.mxu0
  %v287 = vadd.f32 %v183, %v286
  %288 = vdwg.mxu0
  %289 = vmatpush.msra.mxu0 %v177
  %290 = vmatpush.msra.mxu0 %v172
  %291 = vmatpush.msra.mxu0 %v167
  %292 = vmatpush.msra.mxu0 %v162
  %293 = vmatpush.msra.mxu0 %v157
  %294 = vmatpush.msra.mxu0 %v152
  %295 = vmatpush.msra.mxu0 %v147
  %296 = vmatpush.msra.mxu0 %v142
  %297 = vmatpush.msra.mxu0 %v137
  %298 = vmatpush.msra.mxu0 %v132
  %299 = vmatpush.msra.mxu0 %v127
  %300 = vmatpush.msra.mxu0 %v122
  %301 = vmatpush.msra.mxu0 %v117
  %302 = vmatpush.msra.mxu0 %v112
  %303 = vmatpush.msra.mxu0 %v107
  %304 = vmatpush.msra.mxu0 %v102
  %305 = vmatmul.f32.gmra.mxu0 %v228
  %v306 = vpop.f32.mrf.mxu0
  %v307 = vadd.f32 %v184, %v306
  %308 = vdwg.mxu0
  %309 = vmatpush.msra.mxu0 %v178
  %310 = vmatpush.msra.mxu0 %v173
  %311 = vmatpush.msra.mxu0 %v168
  %312 = vmatpush.msra.mxu0 %v163
  %313 = vmatpush.msra.mxu0 %v158
  %314 = vmatpush.msra.mxu0 %v153
  %315 = vmatpush.msra.mxu0 %v148
  %316 = vmatpush.msra.mxu0 %v143
  %317 = vmatpush.msra.mxu0 %v138
  %318 = vmatpush.msra.mxu0 %v133
  %319 = vmatpush.msra.mxu0 %v128
  %320 = vmatpush.msra.mxu0 %v123
  %321 = vmatpush.msra.mxu0 %v118
  %322 = vmatpush.msra.mxu0 %v113
  %323 = vmatpush.msra.mxu0 %v108
  %324 = vmatpush.msra.mxu0 %v103
  %325 = vmatmul.f32.gmra.mxu0 %v228
  %v326 = vpop.f32.mrf.mxu0
  %v327 = vadd.f32 %v185, %v326
  %328 = vdwg.mxu0
  %v330 = vrot.slane %v247, 6
  %v332 = vadd.f32 %v71, %v330
  %v333 = vxor.u32 %v332, 2147483648
  %v334 = vmul.f32 %v333, 1.442695
  %v335 = vpow.pop %v334
  %v336 = vadd.f32 %v335, 1.0
  %v337 = vrcp.pop %v336
  %v338 = vmul.f32 %v336, %v337
  %v339 = vsub.f32 1.0, %v338
  %v340 = vmul.f32 %v337, %v339
  %v341 = vadd.f32 %v337, %v340
  %vm342 = vweird.f32 %v336
  %vm343 = vweird.f32 %v337
  %vm344 = vmor %vm342, %vm343
  %v345 = vsel %vm344, %v337, %v341
  %v346 = vand.u32 2147483647, %v336
  %vm347 = vcmp.eq.f32.partialorder %v346, 8.507059e+37
  %v348 = vand.u32 %v336, 2147483648
  %v349 = vor.u32 1.1754944e-38, %v348
  %v350 = vsel %vm347, %v349, %v345
  %v351 = vmul.f32 1.0, %v350
  %v353 = vrot.slane %v267, 6
  %v355 = vmul.f32 %v351, %v353
  %v356 = vadd.f32 %v94, %v355
  %v357 = vtanh.pop %v356
  %v358 = vsub.f32 1.0, %v351
  %360 = vrot.lane.b32.xlu0 %v357, 64
  %v361 = vpop.permute.xlu0 %360
  %v363 = vmul.f32 %v358, %v361
  %v364 = vrot.slane %v223, 6
  %v366 = vmul.f32 %v351, %v364
  %v367 = vadd.f32 %v363, %v366
  %369 = vrot.lane.b32.xlu0 %v307, 64
  %v370 = vpop.permute.xlu0 %369
  %v372 = vadd.f32 %v267, %v370
  %v373 = vadd.f32 %v287, %v370
  %v374 = vxor.u32 %v372, 2147483648
  %v375 = vxor.u32 %v373, 2147483648
  %v376 = vmul.f32 %v374, 1.442695
  %v377 = vpow.pop %v376
  %v378 = vmul.f32 %v375, 1.442695
  %v379 = vpow.pop %v378
  %v380 = vadd.f32 %v377, 1.0
  %v381 = vadd.f32 %v379, 1.0
  %v382 = vrcp.pop %v380
  %v383 = vmul.f32 %v380, %v382
  %v384 = vsub.f32 1.0, %v383
  %v385 = vmul.f32 %v382, %v384
  %v386 = vadd.f32 %v382, %v385
  %vm387 = vweird.f32 %v380
  %vm388 = vweird.f32 %v382
  %vm389 = vmor %vm387, %vm388
  %v390 = vsel %vm389, %v382, %v386
  %v391 = vand.u32 2147483647, %v380
  %vm392 = vcmp.eq.f32.partialorder %v391, 8.507059e+37
  %v393 = vand.u32 %v380, 2147483648
  %v394 = vor.u32 1.1754944e-38, %v393
  %v395 = vsel %vm392, %v394, %v390
  %v396 = vmul.f32 1.0, %v395
  %v397 = vrcp.pop %v381
  %v398 = vmul.f32 %v381, %v397
  %v399 = vsub.f32 1.0, %v398
  %v400 = vmul.f32 %v397, %v399
  %v401 = vadd.f32 %v397, %v400
  %vm402 = vweird.f32 %v381
  %vm403 = vweird.f32 %v397
  %vm404 = vmor %vm402, %vm403
  %v405 = vsel %vm404, %v397, %v401
  %v406 = vand.u32 2147483647, %v381
  %vm407 = vcmp.eq.f32.partialorder %v406, 8.507059e+37
  %v408 = vand.u32 %v381, 2147483648
  %v409 = vor.u32 1.1754944e-38, %v408
  %v410 = vsel %vm407, %v409, %v405
  %v411 = vmul.f32 1.0, %v410
  %413 = vrot.lane.b32.xlu0 %v327, 64
  %v414 = vpop.permute.xlu0 %413
  %v416 = vmul.f32 %v396, %v414
  %v417 = vadd.f32 %v287, %v416
  %v418 = vtanh.pop %v417
  %v419 = vsub.f32 1.0, %v411
  %421 = vrot.lane.b32.xlu0 %v418, 64
  %v422 = vpop.permute.xlu0 %421
  %v424 = vmul.f32 %v419, %v422
  %v425 = vmul.f32 %v411, 0.0
  %v426 = vadd.f32 %v424, %v425
  %428 = vrot.lane.b32.xlu0 %v367, 64
  %v429 = vpop.permute.xlu0 %428
  %v432 = vrot.slane %v426, 6
  %433 = vrot.lane.b32.xlu0 %v432, 64
  %v434 = vpop.permute.xlu0 %433
  %v436 = vsel %vm35, %v429, %v434
  %v438 = vrot.slane %v436, 2
  %440 = vmatpush.msra.mxu0 %v174
  %441 = vmatpush.msra.mxu0 %v169
  %442 = vmatpush.msra.mxu0 %v164
  %443 = vmatpush.msra.mxu0 %v159
  %444 = vmatpush.msra.mxu0 %v154
  %445 = vmatpush.msra.mxu0 %v149
  %446 = vmatpush.msra.mxu0 %v144
  %447 = vmatpush.msra.mxu0 %v139
  %448 = vmatpush.msra.mxu0 %v134
  %449 = vmatpush.msra.mxu0 %v129
  %450 = vmatpush.msra.mxu0 %v124
  %451 = vmatpush.msra.mxu0 %v119
  %452 = vmatpush.msra.mxu0 %v114
  %453 = vmatpush.msra.mxu0 %v109
  %454 = vmatpush.msra.mxu0 %v104
  %455 = vmatpush.msra.mxu0 %v99
  %456 = vmatmul.f32.gmra.mxu0 %v438
  %v457 = vpop.f32.mrf.mxu0
  %v458 = vadd.f32 %v181, %v457
  %459 = vdwg.mxu0
  %460 = vmatpush.msra.mxu0 %v175
  %461 = vmatpush.msra.mxu0 %v170
  %462 = vmatpush.msra.mxu0 %v165
  %463 = vmatpush.msra.mxu0 %v160
  %464 = vmatpush.msra.mxu0 %v155
  %465 = vmatpush.msra.mxu0 %v150
  %466 = vmatpush.msra.mxu0 %v145
  %467 = vmatpush.msra.mxu0 %v140
  %468 = vmatpush.msra.mxu0 %v135
  %469 = vmatpush.msra.mxu0 %v130
  %470 = vmatpush.msra.mxu0 %v125
  %471 = vmatpush.msra.mxu0 %v120
  %472 = vmatpush.msra.mxu0 %v115
  %473 = vmatpush.msra.mxu0 %v110
  %474 = vmatpush.msra.mxu0 %v105
  %475 = vmatpush.msra.mxu0 %v100
  %476 = vmatmul.f32.gmra.mxu0 %v438
  %v477 = vpop.f32.mrf.mxu0
  %v478 = vadd.f32 %v182, %v477
  %479 = vdwg.mxu0
  %480 = vmatpush.msra.mxu0 %v176
  %481 = vmatpush.msra.mxu0 %v171
  %482 = vmatpush.msra.mxu0 %v166
  %483 = vmatpush.msra.mxu0 %v161
  %484 = vmatpush.msra.mxu0 %v156
  %485 = vmatpush.msra.mxu0 %v151
  %486 = vmatpush.msra.mxu0 %v146
  %487 = vmatpush.msra.mxu0 %v141
  %488 = vmatpush.msra.mxu0 %v136
  %489 = vmatpush.msra.mxu0 %v131
  %490 = vmatpush.msra.mxu0 %v126
  %491 = vmatpush.msra.mxu0 %v121
  %492 = vmatpush.msra.mxu0 %v116
  %493 = vmatpush.msra.mxu0 %v111
  %494 = vmatpush.msra.mxu0 %v106
  %495 = vmatpush.msra.mxu0 %v101
  %496 = vmatmul.f32.gmra.mxu0 %v438
  %v497 = vpop.f32.mrf.mxu0
  %v498 = vadd.f32 %v183, %v497
  %499 = vdwg.mxu0
  %500 = vmatpush.msra.mxu0 %v177
  %501 = vmatpush.msra.mxu0 %v172
  %502 = vmatpush.msra.mxu0 %v167
  %503 = vmatpush.msra.mxu0 %v162
  %504 = vmatpush.msra.mxu0 %v157
  %505 = vmatpush.msra.mxu0 %v152
  %506 = vmatpush.msra.mxu0 %v147
  %507 = vmatpush.msra.mxu0 %v142
  %508 = vmatpush.msra.mxu0 %v137
  %509 = vmatpush.msra.mxu0 %v132
  %510 = vmatpush.msra.mxu0 %v127
  %511 = vmatpush.msra.mxu0 %v122
  %512 = vmatpush.msra.mxu0 %v117
  %513 = vmatpush.msra.mxu0 %v112
  %514 = vmatpush.msra.mxu0 %v107
  %515 = vmatpush.msra.mxu0 %v102
  %516 = vmatmul.f32.gmra.mxu0 %v438
  %v517 = vpop.f32.mrf.mxu0
  %v518 = vadd.f32 %v184, %v517
  %519 = vdwg.mxu0
  %520 = vmatpush.msra.mxu0 %v178
  %521 = vmatpush.msra.mxu0 %v173
  %522 = vmatpush.msra.mxu0 %v168
  %523 = vmatpush.msra.mxu0 %v163
  %524 = vmatpush.msra.mxu0 %v158
  %525 = vmatpush.msra.mxu0 %v153
  %526 = vmatpush.msra.mxu0 %v148
  %527 = vmatpush.msra.mxu0 %v143
  %528 = vmatpush.msra.mxu0 %v138
  %529 = vmatpush.msra.mxu0 %v133
  %530 = vmatpush.msra.mxu0 %v128
  %531 = vmatpush.msra.mxu0 %v123
  %532 = vmatpush.msra.mxu0 %v118
  %533 = vmatpush.msra.mxu0 %v113
  %534 = vmatpush.msra.mxu0 %v108
  %535 = vmatpush.msra.mxu0 %v103
  %536 = vmatmul.f32.gmra.mxu0 %v438
  %v537 = vpop.f32.mrf.mxu0
  %v538 = vadd.f32 %v185, %v537
  %539 = vdwg.mxu0
  %v541 = vrot.slane %v458, 4
  %v543 = vadd.f32 %v71, %v541
  %v544 = vxor.u32 %v543, 2147483648
  %v545 = vmul.f32 %v544, 1.442695
  %v546 = vpow.pop %v545
  %v547 = vadd.f32 %v546, 1.0
  %v548 = vrcp.pop %v547
  %v549 = vmul.f32 %v547, %v548
  %v550 = vsub.f32 1.0, %v549
  %v551 = vmul.f32 %v548, %v550
  %v552 = vadd.f32 %v548, %v551
  %vm553 = vweird.f32 %v547
  %vm554 = vweird.f32 %v548
  %vm555 = vmor %vm553, %vm554
  %v556 = vsel %vm555, %v548, %v552
  %v557 = vand.u32 2147483647, %v547
  %vm558 = vcmp.eq.f32.partialorder %v557, 8.507059e+37
  %v559 = vand.u32 %v547, 2147483648
  %v560 = vor.u32 1.1754944e-38, %v559
  %v561 = vsel %vm558, %v560, %v556
  %v562 = vmul.f32 1.0, %v561
  %v564 = vrot.slane %v478, 4
  %v566 = vmul.f32 %v562, %v564
  %v567 = vadd.f32 %v94, %v566
  %v568 = vtanh.pop %v567
  %v569 = vsub.f32 1.0, %v562
  %571 = vrot.lane.b32.xlu0 %v568, 64
  %v572 = vpop.permute.xlu0 %571
  %v574 = vmul.f32 %v569, %v572
  %v575 = vrot.slane %v367, 6
  %v577 = vmul.f32 %v562, %v575
  %v578 = vadd.f32 %v574, %v577
  %580 = vrot.lane.b32.xlu0 %v518, 64
  %v581 = vpop.permute.xlu0 %580
  %v583 = vadd.f32 %v478, %v581
  %v584 = vadd.f32 %v498, %v581
  %v585 = vxor.u32 %v583, 2147483648
  %v586 = vxor.u32 %v584, 2147483648
  %v587 = vmul.f32 %v585, 1.442695
  %v588 = vpow.pop %v587
  %v589 = vmul.f32 %v586, 1.442695
  %v590 = vpow.pop %v589
  %v591 = vadd.f32 %v588, 1.0
  %v592 = vadd.f32 %v590, 1.0
  %v593 = vrcp.pop %v591
  %v594 = vmul.f32 %v591, %v593
  %v595 = vsub.f32 1.0, %v594
  %v596 = vmul.f32 %v593, %v595
  %v597 = vadd.f32 %v593, %v596
  %vm598 = vweird.f32 %v591
  %vm599 = vweird.f32 %v593
  %vm600 = vmor %vm598, %vm599
  %v601 = vsel %vm600, %v593, %v597
  %v602 = vand.u32 2147483647, %v591
  %vm603 = vcmp.eq.f32.partialorder %v602, 8.507059e+37
  %v604 = vand.u32 %v591, 2147483648
  %v605 = vor.u32 1.1754944e-38, %v604
  %v606 = vsel %vm603, %v605, %v601
  %v607 = vmul.f32 1.0, %v606
  %v608 = vrcp.pop %v592
  %v609 = vmul.f32 %v592, %v608
  %v610 = vsub.f32 1.0, %v609
  %v611 = vmul.f32 %v608, %v610
  %v612 = vadd.f32 %v608, %v611
  %vm613 = vweird.f32 %v592
  %vm614 = vweird.f32 %v608
  %vm615 = vmor %vm613, %vm614
  %v616 = vsel %vm615, %v608, %v612
  %v617 = vand.u32 2147483647, %v592
  %vm618 = vcmp.eq.f32.partialorder %v617, 8.507059e+37
  %v619 = vand.u32 %v592, 2147483648
  %v620 = vor.u32 1.1754944e-38, %v619
  %v621 = vsel %vm618, %v620, %v616
  %v622 = vmul.f32 1.0, %v621
  %624 = vrot.lane.b32.xlu0 %v538, 64
  %v625 = vpop.permute.xlu0 %624
  %v627 = vmul.f32 %v607, %v625
  %v628 = vadd.f32 %v498, %v627
  %v629 = vtanh.pop %v628
  %v630 = vsub.f32 1.0, %v622
  %632 = vrot.lane.b32.xlu0 %v629, 64
  %v633 = vpop.permute.xlu0 %632
  %v635 = vmul.f32 %v630, %v633
  %v636 = vmul.f32 %v622, %v426
  %v637 = vadd.f32 %v635, %v636
  %639 = vrot.lane.b32.xlu0 %v578, 64
  %v640 = vpop.permute.xlu0 %639
  %v643 = vrot.slane %v637, 4
  %644 = vrot.lane.b32.xlu0 %v643, 64
  %v645 = vpop.permute.xlu0 %644
  %v647 = vsel %vm35, %v640, %v645
  %v649 = vrot.slane %v647, 4
  %651 = vmatpush.msra.mxu0 %v174
  %652 = vmatpush.msra.mxu0 %v169
  %653 = vmatpush.msra.mxu0 %v164
  %654 = vmatpush.msra.mxu0 %v159
  %655 = vmatpush.msra.mxu0 %v154
  %656 = vmatpush.msra.mxu0 %v149
  %657 = vmatpush.msra.mxu0 %v144
  %658 = vmatpush.msra.mxu0 %v139
  %659 = vmatpush.msra.mxu0 %v134
  %660 = vmatpush.msra.mxu0 %v129
  %661 = vmatpush.msra.mxu0 %v124
  %662 = vmatpush.msra.mxu0 %v119
  %663 = vmatpush.msra.mxu0 %v114
  %664 = vmatpush.msra.mxu0 %v109
  %665 = vmatpush.msra.mxu0 %v104
  %666 = vmatpush.msra.mxu0 %v99
  %667 = vmatmul.f32.gmra.mxu0 %v649
  %v668 = vpop.f32.mrf.mxu0
  %v669 = vadd.f32 %v181, %v668
  %670 = vdwg.mxu0
  %671 = vmatpush.msra.mxu0 %v175
  %672 = vmatpush.msra.mxu0 %v170
  %673 = vmatpush.msra.mxu0 %v165
  %674 = vmatpush.msra.mxu0 %v160
  %675 = vmatpush.msra.mxu0 %v155
  %676 = vmatpush.msra.mxu0 %v150
  %677 = vmatpush.msra.mxu0 %v145
  %678 = vmatpush.msra.mxu0 %v140
  %679 = vmatpush.msra.mxu0 %v135
  %680 = vmatpush.msra.mxu0 %v130
  %681 = vmatpush.msra.mxu0 %v125
  %682 = vmatpush.msra.mxu0 %v120
  %683 = vmatpush.msra.mxu0 %v115
  %684 = vmatpush.msra.mxu0 %v110
  %685 = vmatpush.msra.mxu0 %v105
  %686 = vmatpush.msra.mxu0 %v100
  %687 = vmatmul.f32.gmra.mxu0 %v649
  %v688 = vpop.f32.mrf.mxu0
  %v689 = vadd.f32 %v182, %v688
  %690 = vdwg.mxu0
  %691 = vmatpush.msra.mxu0 %v176
  %692 = vmatpush.msra.mxu0 %v171
  %693 = vmatpush.msra.mxu0 %v166
  %694 = vmatpush.msra.mxu0 %v161
  %695 = vmatpush.msra.mxu0 %v156
  %696 = vmatpush.msra.mxu0 %v151
  %697 = vmatpush.msra.mxu0 %v146
  %698 = vmatpush.msra.mxu0 %v141
  %699 = vmatpush.msra.mxu0 %v136
  %700 = vmatpush.msra.mxu0 %v131
  %701 = vmatpush.msra.mxu0 %v126
  %702 = vmatpush.msra.mxu0 %v121
  %703 = vmatpush.msra.mxu0 %v116
  %704 = vmatpush.msra.mxu0 %v111
  %705 = vmatpush.msra.mxu0 %v106
  %706 = vmatpush.msra.mxu0 %v101
  %707 = vmatmul.f32.gmra.mxu0 %v649
  %v708 = vpop.f32.mrf.mxu0
  %v709 = vadd.f32 %v183, %v708
  %710 = vdwg.mxu0
  %711 = vmatpush.msra.mxu0 %v177
  %712 = vmatpush.msra.mxu0 %v172
  %713 = vmatpush.msra.mxu0 %v167
  %714 = vmatpush.msra.mxu0 %v162
  %715 = vmatpush.msra.mxu0 %v157
  %716 = vmatpush.msra.mxu0 %v152
  %717 = vmatpush.msra.mxu0 %v147
  %718 = vmatpush.msra.mxu0 %v142
  %719 = vmatpush.msra.mxu0 %v137
  %720 = vmatpush.msra.mxu0 %v132
  %721 = vmatpush.msra.mxu0 %v127
  %722 = vmatpush.msra.mxu0 %v122
  %723 = vmatpush.msra.mxu0 %v117
  %724 = vmatpush.msra.mxu0 %v112
  %725 = vmatpush.msra.mxu0 %v107
  %726 = vmatpush.msra.mxu0 %v102
  %727 = vmatmul.f32.gmra.mxu0 %v649
  %v728 = vpop.f32.mrf.mxu0
  %v729 = vadd.f32 %v184, %v728
  %730 = vdwg.mxu0
  %731 = vmatpush.msra.mxu0 %v178
  %732 = vmatpush.msra.mxu0 %v173
  %733 = vmatpush.msra.mxu0 %v168
  %734 = vmatpush.msra.mxu0 %v163
  %735 = vmatpush.msra.mxu0 %v158
  %736 = vmatpush.msra.mxu0 %v153
  %737 = vmatpush.msra.mxu0 %v148
  %738 = vmatpush.msra.mxu0 %v143
  %739 = vmatpush.msra.mxu0 %v138
  %740 = vmatpush.msra.mxu0 %v133
  %741 = vmatpush.msra.mxu0 %v128
  %742 = vmatpush.msra.mxu0 %v123
  %743 = vmatpush.msra.mxu0 %v118
  %744 = vmatpush.msra.mxu0 %v113
  %745 = vmatpush.msra.mxu0 %v108
  %746 = vmatpush.msra.mxu0 %v103
  %747 = vmatmul.f32.gmra.mxu0 %v649
  %v748 = vpop.f32.mrf.mxu0
  %v749 = vadd.f32 %v185, %v748
  %750 = vdwg.mxu0
  %v752 = vrot.slane %v669, 2
  %v754 = vadd.f32 %v71, %v752
  %v755 = vxor.u32 %v754, 2147483648
  %v756 = vmul.f32 %v755, 1.442695
  %v757 = vpow.pop %v756
  %v758 = vadd.f32 %v757, 1.0
  %v759 = vrcp.pop %v758
  %v760 = vmul.f32 %v758, %v759
  %v761 = vsub.f32 1.0, %v760
  %v762 = vmul.f32 %v759, %v761
  %v763 = vadd.f32 %v759, %v762
  %vm764 = vweird.f32 %v758
  %vm765 = vweird.f32 %v759
  %vm766 = vmor %vm764, %vm765
  %v767 = vsel %vm766, %v759, %v763
  %v768 = vand.u32 2147483647, %v758
  %vm769 = vcmp.eq.f32.partialorder %v768, 8.507059e+37
  %v770 = vand.u32 %v758, 2147483648
  %v771 = vor.u32 1.1754944e-38, %v770
  %v772 = vsel %vm769, %v771, %v767
  %v773 = vmul.f32 1.0, %v772
  %v775 = vrot.slane %v689, 2
  %v777 = vmul.f32 %v773, %v775
  %v778 = vadd.f32 %v94, %v777
  %v779 = vtanh.pop %v778
  %v780 = vsub.f32 1.0, %v773
  %782 = vrot.lane.b32.xlu0 %v779, 64
  %v783 = vpop.permute.xlu0 %782
  %v785 = vmul.f32 %v780, %v783
  %v786 = vrot.slane %v578, 6
  %v788 = vmul.f32 %v773, %v786
  %v789 = vadd.f32 %v785, %v788
  %791 = vrot.lane.b32.xlu0 %v729, 64
  %v792 = vpop.permute.xlu0 %791
  %v794 = vadd.f32 %v689, %v792
  %v795 = vadd.f32 %v709, %v792
  %v796 = vxor.u32 %v794, 2147483648
  %v797 = vxor.u32 %v795, 2147483648
  %v798 = vmul.f32 %v796, 1.442695
  %v799 = vpow.pop %v798
  %v800 = vmul.f32 %v797, 1.442695
  %v801 = vpow.pop %v800
  %v802 = vadd.f32 %v799, 1.0
  %v803 = vadd.f32 %v801, 1.0
  %v804 = vrcp.pop %v802
  %v805 = vmul.f32 %v802, %v804
  %v806 = vsub.f32 1.0, %v805
  %v807 = vmul.f32 %v804, %v806
  %v808 = vadd.f32 %v804, %v807
  %vm809 = vweird.f32 %v802
  %vm810 = vweird.f32 %v804
  %vm811 = vmor %vm809, %vm810
  %v812 = vsel %vm811, %v804, %v808
  %v813 = vand.u32 2147483647, %v802
  %vm814 = vcmp.eq.f32.partialorder %v813, 8.507059e+37
  %v815 = vand.u32 %v802, 2147483648
  %v816 = vor.u32 1.1754944e-38, %v815
  %v817 = vsel %vm814, %v816, %v812
  %v818 = vmul.f32 1.0, %v817
  %v819 = vrcp.pop %v803
  %v820 = vmul.f32 %v803, %v819
  %v821 = vsub.f32 1.0, %v820
  %v822 = vmul.f32 %v819, %v821
  %v823 = vadd.f32 %v819, %v822
  %vm824 = vweird.f32 %v803
  %vm825 = vweird.f32 %v819
  %vm826 = vmor %vm824, %vm825
  %v827 = vsel %vm826, %v819, %v823
  %v828 = vand.u32 2147483647, %v803
  %vm829 = vcmp.eq.f32.partialorder %v828, 8.507059e+37
  %v830 = vand.u32 %v803, 2147483648
  %v831 = vor.u32 1.1754944e-38, %v830
  %v832 = vsel %vm829, %v831, %v827
  %v833 = vmul.f32 1.0, %v832
  %835 = vrot.lane.b32.xlu0 %v749, 64
  %v836 = vpop.permute.xlu0 %835
  %v838 = vmul.f32 %v818, %v836
  %v839 = vadd.f32 %v709, %v838
  %v840 = vtanh.pop %v839
  %v841 = vsub.f32 1.0, %v833
  %843 = vrot.lane.b32.xlu0 %v840, 64
  %v844 = vpop.permute.xlu0 %843
  %v846 = vmul.f32 %v841, %v844
  %v847 = vmul.f32 %v833, %v637
  %v848 = vadd.f32 %v846, %v847
  %850 = vrot.lane.b32.xlu0 %v789, 64
  %v851 = vpop.permute.xlu0 %850
  %v854 = vrot.slane %v848, 2
  %855 = vrot.lane.b32.xlu0 %v854, 64
  %v856 = vpop.permute.xlu0 %855
  %v858 = vsel %vm35, %v851, %v856
  %v860 = vrot.slane %v858, 6
  %862 = vmatpush.msra.mxu0 %v174
  %863 = vmatpush.msra.mxu0 %v169
  %864 = vmatpush.msra.mxu0 %v164
  %865 = vmatpush.msra.mxu0 %v159
  %866 = vmatpush.msra.mxu0 %v154
  %867 = vmatpush.msra.mxu0 %v149
  %868 = vmatpush.msra.mxu0 %v144
  %869 = vmatpush.msra.mxu0 %v139
  %870 = vmatpush.msra.mxu0 %v134
  %871 = vmatpush.msra.mxu0 %v129
  %872 = vmatpush.msra.mxu0 %v124
  %873 = vmatpush.msra.mxu0 %v119
  %874 = vmatpush.msra.mxu0 %v114
  %875 = vmatpush.msra.mxu0 %v109
  %876 = vmatpush.msra.mxu0 %v104
  %877 = vmatpush.msra.mxu0 %v99
  %878 = vmatmul.f32.gmra.mxu0 %v860
  %v879 = vpop.f32.mrf.mxu0
  %v880 = vadd.f32 %v181, %v879
  %881 = vdwg.mxu0
  %882 = vmatpush.msra.mxu0 %v175
  %883 = vmatpush.msra.mxu0 %v170
  %884 = vmatpush.msra.mxu0 %v165
  %885 = vmatpush.msra.mxu0 %v160
  %886 = vmatpush.msra.mxu0 %v155
  %887 = vmatpush.msra.mxu0 %v150
  %888 = vmatpush.msra.mxu0 %v145
  %889 = vmatpush.msra.mxu0 %v140
  %890 = vmatpush.msra.mxu0 %v135
  %891 = vmatpush.msra.mxu0 %v130
  %892 = vmatpush.msra.mxu0 %v125
  %893 = vmatpush.msra.mxu0 %v120
  %894 = vmatpush.msra.mxu0 %v115
  %895 = vmatpush.msra.mxu0 %v110
  %896 = vmatpush.msra.mxu0 %v105
  %897 = vmatpush.msra.mxu0 %v100
  %898 = vmatmul.f32.gmra.mxu0 %v860
  %v899 = vpop.f32.mrf.mxu0
  %v900 = vadd.f32 %v182, %v899
  %901 = vdwg.mxu0
  %902 = vmatpush.msra.mxu0 %v176
  %903 = vmatpush.msra.mxu0 %v171
  %904 = vmatpush.msra.mxu0 %v166
  %905 = vmatpush.msra.mxu0 %v161
  %906 = vmatpush.msra.mxu0 %v156
  %907 = vmatpush.msra.mxu0 %v151
  %908 = vmatpush.msra.mxu0 %v146
  %909 = vmatpush.msra.mxu0 %v141
  %910 = vmatpush.msra.mxu0 %v136
  %911 = vmatpush.msra.mxu0 %v131
  %912 = vmatpush.msra.mxu0 %v126
  %913 = vmatpush.msra.mxu0 %v121
  %914 = vmatpush.msra.mxu0 %v116
  %915 = vmatpush.msra.mxu0 %v111
  %916 = vmatpush.msra.mxu0 %v106
  %917 = vmatpush.msra.mxu0 %v101
  %918 = vmatmul.f32.gmra.mxu0 %v860
  %v919 = vpop.f32.mrf.mxu0
  %v920 = vadd.f32 %v183, %v919
  %921 = vdwg.mxu0
  %922 = vmatpush.msra.mxu0 %v177
  %923 = vmatpush.msra.mxu0 %v172
  %924 = vmatpush.msra.mxu0 %v167
  %925 = vmatpush.msra.mxu0 %v162
  %926 = vmatpush.msra.mxu0 %v157
  %927 = vmatpush.msra.mxu0 %v152
  %928 = vmatpush.msra.mxu0 %v147
  %929 = vmatpush.msra.mxu0 %v142
  %930 = vmatpush.msra.mxu0 %v137
  %931 = vmatpush.msra.mxu0 %v132
  %932 = vmatpush.msra.mxu0 %v127
  %933 = vmatpush.msra.mxu0 %v122
  %934 = vmatpush.msra.mxu0 %v117
  %935 = vmatpush.msra.mxu0 %v112
  %936 = vmatpush.msra.mxu0 %v107
  %937 = vmatpush.msra.mxu0 %v102
  %938 = vmatmul.f32.gmra.mxu0 %v860
  %v939 = vpop.f32.mrf.mxu0
  %v940 = vadd.f32 %v184, %v939
  %941 = vdwg.mxu0
  %942 = vmatpush.msra.mxu0 %v178
  %943 = vmatpush.msra.mxu0 %v173
  %944 = vmatpush.msra.mxu0 %v168
  %945 = vmatpush.msra.mxu0 %v163
  %946 = vmatpush.msra.mxu0 %v158
  %947 = vmatpush.msra.mxu0 %v153
  %948 = vmatpush.msra.mxu0 %v148
  %949 = vmatpush.msra.mxu0 %v143
  %950 = vmatpush.msra.mxu0 %v138
  %951 = vmatpush.msra.mxu0 %v133
  %952 = vmatpush.msra.mxu0 %v128
  %953 = vmatpush.msra.mxu0 %v123
  %954 = vmatpush.msra.mxu0 %v118
  %955 = vmatpush.msra.mxu0 %v113
  %956 = vmatpush.msra.mxu0 %v108
  %957 = vmatpush.msra.mxu0 %v103
  %958 = vmatmul.f32.gmra.mxu0 %v860
  %v959 = vpop.f32.mrf.mxu0
  %v960 = vadd.f32 %v185, %v959
  %961 = vdwg.mxu0
  %v962 = vadd.f32 %v74, %v880
  %v963 = vxor.u32 %v962, 2147483648
  %v964 = vmul.f32 %v963, 1.442695
  %v965 = vpow.pop %v964
  %v966 = vadd.f32 %v965, 1.0
  %v967 = vrcp.pop %v966
  %v968 = vmul.f32 %v966, %v967
  %v969 = vsub.f32 1.0, %v968
  %v970 = vmul.f32 %v967, %v969
  %v971 = vadd.f32 %v967, %v970
  %vm972 = vweird.f32 %v966
  %vm973 = vweird.f32 %v967
  %vm974 = vmor %vm972, %vm973
  %v975 = vsel %vm974, %v967, %v971
  %v976 = vand.u32 2147483647, %v966
  %vm977 = vcmp.eq.f32.partialorder %v976, 8.507059e+37
  %v978 = vand.u32 %v966, 2147483648
  %v979 = vor.u32 1.1754944e-38, %v978
  %v980 = vsel %vm977, %v979, %v975
  %v981 = vmul.f32 1.0, %v980
  %v982 = vmul.f32 %v981, %v900
  %v983 = vadd.f32 %v97, %v982
  %v984 = vtanh.pop %v983
  %v985 = vsub.f32 1.0, %v981
  %987 = vrot.lane.b32.xlu0 %v984, 64
  %v988 = vpop.permute.xlu0 %987
  %v990 = vmul.f32 %v985, %v988
  %v991 = vrot.slane %v789, 6
  %v993 = vmul.f32 %v981, %v991
  %v994 = vadd.f32 %v990, %v993
  %996 = vrot.lane.b32.xlu0 %v940, 64
  %v997 = vpop.permute.xlu0 %996
  %v999 = vadd.f32 %v900, %v997
  %v1000 = vadd.f32 %v920, %v997
  %v1001 = vxor.u32 %v999, 2147483648
  %v1002 = vxor.u32 %v1000, 2147483648
  %v1003 = vmul.f32 %v1001, 1.442695
  %v1004 = vpow.pop %v1003
  %v1005 = vmul.f32 %v1002, 1.442695
  %v1006 = vpow.pop %v1005
  %v1007 = vadd.f32 %v1004, 1.0
  %v1008 = vadd.f32 %v1006, 1.0
  %v1009 = vrcp.pop %v1007
  %v1010 = vmul.f32 %v1007, %v1009
  %v1011 = vsub.f32 1.0, %v1010
  %v1012 = vmul.f32 %v1009, %v1011
  %v1013 = vadd.f32 %v1009, %v1012
  %vm1014 = vweird.f32 %v1007
  %vm1015 = vweird.f32 %v1009
  %vm1016 = vmor %vm1014, %vm1015
  %v1017 = vsel %vm1016, %v1009, %v1013
  %v1018 = vand.u32 2147483647, %v1007
  %vm1019 = vcmp.eq.f32.partialorder %v1018, 8.507059e+37
  %v1020 = vand.u32 %v1007, 2147483648
  %v1021 = vor.u32 1.1754944e-38, %v1020
  %v1022 = vsel %vm1019, %v1021, %v1017
  %v1023 = vmul.f32 1.0, %v1022
  %v1024 = vrcp.pop %v1008
  %v1025 = vmul.f32 %v1008, %v1024
  %v1026 = vsub.f32 1.0, %v1025
  %v1027 = vmul.f32 %v1024, %v1026
  %v1028 = vadd.f32 %v1024, %v1027
  %vm1029 = vweird.f32 %v1008
  %vm1030 = vweird.f32 %v1024
  %vm1031 = vmor %vm1029, %vm1030
  %v1032 = vsel %vm1031, %v1024, %v1028
  %v1033 = vand.u32 2147483647, %v1008
  %vm1034 = vcmp.eq.f32.partialorder %v1033, 8.507059e+37
  %v1035 = vand.u32 %v1008, 2147483648
  %v1036 = vor.u32 1.1754944e-38, %v1035
  %v1037 = vsel %vm1034, %v1036, %v1032
  %v1038 = vmul.f32 1.0, %v1037
  %1040 = vrot.lane.b32.xlu0 %v960, 64
  %v1041 = vpop.permute.xlu0 %1040
  %v1043 = vmul.f32 %v1023, %v1041
  %v1044 = vadd.f32 %v920, %v1043
  %v1045 = vtanh.pop %v1044
  %v1046 = vsub.f32 1.0, %v1038
  %1048 = vrot.lane.b32.xlu0 %v1045, 64
  %v1049 = vpop.permute.xlu0 %1048
  %v1051 = vmul.f32 %v1046, %v1049
  %v1052 = vmul.f32 %v1038, %v848
  %v1053 = vadd.f32 %v1051, %v1052
  %1055 = vrot.lane.b32.xlu0 %v994, 64
  %v1056 = vpop.permute.xlu0 %1055
  %1059 = vrot.lane.b32.xlu0 %v1053, 64
  %v1060 = vpop.permute.xlu0 %1059
  %v1062 = vsel %vm35, %v1056, %v1060
  %1063 = vmatpush.msra.mxu0 %v174
  %1064 = vmatpush.msra.mxu0 %v169
  %1065 = vmatpush.msra.mxu0 %v164
  %1066 = vmatpush.msra.mxu0 %v159
  %1067 = vmatpush.msra.mxu0 %v154
  %1068 = vmatpush.msra.mxu0 %v149
  %1069 = vmatpush.msra.mxu0 %v144
  %1070 = vmatpush.msra.mxu0 %v139
  %1071 = vmatpush.msra.mxu0 %v134
  %1072 = vmatpush.msra.mxu0 %v129
  %1073 = vmatpush.msra.mxu0 %v124
  %1074 = vmatpush.msra.mxu0 %v119
  %1075 = vmatpush.msra.mxu0 %v114
  %1076 = vmatpush.msra.mxu0 %v109
  %1077 = vmatpush.msra.mxu0 %v104
  %1078 = vmatpush.msra.mxu0 %v99
  %1079 = vmatmul.f32.gmra.mxu0 %v1062
  %v1080 = vpop.f32.mrf.mxu0
  %v1081 = vadd.f32 %v181, %v1080
  %1082 = vdwg.mxu0
  %1083 = vmatpush.msra.mxu0 %v175
  %1084 = vmatpush.msra.mxu0 %v170
  %1085 = vmatpush.msra.mxu0 %v165
  %1086 = vmatpush.msra.mxu0 %v160
  %1087 = vmatpush.msra.mxu0 %v155
  %1088 = vmatpush.msra.mxu0 %v150
  %1089 = vmatpush.msra.mxu0 %v145
  %1090 = vmatpush.msra.mxu0 %v140
  %1091 = vmatpush.msra.mxu0 %v135
  %1092 = vmatpush.msra.mxu0 %v130
  %1093 = vmatpush.msra.mxu0 %v125
  %1094 = vmatpush.msra.mxu0 %v120
  %1095 = vmatpush.msra.mxu0 %v115
  %1096 = vmatpush.msra.mxu0 %v110
  %1097 = vmatpush.msra.mxu0 %v105
  %1098 = vmatpush.msra.mxu0 %v100
  %1099 = vmatmul.f32.gmra.mxu0 %v1062
  %v1100 = vpop.f32.mrf.mxu0
  %v1101 = vadd.f32 %v182, %v1100
  %1102 = vdwg.mxu0
  %1103 = vmatpush.msra.mxu0 %v176
  %1104 = vmatpush.msra.mxu0 %v171
  %1105 = vmatpush.msra.mxu0 %v166
  %1106 = vmatpush.msra.mxu0 %v161
  %1107 = vmatpush.msra.mxu0 %v156
  %1108 = vmatpush.msra.mxu0 %v151
  %1109 = vmatpush.msra.mxu0 %v146
  %1110 = vmatpush.msra.mxu0 %v141
  %1111 = vmatpush.msra.mxu0 %v136
  %1112 = vmatpush.msra.mxu0 %v131
  %1113 = vmatpush.msra.mxu0 %v126
  %1114 = vmatpush.msra.mxu0 %v121
  %1115 = vmatpush.msra.mxu0 %v116
  %1116 = vmatpush.msra.mxu0 %v111
  %1117 = vmatpush.msra.mxu0 %v106
  %1118 = vmatpush.msra.mxu0 %v101
  %1119 = vmatmul.f32.gmra.mxu0 %v1062
  %v1120 = vpop.f32.mrf.mxu0
  %v1121 = vadd.f32 %v183, %v1120
  %1122 = vdwg.mxu0
  %1123 = vmatpush.msra.mxu0 %v177
  %1124 = vmatpush.msra.mxu0 %v172
  %1125 = vmatpush.msra.mxu0 %v167
  %1126 = vmatpush.msra.mxu0 %v162
  %1127 = vmatpush.msra.mxu0 %v157
  %1128 = vmatpush.msra.mxu0 %v152
  %1129 = vmatpush.msra.mxu0 %v147
  %1130 = vmatpush.msra.mxu0 %v142
  %1131 = vmatpush.msra.mxu0 %v137
  %1132 = vmatpush.msra.mxu0 %v132
  %1133 = vmatpush.msra.mxu0 %v127
  %1134 = vmatpush.msra.mxu0 %v122
  %1135 = vmatpush.msra.mxu0 %v117
  %1136 = vmatpush.msra.mxu0 %v112
  %1137 = vmatpush.msra.mxu0 %v107
  %1138 = vmatpush.msra.mxu0 %v102
  %1139 = vmatmul.f32.gmra.mxu0 %v1062
  %v1140 = vpop.f32.mrf.mxu0
  %v1141 = vadd.f32 %v184, %v1140
  %1142 = vdwg.mxu0
  %1143 = vmatpush.msra.mxu0 %v178
  %1144 = vmatpush.msra.mxu0 %v173
  %1145 = vmatpush.msra.mxu0 %v168
  %1146 = vmatpush.msra.mxu0 %v163
  %1147 = vmatpush.msra.mxu0 %v158
  %1148 = vmatpush.msra.mxu0 %v153
  %1149 = vmatpush.msra.mxu0 %v148
  %1150 = vmatpush.msra.mxu0 %v143
  %1151 = vmatpush.msra.mxu0 %v138
  %1152 = vmatpush.msra.mxu0 %v133
  %1153 = vmatpush.msra.mxu0 %v128
  %1154 = vmatpush.msra.mxu0 %v123
  %1155 = vmatpush.msra.mxu0 %v118
  %1156 = vmatpush.msra.mxu0 %v113
  %1157 = vmatpush.msra.mxu0 %v108
  %1158 = vmatpush.msra.mxu0 %v103
  %1159 = vmatmul.f32.gmra.mxu0 %v1062
  %v1160 = vpop.f32.mrf.mxu0
  %v1161 = vadd.f32 %v185, %v1160
  %1162 = vdwg.mxu0
  %v1164 = vrot.slane %v1081, 6
  %v1166 = vadd.f32 %v74, %v1164
  %v1167 = vxor.u32 %v1166, 2147483648
  %v1168 = vmul.f32 %v1167, 1.442695
  %v1169 = vpow.pop %v1168
  %v1170 = vadd.f32 %v1169, 1.0
  %v1171 = vrcp.pop %v1170
  %v1172 = vmul.f32 %v1170, %v1171
  %v1173 = vsub.f32 1.0, %v1172
  %v1174 = vmul.f32 %v1171, %v1173
  %v1175 = vadd.f32 %v1171, %v1174
  %vm1176 = vweird.f32 %v1170
  %vm1177 = vweird.f32 %v1171
  %vm1178 = vmor %vm1176, %vm1177
  %v1179 = vsel %vm1178, %v1171, %v1175
  %v1180 = vand.u32 2147483647, %v1170
  %vm1181 = vcmp.eq.f32.partialorder %v1180, 8.507059e+37
  %v1182 = vand.u32 %v1170, 2147483648
  %v1183 = vor.u32 1.1754944e-38, %v1182
  %v1184 = vsel %vm1181, %v1183, %v1179
  %v1185 = vmul.f32 1.0, %v1184
  %v1187 = vrot.slane %v1101, 6
  %v1189 = vmul.f32 %v1185, %v1187
  %v1190 = vadd.f32 %v97, %v1189
  %v1191 = vtanh.pop %v1190
  %v1192 = vsub.f32 1.0, %v1185
  %1194 = vrot.lane.b32.xlu0 %v1191, 64
  %v1195 = vpop.permute.xlu0 %1194
  %v1197 = vmul.f32 %v1192, %v1195
  %v1198 = vrot.slane %v994, 6
  %v1200 = vmul.f32 %v1185, %v1198
  %v1201 = vadd.f32 %v1197, %v1200
  %1203 = vrot.lane.b32.xlu0 %v1141, 64
  %v1204 = vpop.permute.xlu0 %1203
  %v1206 = vadd.f32 %v1101, %v1204
  %v1207 = vadd.f32 %v1121, %v1204
  %v1208 = vxor.u32 %v1206, 2147483648
  %v1209 = vxor.u32 %v1207, 2147483648
  %v1210 = vmul.f32 %v1208, 1.442695
  %v1211 = vpow.pop %v1210
  %v1212 = vmul.f32 %v1209, 1.442695
  %v1213 = vpow.pop %v1212
  %v1214 = vadd.f32 %v1211, 1.0
  %v1215 = vadd.f32 %v1213, 1.0
  %v1216 = vrcp.pop %v1214
  %v1217 = vmul.f32 %v1214, %v1216
  %v1218 = vsub.f32 1.0, %v1217
  %v1219 = vmul.f32 %v1216, %v1218
  %v1220 = vadd.f32 %v1216, %v1219
  %vm1221 = vweird.f32 %v1214
  %vm1222 = vweird.f32 %v1216
  %vm1223 = vmor %vm1221, %vm1222
  %v1224 = vsel %vm1223, %v1216, %v1220
  %v1225 = vand.u32 2147483647, %v1214
  %vm1226 = vcmp.eq.f32.partialorder %v1225, 8.507059e+37
  %v1227 = vand.u32 %v1214, 2147483648
  %v1228 = vor.u32 1.1754944e-38, %v1227
  %v1229 = vsel %vm1226, %v1228, %v1224
  %v1230 = vmul.f32 1.0, %v1229
  %v1231 = vrcp.pop %v1215
  %v1232 = vmul.f32 %v1215, %v1231
  %v1233 = vsub.f32 1.0, %v1232
  %v1234 = vmul.f32 %v1231, %v1233
  %v1235 = vadd.f32 %v1231, %v1234
  %vm1236 = vweird.f32 %v1215
  %vm1237 = vweird.f32 %v1231
  %vm1238 = vmor %vm1236, %vm1237
  %v1239 = vsel %vm1238, %v1231, %v1235
  %v1240 = vand.u32 2147483647, %v1215
  %vm1241 = vcmp.eq.f32.partialorder %v1240, 8.507059e+37
  %v1242 = vand.u32 %v1215, 2147483648
  %v1243 = vor.u32 1.1754944e-38, %v1242
  %v1244 = vsel %vm1241, %v1243, %v1239
  %v1245 = vmul.f32 1.0, %v1244
  %1247 = vrot.lane.b32.xlu0 %v1161, 64
  %v1248 = vpop.permute.xlu0 %1247
  %v1250 = vmul.f32 %v1230, %v1248
  %v1251 = vadd.f32 %v1121, %v1250
  %v1252 = vtanh.pop %v1251
  %v1253 = vsub.f32 1.0, %v1245
  %1255 = vrot.lane.b32.xlu0 %v1252, 64
  %v1256 = vpop.permute.xlu0 %1255
  %v1258 = vmul.f32 %v1253, %v1256
  %v1259 = vmul.f32 %v1245, %v1053
  %v1260 = vadd.f32 %v1258, %v1259
  %1262 = vrot.lane.b32.xlu0 %v1201, 64
  %v1263 = vpop.permute.xlu0 %1262
  %v1266 = vrot.slane %v1260, 6
  %1267 = vrot.lane.b32.xlu0 %v1266, 64
  %v1268 = vpop.permute.xlu0 %1267
  %v1270 = vsel %vm35, %v1263, %v1268
  %v1272 = vrot.slane %v1270, 2
  %1274 = vmatpush.msra.mxu0 %v174
  %1275 = vmatpush.msra.mxu0 %v169
  %1276 = vmatpush.msra.mxu0 %v164
  %1277 = vmatpush.msra.mxu0 %v159
  %1278 = vmatpush.msra.mxu0 %v154
  %1279 = vmatpush.msra.mxu0 %v149
  %1280 = vmatpush.msra.mxu0 %v144
  %1281 = vmatpush.msra.mxu0 %v139
  %1282 = vmatpush.msra.mxu0 %v134
  %1283 = vmatpush.msra.mxu0 %v129
  %1284 = vmatpush.msra.mxu0 %v124
  %1285 = vmatpush.msra.mxu0 %v119
  %1286 = vmatpush.msra.mxu0 %v114
  %1287 = vmatpush.msra.mxu0 %v109
  %1288 = vmatpush.msra.mxu0 %v104
  %1289 = vmatpush.msra.mxu0 %v99
  %1290 = vmatmul.f32.gmra.mxu0 %v1272
  %v1291 = vpop.f32.mrf.mxu0
  %v1292 = vadd.f32 %v181, %v1291
  %1293 = vdwg.mxu0
  %1294 = vmatpush.msra.mxu0 %v175
  %1295 = vmatpush.msra.mxu0 %v170
  %1296 = vmatpush.msra.mxu0 %v165
  %1297 = vmatpush.msra.mxu0 %v160
  %1298 = vmatpush.msra.mxu0 %v155
  %1299 = vmatpush.msra.mxu0 %v150
  %1300 = vmatpush.msra.mxu0 %v145
  %1301 = vmatpush.msra.mxu0 %v140
  %1302 = vmatpush.msra.mxu0 %v135
  %1303 = vmatpush.msra.mxu0 %v130
  %1304 = vmatpush.msra.mxu0 %v125
  %1305 = vmatpush.msra.mxu0 %v120
  %1306 = vmatpush.msra.mxu0 %v115
  %1307 = vmatpush.msra.mxu0 %v110
  %1308 = vmatpush.msra.mxu0 %v105
  %1309 = vmatpush.msra.mxu0 %v100
  %1310 = vmatmul.f32.gmra.mxu0 %v1272
  %v1311 = vpop.f32.mrf.mxu0
  %v1312 = vadd.f32 %v182, %v1311
  %1313 = vdwg.mxu0
  %1314 = vmatpush.msra.mxu0 %v176
  %1315 = vmatpush.msra.mxu0 %v171
  %1316 = vmatpush.msra.mxu0 %v166
  %1317 = vmatpush.msra.mxu0 %v161
  %1318 = vmatpush.msra.mxu0 %v156
  %1319 = vmatpush.msra.mxu0 %v151
  %1320 = vmatpush.msra.mxu0 %v146
  %1321 = vmatpush.msra.mxu0 %v141
  %1322 = vmatpush.msra.mxu0 %v136
  %1323 = vmatpush.msra.mxu0 %v131
  %1324 = vmatpush.msra.mxu0 %v126
  %1325 = vmatpush.msra.mxu0 %v121
  %1326 = vmatpush.msra.mxu0 %v116
  %1327 = vmatpush.msra.mxu0 %v111
  %1328 = vmatpush.msra.mxu0 %v106
  %1329 = vmatpush.msra.mxu0 %v101
  %1330 = vmatmul.f32.gmra.mxu0 %v1272
  %v1331 = vpop.f32.mrf.mxu0
  %v1332 = vadd.f32 %v183, %v1331
  %1333 = vdwg.mxu0
  %1334 = vmatpush.msra.mxu0 %v177
  %1335 = vmatpush.msra.mxu0 %v172
  %1336 = vmatpush.msra.mxu0 %v167
  %1337 = vmatpush.msra.mxu0 %v162
  %1338 = vmatpush.msra.mxu0 %v157
  %1339 = vmatpush.msra.mxu0 %v152
  %1340 = vmatpush.msra.mxu0 %v147
  %1341 = vmatpush.msra.mxu0 %v142
  %1342 = vmatpush.msra.mxu0 %v137
  %1343 = vmatpush.msra.mxu0 %v132
  %1344 = vmatpush.msra.mxu0 %v127
  %1345 = vmatpush.msra.mxu0 %v122
  %1346 = vmatpush.msra.mxu0 %v117
  %1347 = vmatpush.msra.mxu0 %v112
  %1348 = vmatpush.msra.mxu0 %v107
  %1349 = vmatpush.msra.mxu0 %v102
  %1350 = vmatmul.f32.gmra.mxu0 %v1272
  %v1351 = vpop.f32.mrf.mxu0
  %v1352 = vadd.f32 %v184, %v1351
  %1353 = vdwg.mxu0
  %1354 = vmatpush.msra.mxu0 %v178
  %1355 = vmatpush.msra.mxu0 %v173
  %1356 = vmatpush.msra.mxu0 %v168
  %1357 = vmatpush.msra.mxu0 %v163
  %1358 = vmatpush.msra.mxu0 %v158
  %1359 = vmatpush.msra.mxu0 %v153
  %1360 = vmatpush.msra.mxu0 %v148
  %1361 = vmatpush.msra.mxu0 %v143
  %1362 = vmatpush.msra.mxu0 %v138
  %1363 = vmatpush.msra.mxu0 %v133
  %1364 = vmatpush.msra.mxu0 %v128
  %1365 = vmatpush.msra.mxu0 %v123
  %1366 = vmatpush.msra.mxu0 %v118
  %1367 = vmatpush.msra.mxu0 %v113
  %1368 = vmatpush.msra.mxu0 %v108
  %1369 = vmatpush.msra.mxu0 %v103
  %1370 = vmatmul.f32.gmra.mxu0 %v1272
  %v1371 = vpop.f32.mrf.mxu0
  %v1372 = vadd.f32 %v185, %v1371
  %1373 = vdwg.mxu0
  %v1375 = vrot.slane %v1292, 4
  %v1377 = vadd.f32 %v74, %v1375
  %v1378 = vxor.u32 %v1377, 2147483648
  %v1379 = vmul.f32 %v1378, 1.442695
  %v1380 = vpow.pop %v1379
  %v1381 = vadd.f32 %v1380, 1.0
  %v1382 = vrcp.pop %v1381
  %v1383 = vmul.f32 %v1381, %v1382
  %v1384 = vsub.f32 1.0, %v1383
  %v1385 = vmul.f32 %v1382, %v1384
  %v1386 = vadd.f32 %v1382, %v1385
  %vm1387 = vweird.f32 %v1381
  %vm1388 = vweird.f32 %v1382
  %vm1389 = vmor %vm1387, %vm1388
  %v1390 = vsel %vm1389, %v1382, %v1386
  %v1391 = vand.u32 2147483647, %v1381
  %vm1392 = vcmp.eq.f32.partialorder %v1391, 8.507059e+37
  %v1393 = vand.u32 %v1381, 2147483648
  %v1394 = vor.u32 1.1754944e-38, %v1393
  %v1395 = vsel %vm1392, %v1394, %v1390
  %v1396 = vmul.f32 1.0, %v1395
  %v1398 = vrot.slane %v1312, 4
  %v1400 = vmul.f32 %v1396, %v1398
  %v1401 = vadd.f32 %v97, %v1400
  %v1402 = vtanh.pop %v1401
  %v1403 = vsub.f32 1.0, %v1396
  %1405 = vrot.lane.b32.xlu0 %v1402, 64
  %v1406 = vpop.permute.xlu0 %1405
  %v1408 = vmul.f32 %v1403, %v1406
  %v1409 = vrot.slane %v1201, 6
  %v1411 = vmul.f32 %v1396, %v1409
  %v1412 = vadd.f32 %v1408, %v1411
  %1414 = vrot.lane.b32.xlu0 %v1352, 64
  %v1415 = vpop.permute.xlu0 %1414
  %v1417 = vadd.f32 %v1312, %v1415
  %v1418 = vadd.f32 %v1332, %v1415
  %v1419 = vxor.u32 %v1417, 2147483648
  %v1420 = vxor.u32 %v1418, 2147483648
  %v1421 = vmul.f32 %v1419, 1.442695
  %v1422 = vpow.pop %v1421
  %v1423 = vmul.f32 %v1420, 1.442695
  %v1424 = vpow.pop %v1423
  %v1425 = vadd.f32 %v1422, 1.0
  %v1426 = vadd.f32 %v1424, 1.0
  %v1427 = vrcp.pop %v1425
  %v1428 = vmul.f32 %v1425, %v1427
  %v1429 = vsub.f32 1.0, %v1428
  %v1430 = vmul.f32 %v1427, %v1429
  %v1431 = vadd.f32 %v1427, %v1430
  %vm1432 = vweird.f32 %v1425
  %vm1433 = vweird.f32 %v1427
  %vm1434 = vmor %vm1432, %vm1433
  %v1435 = vsel %vm1434, %v1427, %v1431
  %v1436 = vand.u32 2147483647, %v1425
  %vm1437 = vcmp.eq.f32.partialorder %v1436, 8.507059e+37
  %v1438 = vand.u32 %v1425, 2147483648
  %v1439 = vor.u32 1.1754944e-38, %v1438
  %v1440 = vsel %vm1437, %v1439, %v1435
  %v1441 = vmul.f32 1.0, %v1440
  %v1442 = vrcp.pop %v1426
  %v1443 = vmul.f32 %v1426, %v1442
  %v1444 = vsub.f32 1.0, %v1443
  %v1445 = vmul.f32 %v1442, %v1444
  %v1446 = vadd.f32 %v1442, %v1445
  %vm1447 = vweird.f32 %v1426
  %vm1448 = vweird.f32 %v1442
  %vm1449 = vmor %vm1447, %vm1448
  %v1450 = vsel %vm1449, %v1442, %v1446
  %v1451 = vand.u32 2147483647, %v1426
  %vm1452 = vcmp.eq.f32.partialorder %v1451, 8.507059e+37
  %v1453 = vand.u32 %v1426, 2147483648
  %v1454 = vor.u32 1.1754944e-38, %v1453
  %v1455 = vsel %vm1452, %v1454, %v1450
  %v1456 = vmul.f32 1.0, %v1455
  %1458 = vrot.lane.b32.xlu0 %v1372, 64
  %v1459 = vpop.permute.xlu0 %1458
  %v1461 = vmul.f32 %v1441, %v1459
  %v1462 = vadd.f32 %v1332, %v1461
  %v1463 = vtanh.pop %v1462
  %v1464 = vsub.f32 1.0, %v1456
  %1466 = vrot.lane.b32.xlu0 %v1463, 64
  %v1467 = vpop.permute.xlu0 %1466
  %v1469 = vmul.f32 %v1464, %v1467
  %v1470 = vmul.f32 %v1456, %v1260
  %v1471 = vadd.f32 %v1469, %v1470
  %1473 = vrot.lane.b32.xlu0 %v1412, 64
  %v1474 = vpop.permute.xlu0 %1473
  %v1477 = vrot.slane %v1471, 4
  %1478 = vrot.lane.b32.xlu0 %v1477, 64
  %v1479 = vpop.permute.xlu0 %1478
  %v1481 = vsel %vm35, %v1474, %v1479
  %v1483 = vrot.slane %v1481, 4
  %1485 = vmatpush.msra.mxu0 %v174
  %1486 = vmatpush.msra.mxu0 %v169
  %1487 = vmatpush.msra.mxu0 %v164
  %1488 = vmatpush.msra.mxu0 %v159
  %1489 = vmatpush.msra.mxu0 %v154
  %1490 = vmatpush.msra.mxu0 %v149
  %1491 = vmatpush.msra.mxu0 %v144
  %1492 = vmatpush.msra.mxu0 %v139
  %1493 = vmatpush.msra.mxu0 %v134
  %1494 = vmatpush.msra.mxu0 %v129
  %1495 = vmatpush.msra.mxu0 %v124
  %1496 = vmatpush.msra.mxu0 %v119
  %1497 = vmatpush.msra.mxu0 %v114
  %1498 = vmatpush.msra.mxu0 %v109
  %1499 = vmatpush.msra.mxu0 %v104
  %1500 = vmatpush.msra.mxu0 %v99
  %1501 = vmatmul.f32.gmra.mxu0 %v1483
  %v1502 = vpop.f32.mrf.mxu0
  %v1503 = vadd.f32 %v181, %v1502
  %1504 = vdwg.mxu0
  %1505 = vmatpush.msra.mxu0 %v175
  %1506 = vmatpush.msra.mxu0 %v170
  %1507 = vmatpush.msra.mxu0 %v165
  %1508 = vmatpush.msra.mxu0 %v160
  %1509 = vmatpush.msra.mxu0 %v155
  %1510 = vmatpush.msra.mxu0 %v150
  %1511 = vmatpush.msra.mxu0 %v145
  %1512 = vmatpush.msra.mxu0 %v140
  %1513 = vmatpush.msra.mxu0 %v135
  %1514 = vmatpush.msra.mxu0 %v130
  %1515 = vmatpush.msra.mxu0 %v125
  %1516 = vmatpush.msra.mxu0 %v120
  %1517 = vmatpush.msra.mxu0 %v115
  %1518 = vmatpush.msra.mxu0 %v110
  %1519 = vmatpush.msra.mxu0 %v105
  %1520 = vmatpush.msra.mxu0 %v100
  %1521 = vmatmul.f32.gmra.mxu0 %v1483
  %v1522 = vpop.f32.mrf.mxu0
  %v1523 = vadd.f32 %v182, %v1522
  %1524 = vdwg.mxu0
  %1525 = vmatpush.msra.mxu0 %v176
  %1526 = vmatpush.msra.mxu0 %v171
  %1527 = vmatpush.msra.mxu0 %v166
  %1528 = vmatpush.msra.mxu0 %v161
  %1529 = vmatpush.msra.mxu0 %v156
  %1530 = vmatpush.msra.mxu0 %v151
  %1531 = vmatpush.msra.mxu0 %v146
  %1532 = vmatpush.msra.mxu0 %v141
  %1533 = vmatpush.msra.mxu0 %v136
  %1534 = vmatpush.msra.mxu0 %v131
  %1535 = vmatpush.msra.mxu0 %v126
  %1536 = vmatpush.msra.mxu0 %v121
  %1537 = vmatpush.msra.mxu0 %v116
  %1538 = vmatpush.msra.mxu0 %v111
  %1539 = vmatpush.msra.mxu0 %v106
  %1540 = vmatpush.msra.mxu0 %v101
  %1541 = vmatmul.f32.gmra.mxu0 %v1483
  %v1542 = vpop.f32.mrf.mxu0
  %v1543 = vadd.f32 %v183, %v1542
  %1544 = vdwg.mxu0
  %1545 = vmatpush.msra.mxu0 %v177
  %1546 = vmatpush.msra.mxu0 %v172
  %1547 = vmatpush.msra.mxu0 %v167
  %1548 = vmatpush.msra.mxu0 %v162
  %1549 = vmatpush.msra.mxu0 %v157
  %1550 = vmatpush.msra.mxu0 %v152
  %1551 = vmatpush.msra.mxu0 %v147
  %1552 = vmatpush.msra.mxu0 %v142
  %1553 = vmatpush.msra.mxu0 %v137
  %1554 = vmatpush.msra.mxu0 %v132
  %1555 = vmatpush.msra.mxu0 %v127
  %1556 = vmatpush.msra.mxu0 %v122
  %1557 = vmatpush.msra.mxu0 %v117
  %1558 = vmatpush.msra.mxu0 %v112
  %1559 = vmatpush.msra.mxu0 %v107
  %1560 = vmatpush.msra.mxu0 %v102
  %1561 = vmatmul.f32.gmra.mxu0 %v1483
  %v1562 = vpop.f32.mrf.mxu0
  %v1563 = vadd.f32 %v184, %v1562
  %1564 = vdwg.mxu0
  %1565 = vmatpush.msra.mxu0 %v178
  %1566 = vmatpush.msra.mxu0 %v173
  %1567 = vmatpush.msra.mxu0 %v168
  %1568 = vmatpush.msra.mxu0 %v163
  %1569 = vmatpush.msra.mxu0 %v158
  %1570 = vmatpush.msra.mxu0 %v153
  %1571 = vmatpush.msra.mxu0 %v148
  %1572 = vmatpush.msra.mxu0 %v143
  %1573 = vmatpush.msra.mxu0 %v138
  %1574 = vmatpush.msra.mxu0 %v133
  %1575 = vmatpush.msra.mxu0 %v128
  %1576 = vmatpush.msra.mxu0 %v123
  %1577 = vmatpush.msra.mxu0 %v118
  %1578 = vmatpush.msra.mxu0 %v113
  %1579 = vmatpush.msra.mxu0 %v108
  %1580 = vmatpush.msra.mxu0 %v103
  %1581 = vmatmul.f32.gmra.mxu0 %v1483
  %v1582 = vpop.f32.mrf.mxu0
  %v1583 = vadd.f32 %v185, %v1582
  %1584 = vdwg.mxu0
  %v1586 = vrot.slane %v1503, 2
  %v1588 = vadd.f32 %v74, %v1586
  %v1589 = vxor.u32 %v1588, 2147483648
  %v1590 = vmul.f32 %v1589, 1.442695
  %v1591 = vpow.pop %v1590
  %v1592 = vadd.f32 %v1591, 1.0
  %v1593 = vrcp.pop %v1592
  %v1594 = vmul.f32 %v1592, %v1593
  %v1595 = vsub.f32 1.0, %v1594
  %v1596 = vmul.f32 %v1593, %v1595
  %v1597 = vadd.f32 %v1593, %v1596
  %vm1598 = vweird.f32 %v1592
  %vm1599 = vweird.f32 %v1593
  %vm1600 = vmor %vm1598, %vm1599
  %v1601 = vsel %vm1600, %v1593, %v1597
  %v1602 = vand.u32 2147483647, %v1592
  %vm1603 = vcmp.eq.f32.partialorder %v1602, 8.507059e+37
  %v1604 = vand.u32 %v1592, 2147483648
  %v1605 = vor.u32 1.1754944e-38, %v1604
  %v1606 = vsel %vm1603, %v1605, %v1601
  %v1607 = vmul.f32 1.0, %v1606
  %v1609 = vrot.slane %v1523, 2
  %v1611 = vmul.f32 %v1607, %v1609
  %v1612 = vadd.f32 %v97, %v1611
  %v1613 = vtanh.pop %v1612
  %v1614 = vsub.f32 1.0, %v1607
  %1616 = vrot.lane.b32.xlu0 %v1613, 64
  %v1617 = vpop.permute.xlu0 %1616
  %v1619 = vmul.f32 %v1614, %v1617
  %v1620 = vrot.slane %v1412, 6
  %v1622 = vmul.f32 %v1607, %v1620
  %v1623 = vadd.f32 %v1619, %v1622
  %1625 = vrot.lane.b32.xlu0 %v1563, 64
  %v1626 = vpop.permute.xlu0 %1625
  %v1628 = vadd.f32 %v1523, %v1626
  %v1629 = vadd.f32 %v1543, %v1626
  %v1630 = vxor.u32 %v1628, 2147483648
  %v1631 = vxor.u32 %v1629, 2147483648
  %v1632 = vmul.f32 %v1630, 1.442695
  %v1633 = vpow.pop %v1632
  %v1634 = vmul.f32 %v1631, 1.442695
  %v1635 = vpow.pop %v1634
  %v1636 = vadd.f32 %v1633, 1.0
  %v1637 = vadd.f32 %v1635, 1.0
  %v1638 = vrcp.pop %v1636
  %v1639 = vmul.f32 %v1636, %v1638
  %v1640 = vsub.f32 1.0, %v1639
  %v1641 = vmul.f32 %v1638, %v1640
  %v1642 = vadd.f32 %v1638, %v1641
  %vm1643 = vweird.f32 %v1636
  %vm1644 = vweird.f32 %v1638
  %vm1645 = vmor %vm1643, %vm1644
  %v1646 = vsel %vm1645, %v1638, %v1642
  %v1647 = vand.u32 2147483647, %v1636
  %vm1648 = vcmp.eq.f32.partialorder %v1647, 8.507059e+37
  %v1649 = vand.u32 %v1636, 2147483648
  %v1650 = vor.u32 1.1754944e-38, %v1649
  %v1651 = vsel %vm1648, %v1650, %v1646
  %v1652 = vmul.f32 1.0, %v1651
  %v1653 = vrcp.pop %v1637
  %v1654 = vmul.f32 %v1637, %v1653
  %v1655 = vsub.f32 1.0, %v1654
  %v1656 = vmul.f32 %v1653, %v1655
  %v1657 = vadd.f32 %v1653, %v1656
  %vm1658 = vweird.f32 %v1637
  %vm1659 = vweird.f32 %v1653
  %vm1660 = vmor %vm1658, %vm1659
  %v1661 = vsel %vm1660, %v1653, %v1657
  %v1662 = vand.u32 2147483647, %v1637
  %vm1663 = vcmp.eq.f32.partialorder %v1662, 8.507059e+37
  %v1664 = vand.u32 %v1637, 2147483648
  %v1665 = vor.u32 1.1754944e-38, %v1664
  %v1666 = vsel %vm1663, %v1665, %v1661
  %v1667 = vmul.f32 1.0, %v1666
  %1669 = vrot.lane.b32.xlu0 %v1583, 64
  %v1670 = vpop.permute.xlu0 %1669
  %v1672 = vmul.f32 %v1652, %v1670
  %v1673 = vadd.f32 %v1543, %v1672
  %v1674 = vtanh.pop %v1673
  %v1675 = vsub.f32 1.0, %v1667
  %1677 = vrot.lane.b32.xlu0 %v1674, 64
  %v1678 = vpop.permute.xlu0 %1677
  %v1680 = vmul.f32 %v1675, %v1678
  %v1681 = vmul.f32 %v1667, %v1471
  %v1682 = vadd.f32 %v1680, %v1681
  %1684 = vrot.lane.b32.xlu0 %v1623, 64
  %v1685 = vpop.permute.xlu0 %1684
  %v1688 = vrot.slane %v1682, 2
  %1689 = vrot.lane.b32.xlu0 %v1688, 64
  %v1690 = vpop.permute.xlu0 %1689
  %v1692 = vsel %vm35, %v1685, %v1690
  %v1694 = vrot.slane %v1692, 6
  %1696 = vmatpush.msra.mxu0 %v175
  %1697 = vmatpush.msra.mxu0 %v170
  %1698 = vmatpush.msra.mxu0 %v165
  %1699 = vmatpush.msra.mxu0 %v160
  %1700 = vmatpush.msra.mxu0 %v155
  %1701 = vmatpush.msra.mxu0 %v150
  %1702 = vmatpush.msra.mxu0 %v145
  %1703 = vmatpush.msra.mxu0 %v140
  %1704 = vmatpush.msra.mxu0 %v135
  %1705 = vmatpush.msra.mxu0 %v130
  %1706 = vmatpush.msra.mxu0 %v125
  %1707 = vmatpush.msra.mxu0 %v120
  %1708 = vmatpush.msra.mxu0 %v115
  %1709 = vmatpush.msra.mxu0 %v110
  %1710 = vmatpush.msra.mxu0 %v105
  %1711 = vmatpush.msra.mxu0 %v100
  %1712 = vmatmul.f32.gmra.mxu0 %v1694
  %v1713 = vpop.f32.mrf.mxu0
  %v1714 = vadd.f32 %v182, %v1713
  %1715 = vdwg.mxu0
  %1716 = vmatpush.msra.mxu0 %v176
  %1717 = vmatpush.msra.mxu0 %v171
  %1718 = vmatpush.msra.mxu0 %v166
  %1719 = vmatpush.msra.mxu0 %v161
  %1720 = vmatpush.msra.mxu0 %v156
  %1721 = vmatpush.msra.mxu0 %v151
  %1722 = vmatpush.msra.mxu0 %v146
  %1723 = vmatpush.msra.mxu0 %v141
  %1724 = vmatpush.msra.mxu0 %v136
  %1725 = vmatpush.msra.mxu0 %v131
  %1726 = vmatpush.msra.mxu0 %v126
  %1727 = vmatpush.msra.mxu0 %v121
  %1728 = vmatpush.msra.mxu0 %v116
  %1729 = vmatpush.msra.mxu0 %v111
  %1730 = vmatpush.msra.mxu0 %v106
  %1731 = vmatpush.msra.mxu0 %v101
  %1732 = vmatmul.f32.gmra.mxu0 %v1694
  %v1733 = vpop.f32.mrf.mxu0
  %v1734 = vadd.f32 %v183, %v1733
  %1735 = vdwg.mxu0
  %1736 = vmatpush.msra.mxu0 %v177
  %1737 = vmatpush.msra.mxu0 %v172
  %1738 = vmatpush.msra.mxu0 %v167
  %1739 = vmatpush.msra.mxu0 %v162
  %1740 = vmatpush.msra.mxu0 %v157
  %1741 = vmatpush.msra.mxu0 %v152
  %1742 = vmatpush.msra.mxu0 %v147
  %1743 = vmatpush.msra.mxu0 %v142
  %1744 = vmatpush.msra.mxu0 %v137
  %1745 = vmatpush.msra.mxu0 %v132
  %1746 = vmatpush.msra.mxu0 %v127
  %1747 = vmatpush.msra.mxu0 %v122
  %1748 = vmatpush.msra.mxu0 %v117
  %1749 = vmatpush.msra.mxu0 %v112
  %1750 = vmatpush.msra.mxu0 %v107
  %1751 = vmatpush.msra.mxu0 %v102
  %1752 = vmatmul.f32.gmra.mxu0 %v1694
  %v1753 = vpop.f32.mrf.mxu0
  %v1754 = vadd.f32 %v184, %v1753
  %1755 = vdwg.mxu0
  %1756 = vmatpush.msra.mxu0 %v178
  %1757 = vmatpush.msra.mxu0 %v173
  %1758 = vmatpush.msra.mxu0 %v168
  %1759 = vmatpush.msra.mxu0 %v163
  %1760 = vmatpush.msra.mxu0 %v158
  %1761 = vmatpush.msra.mxu0 %v153
  %1762 = vmatpush.msra.mxu0 %v148
  %1763 = vmatpush.msra.mxu0 %v143
  %1764 = vmatpush.msra.mxu0 %v138
  %1765 = vmatpush.msra.mxu0 %v133
  %1766 = vmatpush.msra.mxu0 %v128
  %1767 = vmatpush.msra.mxu0 %v123
  %1768 = vmatpush.msra.mxu0 %v118
  %1769 = vmatpush.msra.mxu0 %v113
  %1770 = vmatpush.msra.mxu0 %v108
  %1771 = vmatpush.msra.mxu0 %v103
  %1772 = vmatmul.f32.gmra.mxu0 %v1694
  %v1773 = vpop.f32.mrf.mxu0
  %v1774 = vadd.f32 %v185, %v1773
  %1775 = vdwg.mxu0
  %1777 = vrot.lane.b32.xlu0 %v1754, 64
  %v1778 = vpop.permute.xlu0 %1777
  %v1780 = vadd.f32 %v1714, %v1778
  %v1781 = vadd.f32 %v1734, %v1778
  %v1782 = vxor.u32 %v1780, 2147483648
  %v1783 = vxor.u32 %v1781, 2147483648
  %v1784 = vmul.f32 %v1782, 1.442695
  %v1785 = vpow.pop %v1784
  %v1786 = vmul.f32 %v1783, 1.442695
  %v1787 = vpow.pop %v1786
  %v1788 = vadd.f32 %v1785, 1.0
  %v1789 = vadd.f32 %v1787, 1.0
  %v1790 = vrcp.pop %v1788
  %v1791 = vmul.f32 %v1788, %v1790
  %v1792 = vsub.f32 1.0, %v1791
  %v1793 = vmul.f32 %v1790, %v1792
  %v1794 = vadd.f32 %v1790, %v1793
  %vm1795 = vweird.f32 %v1788
  %vm1796 = vweird.f32 %v1790
  %vm1797 = vmor %vm1795, %vm1796
  %v1798 = vsel %vm1797, %v1790, %v1794
  %v1799 = vand.u32 2147483647, %v1788
  %vm1800 = vcmp.eq.f32.partialorder %v1799, 8.507059e+37
  %v1801 = vand.u32 %v1788, 2147483648
  %v1802 = vor.u32 1.1754944e-38, %v1801
  %v1803 = vsel %vm1800, %v1802, %v1798
  %v1804 = vmul.f32 1.0, %v1803
  %v1805 = vrcp.pop %v1789
  %v1806 = vmul.f32 %v1789, %v1805
  %v1807 = vsub.f32 1.0, %v1806
  %v1808 = vmul.f32 %v1805, %v1807
  %v1809 = vadd.f32 %v1805, %v1808
  %vm1810 = vweird.f32 %v1789
  %vm1811 = vweird.f32 %v1805
  %vm1812 = vmor %vm1810, %vm1811
  %v1813 = vsel %vm1812, %v1805, %v1809
  %v1814 = vand.u32 2147483647, %v1789
  %vm1815 = vcmp.eq.f32.partialorder %v1814, 8.507059e+37
  %v1816 = vand.u32 %v1789, 2147483648
  %v1817 = vor.u32 1.1754944e-38, %v1816
  %v1818 = vsel %vm1815, %v1817, %v1813
  %v1819 = vmul.f32 1.0, %v1818
  %1821 = vrot.lane.b32.xlu0 %v1774, 64
  %v1822 = vpop.permute.xlu0 %1821
  %v1824 = vmul.f32 %v1804, %v1822
  %v1825 = vadd.f32 %v1734, %v1824
  %v1826 = vtanh.pop %v1825
  %v1827 = vsub.f32 1.0, %v1819
  %1829 = vrot.lane.b32.xlu0 %v1826, 64
  %v1830 = vpop.permute.xlu0 %1829
  %v1832 = vmul.f32 %v1827, %v1830
  %v1833 = vmul.f32 %v1819, %v1682
  %v1834 = vadd.f32 %v1832, %v1833
  %v1835 = vrot.slane %v637, 7
  %v1837 = vrot.slane %v848, 6
  %v1839 = vrot.slane %v1053, 5
  %v1841 = vrot.slane %v1260, 4
  %v1843 = vrot.slane %v1471, 3
  %v1847 = vrot.slane %v1834, 1
  %v1849 = vrot.slane %v426, 1
  %v1851 = vrot.slane %v848, 7
  %v1853 = vrot.slane %v1053, 6
  %v1855 = vrot.slane %v1260, 5
  %v1858 = vrot.slane %v1682, 3
  %v1860 = vrot.slane %v1834, 2
  %vm1862 = vcmask 1040384
  %v1863 = vsel %vm1862, %v426, %v1835
  %vm1864 = vcmask 1041408
  %v1865 = vsel %vm1864, %v1863, %v1837
  %vm1866 = vcmask 1042432
  %v1867 = vsel %vm1866, %v1865, %v1839
  %v1868 = vsel %vm46, %v1867, %v1841
  %vm1869 = vcmask 1044480
  %v1870 = vsel %vm1869, %v1868, %v1843
  %vm1871 = vcmask 1045504
  %v1872 = vsel %vm1871, %v1870, %v1688
  %vm1873 = vcmask 1046528
  %v1874 = vsel %vm1873, %v1872, %v1847
  %v1875 = vsel %vm1862, %v1849, %v637
  %v1876 = vsel %vm1864, %v1875, %v1851
  %v1877 = vsel %vm1866, %v1876, %v1853
  %v1878 = vsel %vm46, %v1877, %v1855
  %v1879 = vsel %vm1869, %v1878, %v1477
  %v1880 = vsel %vm1871, %v1879, %v1858
  %v1881 = vsel %vm1873, %v1880, %v1860
  %v1882 = vld [vmem:[%s4] sm:$0xff]
  %v1883 = vld [vmem:[%s4 + $0x8] sm:$0xff]
  %v1884 = vld [vmem:[%s4 + $0x20] sm:$0xff]
  %v1885 = vld [vmem:[%s4 + $0x28] sm:$0xff]
  %v1886 = vld [vmem:[%s4 + $0x40] sm:$0xff]
  %v1887 = vld [vmem:[%s4 + $0x48] sm:$0xff]
  %v1888 = vld [vmem:[%s4 + $0x60] sm:$0xff]
  %v1889 = vld [vmem:[%s4 + $0x68] sm:$0xff]
  %v1890 = vld [vmem:[%s4 + $0x80] sm:$0xff]
  %v1891 = vld [vmem:[%s4 + $0x88] sm:$0xff]
  %v1892 = vld [vmem:[%s4 + $0xa0] sm:$0xff]
  %v1893 = vld [vmem:[%s4 + $0xa8] sm:$0xff]
  %v1894 = vld [vmem:[%s4 + $0xc0] sm:$0xff]
  %v1895 = vld [vmem:[%s4 + $0xc8] sm:$0xff]
  %v1896 = vld [vmem:[%s4 + $0xe0] sm:$0xff]
  %v1897 = vld [vmem:[%s4 + $0xe8] sm:$0xff]
  %v1898 = vld [vmem:[%s5 + $0x6] sm:$0x3]
  %v1900 = vperm.slane %v1898, 0
  %v1901 = vperm.slane %v1898, 1
  %v1905 = vsel %vm35, %v1874, 0
  %v1908 = vsel %vm35, %v1881, 0
  %1910 = vmatpush.msra.mxu0 0.0
  %1911 = vmatpush.msra.mxu0 0.0
  %1912 = vmatpush.msra.mxu0 0.0
  %1913 = vmatpush.msra.mxu0 0.0
  %1914 = vmatpush.msra.mxu0 0.0
  %1915 = vmatpush.msra.mxu0 0.0
  %1916 = vmatpush.msra.mxu0 0.0
  %1917 = vmatpush.msra.mxu0 0.0
  %1918 = vmatpush.msra.mxu0 %v1896
  %1919 = vmatpush.msra.mxu0 %v1894
  %1920 = vmatpush.msra.mxu0 %v1892
  %1921 = vmatpush.msra.mxu0 %v1890
  %1922 = vmatpush.msra.mxu0 %v1888
  %1923 = vmatpush.msra.mxu0 %v1886
  %1924 = vmatpush.msra.mxu0 %v1884
  %1925 = vmatpush.msra.mxu0 %v1882
  %1926 = vmatmul.f32.gmra.mxu0 %v1905
  %v1927 = vpop.f32.mrf.mxu0
  %v1928 = vadd.f32 %v1900, %v1927
  %1929 = vmatmul.f32.gmra.mxu0 %v1908
  %v1930 = vpop.f32.mrf.mxu0
  %v1931 = vadd.f32 %v1900, %v1930
  %1932 = vdwg.mxu0
  %1933 = vmatpush.msra.mxu0 0.0
  %1934 = vmatpush.msra.mxu0 0.0
  %1935 = vmatpush.msra.mxu0 0.0
  %1936 = vmatpush.msra.mxu0 0.0
  %1937 = vmatpush.msra.mxu0 0.0
  %1938 = vmatpush.msra.mxu0 0.0
  %1939 = vmatpush.msra.mxu0 0.0
  %1940 = vmatpush.msra.mxu0 0.0
  %1941 = vmatpush.msra.mxu0 %v1897
  %1942 = vmatpush.msra.mxu0 %v1895
  %1943 = vmatpush.msra.mxu0 %v1893
  %1944 = vmatpush.msra.mxu0 %v1891
  %1945 = vmatpush.msra.mxu0 %v1889
  %1946 = vmatpush.msra.mxu0 %v1887
  %1947 = vmatpush.msra.mxu0 %v1885
  %1948 = vmatpush.msra.mxu0 %v1883
  %1949 = vmatmul.f32.gmra.mxu0 %v1905
  %v1950 = vpop.f32.mrf.mxu0
  %v1951 = vadd.f32 %v1901, %v1950
  %1952 = vmatmul.f32.gmra.mxu0 %v1908
  %v1953 = vpop.f32.mrf.mxu0
  %v1954 = vadd.f32 %v1901, %v1953
  %1955 = vdwg.mxu0
  %1957 = vrot.lane.b32.xlu0 %v1928, 64
  %v1958 = vpop.permute.xlu0 %1957
  %vm1959 = vcmask 130048
  %v1960 = vsel %vm1959, %v1928, 0
  %v1962 = vsel %vm1959, %v1958, 0
  %1964 = vmatpush.xpose.msra.mxu0 0.0
  %1965 = vmatpush.xpose.msra.mxu0 0.0
  %1966 = vmatpush.xpose.msra.mxu0 0.0
  %1967 = vmatpush.xpose.msra.mxu0 0.0
  %1968 = vmatpush.xpose.msra.mxu0 0.0
  %1969 = vmatpush.xpose.msra.mxu0 0.0
  %1970 = vmatpush.xpose.msra.mxu0 0.0
  %1971 = vmatpush.xpose.msra.mxu0 0.0
  %1972 = vmatpush.xpose.msra.mxu0 0.0
  %1973 = vmatpush.xpose.msra.mxu0 0.0
  %1974 = vmatpush.xpose.msra.mxu0 0.0
  %1975 = vmatpush.xpose.msra.mxu0 0.0
  %1976 = vmatpush.xpose.msra.mxu0 0.0
  %1977 = vmatpush.xpose.msra.mxu0 0.0
  %1978 = vmatpush.xpose.msra.mxu0 0.0
  %1979 = vmatpush.xpose.msra.mxu0 %v1962
  %1980 = vmatmul.f32.gmra.mxu0 %v1960
  %v1981 = vpop.f32.mrf.mxu0
  %v1982 = vadd.f32 0.0, %v1981
  %1983 = vdwg.mxu0
  %1985 = vrot.lane.b32.xlu0 %v1931, 64
  %v1986 = vpop.permute.xlu0 %1985
  %v1987 = vsel %vm1959, %v1931, 0
  %v1989 = vsel %vm1959, %v1986, 0
  %1991 = vmatpush.xpose.msra.mxu0 0.0
  %1992 = vmatpush.xpose.msra.mxu0 0.0
  %1993 = vmatpush.xpose.msra.mxu0 0.0
  %1994 = vmatpush.xpose.msra.mxu0 0.0
  %1995 = vmatpush.xpose.msra.mxu0 0.0
  %1996 = vmatpush.xpose.msra.mxu0 0.0
  %1997 = vmatpush.xpose.msra.mxu0 0.0
  %1998 = vmatpush.xpose.msra.mxu0 0.0
  %1999 = vmatpush.xpose.msra.mxu0 0.0
  %2000 = vmatpush.xpose.msra.mxu0 0.0
  %2001 = vmatpush.xpose.msra.mxu0 0.0
  %2002 = vmatpush.xpose.msra.mxu0 0.0
  %2003 = vmatpush.xpose.msra.mxu0 0.0
  %2004 = vmatpush.xpose.msra.mxu0 0.0
  %2005 = vmatpush.xpose.msra.mxu0 0.0
  %2006 = vmatpush.xpose.msra.mxu0 %v1989
  %2007 = vmatmul.f32.gmra.mxu0 %v1987
  %v2008 = vpop.f32.mrf.mxu0
  %v2009 = vadd.f32 0.0, %v2008
  %2010 = vdwg.mxu0
  %v2011 = vmul.f32 %v1982, 0.25
  %v2012 = vmul.f32 %v2009, 0.25
  %vm2013 = vcmask 64512
  %v2014 = vsel %vm2013, %v2011, -inf
  %2015 = vmax.xlane.f32.xlu0 %v2014
  %v2016 = vpop.xlane.xlu0 %2015
  %v2017 = vsel %vm2013, %v2012, -inf
  %2018 = vmax.xlane.f32.xlu0 %v2017
  %v2019 = vpop.xlane.xlu0 %2018
  %v2020 = vsub.f32 %v2011, %v2016
  %v2021 = vsub.f32 %v2012, %v2019
  %v2022 = vmul.f32 %v2020, 1.442695
  %v2023 = vpow.pop %v2022
  %v2024 = vmul.f32 %v2021, 1.442695
  %v2025 = vpow.pop %v2024
  %v2026 = vsel %vm2013, %v2023, 0.0
  %2027 = vadd.xlane.f32.xlu0 %v2026
  %v2028 = vpop.xlane.xlu0 %2027
  %v2029 = vsel %vm2013, %v2025, 0.0
  %2030 = vadd.xlane.f32.xlu0 %v2029
  %v2031 = vpop.xlane.xlu0 %2030
  %v2032 = vrcp.pop %v2028
  %v2033 = vmul.f32 %v2028, %v2032
  %v2034 = vsub.f32 1.0, %v2033
  %v2035 = vmul.f32 %v2032, %v2034
  %v2036 = vadd.f32 %v2032, %v2035
  %vm2037 = vweird.f32 %v2028
  %vm2038 = vweird.f32 %v2032
  %vm2039 = vmor %vm2037, %vm2038
  %v2040 = vsel %vm2039, %v2032, %v2036
  %v2041 = vand.u32 2147483647, %v2028
  %vm2042 = vcmp.eq.f32.partialorder %v2041, 8.507059e+37
  %v2043 = vand.u32 %v2028, 2147483648
  %v2044 = vor.u32 1.1754944e-38, %v2043
  %v2045 = vsel %vm2042, %v2044, %v2040
  %v2046 = vmul.f32 %v2023, %v2045
  %v2047 = vrcp.pop %v2031
  %v2048 = vmul.f32 %v2031, %v2047
  %v2049 = vsub.f32 1.0, %v2048
  %v2050 = vmul.f32 %v2047, %v2049
  %v2051 = vadd.f32 %v2047, %v2050
  %vm2052 = vweird.f32 %v2031
  %vm2053 = vweird.f32 %v2047
  %vm2054 = vmor %vm2052, %vm2053
  %v2055 = vsel %vm2054, %v2047, %v2051
  %v2056 = vand.u32 2147483647, %v2031
  %vm2057 = vcmp.eq.f32.partialorder %v2056, 8.507059e+37
  %v2058 = vand.u32 %v2031, 2147483648
  %v2059 = vor.u32 1.1754944e-38, %v2058
  %v2060 = vsel %vm2057, %v2059, %v2055
  %v2061 = vmul.f32 %v2025, %v2060
  %v2063 = vsel %vm2013, %v2046, 0
  %2065 = vmatpush.msra.mxu0 0.0
  %2066 = vmatpush.msra.mxu0 0.0
  %2067 = vmatpush.msra.mxu0 0.0
  %2068 = vmatpush.msra.mxu0 0.0
  %2069 = vmatpush.msra.mxu0 0.0
  %2070 = vmatpush.msra.mxu0 0.0
  %2071 = vmatpush.msra.mxu0 0.0
  %2072 = vmatpush.msra.mxu0 0.0
  %2073 = vmatpush.msra.mxu0 0.0
  %2074 = vmatpush.msra.mxu0 0.0
  %2075 = vmatpush.msra.mxu0 0.0
  %2076 = vmatpush.msra.mxu0 0.0
  %2077 = vmatpush.msra.mxu0 0.0
  %2078 = vmatpush.msra.mxu0 0.0
  %2079 = vmatpush.msra.mxu0 0.0
  %2080 = vmatpush.msra.mxu0 %v1951
  %2081 = vmatmul.f32.gmra.mxu0 %v2063
  %v2082 = vpop.f32.mrf.mxu0
  %v2083 = vadd.f32 0.0, %v2082
  %2084 = vdwg.mxu0
  %v2086 = vsel %vm2013, %v2061, 0
  %2088 = vmatpush.msra.mxu0 0.0
  %2089 = vmatpush.msra.mxu0 0.0
  %2090 = vmatpush.msra.mxu0 0.0
  %2091 = vmatpush.msra.mxu0 0.0
  %2092 = vmatpush.msra.mxu0 0.0
  %2093 = vmatpush.msra.mxu0 0.0
  %2094 = vmatpush.msra.mxu0 0.0
  %2095 = vmatpush.msra.mxu0 0.0
  %2096 = vmatpush.msra.mxu0 0.0
  %2097 = vmatpush.msra.mxu0 0.0
  %2098 = vmatpush.msra.mxu0 0.0
  %2099 = vmatpush.msra.mxu0 0.0
  %2100 = vmatpush.msra.mxu0 0.0
  %2101 = vmatpush.msra.mxu0 0.0
  %2102 = vmatpush.msra.mxu0 0.0
  %2103 = vmatpush.msra.mxu0 %v1954
  %2104 = vmatmul.f32.gmra.mxu0 %v2086
  %v2105 = vpop.f32.mrf.mxu0
  %v2106 = vadd.f32 0.0, %v2105
  %2107 = vdwg.mxu0
  %2108 = vrot.lane.b32.xlu0 %v1928, 112
  %v2109 = vpop.permute.xlu0 %2108
  %2110 = vrot.lane.b32.xlu0 %v1928, 48
  %v2111 = vpop.permute.xlu0 %2110
  %v2112 = vsel %vm1959, %v2109, 0
  %v2114 = vsel %vm1959, %v2111, 0
  %2116 = vmatpush.xpose.msra.mxu0 0.0
  %2117 = vmatpush.xpose.msra.mxu0 0.0
  %2118 = vmatpush.xpose.msra.mxu0 0.0
  %2119 = vmatpush.xpose.msra.mxu0 0.0
  %2120 = vmatpush.xpose.msra.mxu0 0.0
  %2121 = vmatpush.xpose.msra.mxu0 0.0
  %2122 = vmatpush.xpose.msra.mxu0 0.0
  %2123 = vmatpush.xpose.msra.mxu0 0.0
  %2124 = vmatpush.xpose.msra.mxu0 0.0
  %2125 = vmatpush.xpose.msra.mxu0 0.0
  %2126 = vmatpush.xpose.msra.mxu0 0.0
  %2127 = vmatpush.xpose.msra.mxu0 0.0
  %2128 = vmatpush.xpose.msra.mxu0 0.0
  %2129 = vmatpush.xpose.msra.mxu0 0.0
  %2130 = vmatpush.xpose.msra.mxu0 0.0
  %2131 = vmatpush.xpose.msra.mxu0 %v2114
  %2132 = vmatmul.f32.gmra.mxu0 %v2112
  %v2133 = vpop.f32.mrf.mxu0
  %v2134 = vadd.f32 0.0, %v2133
  %2135 = vdwg.mxu0
  %2136 = vrot.lane.b32.xlu0 %v1931, 112
  %v2137 = vpop.permute.xlu0 %2136
  %2138 = vrot.lane.b32.xlu0 %v1931, 48
  %v2139 = vpop.permute.xlu0 %2138
  %v2140 = vsel %vm1959, %v2137, 0
  %v2142 = vsel %vm1959, %v2139, 0
  %2144 = vmatpush.xpose.msra.mxu0 0.0
  %2145 = vmatpush.xpose.msra.mxu0 0.0
  %2146 = vmatpush.xpose.msra.mxu0 0.0
  %2147 = vmatpush.xpose.msra.mxu0 0.0
  %2148 = vmatpush.xpose.msra.mxu0 0.0
  %2149 = vmatpush.xpose.msra.mxu0 0.0
  %2150 = vmatpush.xpose.msra.mxu0 0.0
  %2151 = vmatpush.xpose.msra.mxu0 0.0
  %2152 = vmatpush.xpose.msra.mxu0 0.0
  %2153 = vmatpush.xpose.msra.mxu0 0.0
  %2154 = vmatpush.xpose.msra.mxu0 0.0
  %2155 = vmatpush.xpose.msra.mxu0 0.0
  %2156 = vmatpush.xpose.msra.mxu0 0.0
  %2157 = vmatpush.xpose.msra.mxu0 0.0
  %2158 = vmatpush.xpose.msra.mxu0 0.0
  %2159 = vmatpush.xpose.msra.mxu0 %v2142
  %2160 = vmatmul.f32.gmra.mxu0 %v2140
  %v2161 = vpop.f32.mrf.mxu0
  %v2162 = vadd.f32 0.0, %v2161
  %2163 = vdwg.mxu0
  %v2164 = vmul.f32 %v2134, 0.25
  %v2165 = vmul.f32 %v2162, 0.25
  %v2166 = vsel %vm2013, %v2164, -inf
  %2167 = vmax.xlane.f32.xlu0 %v2166
  %v2168 = vpop.xlane.xlu0 %2167
  %v2169 = vsel %vm2013, %v2165, -inf
  %2170 = vmax.xlane.f32.xlu0 %v2169
  %v2171 = vpop.xlane.xlu0 %2170
  %v2172 = vsub.f32 %v2164, %v2168
  %v2173 = vsub.f32 %v2165, %v2171
  %v2174 = vmul.f32 %v2172, 1.442695
  %v2175 = vpow.pop %v2174
  %v2176 = vmul.f32 %v2173, 1.442695
  %v2177 = vpow.pop %v2176
  %v2178 = vsel %vm2013, %v2175, 0.0
  %2179 = vadd.xlane.f32.xlu0 %v2178
  %v2180 = vpop.xlane.xlu0 %2179
  %v2181 = vsel %vm2013, %v2177, 0.0
  %2182 = vadd.xlane.f32.xlu0 %v2181
  %v2183 = vpop.xlane.xlu0 %2182
  %v2184 = vrcp.pop %v2180
  %v2185 = vmul.f32 %v2180, %v2184
  %v2186 = vsub.f32 1.0, %v2185
  %v2187 = vmul.f32 %v2184, %v2186
  %v2188 = vadd.f32 %v2184, %v2187
  %vm2189 = vweird.f32 %v2180
  %vm2190 = vweird.f32 %v2184
  %vm2191 = vmor %vm2189, %vm2190
  %v2192 = vsel %vm2191, %v2184, %v2188
  %v2193 = vand.u32 2147483647, %v2180
  %vm2194 = vcmp.eq.f32.partialorder %v2193, 8.507059e+37
  %v2195 = vand.u32 %v2180, 2147483648
  %v2196 = vor.u32 1.1754944e-38, %v2195
  %v2197 = vsel %vm2194, %v2196, %v2192
  %v2198 = vmul.f32 %v2175, %v2197
  %v2199 = vrcp.pop %v2183
  %v2200 = vmul.f32 %v2183, %v2199
  %v2201 = vsub.f32 1.0, %v2200
  %v2202 = vmul.f32 %v2199, %v2201
  %v2203 = vadd.f32 %v2199, %v2202
  %vm2204 = vweird.f32 %v2183
  %vm2205 = vweird.f32 %v2199
  %vm2206 = vmor %vm2204, %vm2205
  %v2207 = vsel %vm2206, %v2199, %v2203
  %v2208 = vand.u32 2147483647, %v2183
  %vm2209 = vcmp.eq.f32.partialorder %v2208, 8.507059e+37
  %v2210 = vand.u32 %v2183, 2147483648
  %v2211 = vor.u32 1.1754944e-38, %v2210
  %v2212 = vsel %vm2209, %v2211, %v2207
  %v2213 = vmul.f32 %v2177, %v2212
  %2215 = vrot.lane.b32.xlu0 %v1951, 112
  %v2216 = vpop.permute.xlu0 %2215
  %v2219 = vsel %vm2013, %v2198, 0
  %2221 = vmatpush.msra.mxu0 0.0
  %2222 = vmatpush.msra.mxu0 0.0
  %2223 = vmatpush.msra.mxu0 0.0
  %2224 = vmatpush.msra.mxu0 0.0
  %2225 = vmatpush.msra.mxu0 0.0
  %2226 = vmatpush.msra.mxu0 0.0
  %2227 = vmatpush.msra.mxu0 0.0
  %2228 = vmatpush.msra.mxu0 0.0
  %2229 = vmatpush.msra.mxu0 0.0
  %2230 = vmatpush.msra.mxu0 0.0
  %2231 = vmatpush.msra.mxu0 0.0
  %2232 = vmatpush.msra.mxu0 0.0
  %2233 = vmatpush.msra.mxu0 0.0
  %2234 = vmatpush.msra.mxu0 0.0
  %2235 = vmatpush.msra.mxu0 0.0
  %2236 = vmatpush.msra.mxu0 %v2216
  %2237 = vmatmul.f32.gmra.mxu0 %v2219
  %v2238 = vpop.f32.mrf.mxu0
  %v2239 = vadd.f32 0.0, %v2238
  %2240 = vdwg.mxu0
  %2242 = vrot.lane.b32.xlu0 %v1954, 112
  %v2243 = vpop.permute.xlu0 %2242
  %v2246 = vsel %vm2013, %v2213, 0
  %2248 = vmatpush.msra.mxu0 0.0
  %2249 = vmatpush.msra.mxu0 0.0
  %2250 = vmatpush.msra.mxu0 0.0
  %2251 = vmatpush.msra.mxu0 0.0
  %2252 = vmatpush.msra.mxu0 0.0
  %2253 = vmatpush.msra.mxu0 0.0
  %2254 = vmatpush.msra.mxu0 0.0
  %2255 = vmatpush.msra.mxu0 0.0
  %2256 = vmatpush.msra.mxu0 0.0
  %2257 = vmatpush.msra.mxu0 0.0
  %2258 = vmatpush.msra.mxu0 0.0
  %2259 = vmatpush.msra.mxu0 0.0
  %2260 = vmatpush.msra.mxu0 0.0
  %2261 = vmatpush.msra.mxu0 0.0
  %2262 = vmatpush.msra.mxu0 0.0
  %2263 = vmatpush.msra.mxu0 %v2243
  %2264 = vmatmul.f32.gmra.mxu0 %v2246
  %v2265 = vpop.f32.mrf.mxu0
  %v2266 = vadd.f32 0.0, %v2265
  %2267 = vdwg.mxu0
  %2270 = vrot.lane.b32.xlu0 %v1887, 64
  %v2271 = vpop.permute.xlu0 %2270
  %2272 = vrot.lane.b32.xlu0 %v1889, 64
  %v2273 = vpop.permute.xlu0 %2272
  %v2277 = vsel %vm1959, %v2239, 0
  %v2280 = vsel %vm1959, %v2266, 0
  %2282 = vmatpush.msra.mxu0 0.0
  %2283 = vmatpush.msra.mxu0 0.0
  %2284 = vmatpush.msra.mxu0 0.0
  %2285 = vmatpush.msra.mxu0 0.0
  %2286 = vmatpush.msra.mxu0 0.0
  %2287 = vmatpush.msra.mxu0 0.0
  %2288 = vmatpush.msra.mxu0 0.0
  %2289 = vmatpush.msra.mxu0 0.0
  %2290 = vmatpush.msra.mxu0 0.0
  %2291 = vmatpush.msra.mxu0 0.0
  %2292 = vmatpush.msra.mxu0 0.0
  %2293 = vmatpush.msra.mxu0 0.0
  %2294 = vmatpush.msra.mxu0 0.0
  %2295 = vmatpush.msra.mxu0 0.0
  %2296 = vmatpush.msra.mxu0 %v2273
  %2297 = vmatpush.msra.mxu0 %v2271
  %2298 = vmatmul.f32.gmra.mxu0 %v2277
  %v2299 = vpop.f32.mrf.mxu0
  %v2300 = vadd.f32 0.0, %v2299
  %2301 = vmatmul.f32.gmra.mxu0 %v2280
  %v2302 = vpop.f32.mrf.mxu0
  %v2303 = vadd.f32 0.0, %v2302
  %2304 = vdwg.mxu0
  %2307 = vrot.lane.b32.xlu0 %v1883, 64
  %v2308 = vpop.permute.xlu0 %2307
  %2309 = vrot.lane.b32.xlu0 %v1885, 64
  %v2310 = vpop.permute.xlu0 %2309
  %v2314 = vsel %vm1959, %v2083, 0
  %v2317 = vsel %vm1959, %v2106, 0
  %2319 = vmatpush.msra.mxu0 0.0
  %2320 = vmatpush.msra.mxu0 0.0
  %2321 = vmatpush.msra.mxu0 0.0
  %2322 = vmatpush.msra.mxu0 0.0
  %2323 = vmatpush.msra.mxu0 0.0
  %2324 = vmatpush.msra.mxu0 0.0
  %2325 = vmatpush.msra.mxu0 0.0
  %2326 = vmatpush.msra.mxu0 0.0
  %2327 = vmatpush.msra.mxu0 0.0
  %2328 = vmatpush.msra.mxu0 0.0
  %2329 = vmatpush.msra.mxu0 0.0
  %2330 = vmatpush.msra.mxu0 0.0
  %2331 = vmatpush.msra.mxu0 0.0
  %2332 = vmatpush.msra.mxu0 0.0
  %2333 = vmatpush.msra.mxu0 %v2310
  %2334 = vmatpush.msra.mxu0 %v2308
  %2335 = vmatmul.f32.gmra.mxu0 %v2314
  %v2336 = vpop.f32.mrf.mxu0
  %v2337 = vadd.f32 %v2300, %v2336
  %2338 = vmatmul.f32.gmra.mxu0 %v2317
  %v2339 = vpop.f32.mrf.mxu0
  %v2340 = vadd.f32 %v2303, %v2339
  %2341 = vdwg.mxu0
  %2342 = vrot.lane.b32.xlu0 %v1928, 96
  %v2343 = vpop.permute.xlu0 %2342
  %2344 = vrot.lane.b32.xlu0 %v1928, 32
  %v2345 = vpop.permute.xlu0 %2344
  %v2346 = vsel %vm1959, %v2343, 0
  %v2348 = vsel %vm1959, %v2345, 0
  %2350 = vmatpush.xpose.msra.mxu0 0.0
  %2351 = vmatpush.xpose.msra.mxu0 0.0
  %2352 = vmatpush.xpose.msra.mxu0 0.0
  %2353 = vmatpush.xpose.msra.mxu0 0.0
  %2354 = vmatpush.xpose.msra.mxu0 0.0
  %2355 = vmatpush.xpose.msra.mxu0 0.0
  %2356 = vmatpush.xpose.msra.mxu0 0.0
  %2357 = vmatpush.xpose.msra.mxu0 0.0
  %2358 = vmatpush.xpose.msra.mxu0 0.0
  %2359 = vmatpush.xpose.msra.mxu0 0.0
  %2360 = vmatpush.xpose.msra.mxu0 0.0
  %2361 = vmatpush.xpose.msra.mxu0 0.0
  %2362 = vmatpush.xpose.msra.mxu0 0.0
  %2363 = vmatpush.xpose.msra.mxu0 0.0
  %2364 = vmatpush.xpose.msra.mxu0 0.0
  %2365 = vmatpush.xpose.msra.mxu0 %v2348
  %2366 = vmatmul.f32.gmra.mxu0 %v2346
  %v2367 = vpop.f32.mrf.mxu0
  %v2368 = vadd.f32 0.0, %v2367
  %2369 = vdwg.mxu0
  %2370 = vrot.lane.b32.xlu0 %v1931, 96
  %v2371 = vpop.permute.xlu0 %2370
  %2372 = vrot.lane.b32.xlu0 %v1931, 32
  %v2373 = vpop.permute.xlu0 %2372
  %v2374 = vsel %vm1959, %v2371, 0
  %v2376 = vsel %vm1959, %v2373, 0
  %2378 = vmatpush.xpose.msra.mxu0 0.0
  %2379 = vmatpush.xpose.msra.mxu0 0.0
  %2380 = vmatpush.xpose.msra.mxu0 0.0
  %2381 = vmatpush.xpose.msra.mxu0 0.0
  %2382 = vmatpush.xpose.msra.mxu0 0.0
  %2383 = vmatpush.xpose.msra.mxu0 0.0
  %2384 = vmatpush.xpose.msra.mxu0 0.0
  %2385 = vmatpush.xpose.msra.mxu0 0.0
  %2386 = vmatpush.xpose.msra.mxu0 0.0
  %2387 = vmatpush.xpose.msra.mxu0 0.0
  %2388 = vmatpush.xpose.msra.mxu0 0.0
  %2389 = vmatpush.xpose.msra.mxu0 0.0
  %2390 = vmatpush.xpose.msra.mxu0 0.0
  %2391 = vmatpush.xpose.msra.mxu0 0.0
  %2392 = vmatpush.xpose.msra.mxu0 0.0
  %2393 = vmatpush.xpose.msra.mxu0 %v2376
  %2394 = vmatmul.f32.gmra.mxu0 %v2374
  %v2395 = vpop.f32.mrf.mxu0
  %v2396 = vadd.f32 0.0, %v2395
  %2397 = vdwg.mxu0
  %v2398 = vmul.f32 %v2368, 0.25
  %v2399 = vmul.f32 %v2396, 0.25
  %v2400 = vsel %vm2013, %v2398, -inf
  %2401 = vmax.xlane.f32.xlu0 %v2400
  %v2402 = vpop.xlane.xlu0 %2401
  %v2403 = vsel %vm2013, %v2399, -inf
  %2404 = vmax.xlane.f32.xlu0 %v2403
  %v2405 = vpop.xlane.xlu0 %2404
  %v2406 = vsub.f32 %v2398, %v2402
  %v2407 = vsub.f32 %v2399, %v2405
  %v2408 = vmul.f32 %v2406, 1.442695
  %v2409 = vpow.pop %v2408
  %v2410 = vmul.f32 %v2407, 1.442695
  %v2411 = vpow.pop %v2410
  %v2412 = vsel %vm2013, %v2409, 0.0
  %2413 = vadd.xlane.f32.xlu0 %v2412
  %v2414 = vpop.xlane.xlu0 %2413
  %v2415 = vsel %vm2013, %v2411, 0.0
  %2416 = vadd.xlane.f32.xlu0 %v2415
  %v2417 = vpop.xlane.xlu0 %2416
  %v2418 = vrcp.pop %v2414
  %v2419 = vmul.f32 %v2414, %v2418
  %v2420 = vsub.f32 1.0, %v2419
  %v2421 = vmul.f32 %v2418, %v2420
  %v2422 = vadd.f32 %v2418, %v2421
  %vm2423 = vweird.f32 %v2414
  %vm2424 = vweird.f32 %v2418
  %vm2425 = vmor %vm2423, %vm2424
  %v2426 = vsel %vm2425, %v2418, %v2422
  %v2427 = vand.u32 2147483647, %v2414
  %vm2428 = vcmp.eq.f32.partialorder %v2427, 8.507059e+37
  %v2429 = vand.u32 %v2414, 2147483648
  %v2430 = vor.u32 1.1754944e-38, %v2429
  %v2431 = vsel %vm2428, %v2430, %v2426
  %v2432 = vmul.f32 %v2409, %v2431
  %v2433 = vrcp.pop %v2417
  %v2434 = vmul.f32 %v2417, %v2433
  %v2435 = vsub.f32 1.0, %v2434
  %v2436 = vmul.f32 %v2433, %v2435
  %v2437 = vadd.f32 %v2433, %v2436
  %vm2438 = vweird.f32 %v2417
  %vm2439 = vweird.f32 %v2433
  %vm2440 = vmor %vm2438, %vm2439
  %v2441 = vsel %vm2440, %v2433, %v2437
  %v2442 = vand.u32 2147483647, %v2417
  %vm2443 = vcmp.eq.f32.partialorder %v2442, 8.507059e+37
  %v2444 = vand.u32 %v2417, 2147483648
  %v2445 = vor.u32 1.1754944e-38, %v2444
  %v2446 = vsel %vm2443, %v2445, %v2441
  %v2447 = vmul.f32 %v2411, %v2446
  %2448 = vrot.lane.b32.xlu0 %v1951, 96
  %v2449 = vpop.permute.xlu0 %2448
  %v2452 = vsel %vm2013, %v2432, 0
  %2454 = vmatpush.msra.mxu0 0.0
  %2455 = vmatpush.msra.mxu0 0.0
  %2456 = vmatpush.msra.mxu0 0.0
  %2457 = vmatpush.msra.mxu0 0.0
  %2458 = vmatpush.msra.mxu0 0.0
  %2459 = vmatpush.msra.mxu0 0.0
  %2460 = vmatpush.msra.mxu0 0.0
  %2461 = vmatpush.msra.mxu0 0.0
  %2462 = vmatpush.msra.mxu0 0.0
  %2463 = vmatpush.msra.mxu0 0.0
  %2464 = vmatpush.msra.mxu0 0.0
  %2465 = vmatpush.msra.mxu0 0.0
  %2466 = vmatpush.msra.mxu0 0.0
  %2467 = vmatpush.msra.mxu0 0.0
  %2468 = vmatpush.msra.mxu0 0.0
  %2469 = vmatpush.msra.mxu0 %v2449
  %2470 = vmatmul.f32.gmra.mxu0 %v2452
  %v2471 = vpop.f32.mrf.mxu0
  %v2472 = vadd.f32 0.0, %v2471
  %2473 = vdwg.mxu0
  %2474 = vrot.lane.b32.xlu0 %v1954, 96
  %v2475 = vpop.permute.xlu0 %2474
  %v2478 = vsel %vm2013, %v2447, 0
  %2480 = vmatpush.msra.mxu0 0.0
  %2481 = vmatpush.msra.mxu0 0.0
  %2482 = vmatpush.msra.mxu0 0.0
  %2483 = vmatpush.msra.mxu0 0.0
  %2484 = vmatpush.msra.mxu0 0.0
  %2485 = vmatpush.msra.mxu0 0.0
  %2486 = vmatpush.msra.mxu0 0.0
  %2487 = vmatpush.msra.mxu0 0.0
  %2488 = vmatpush.msra.mxu0 0.0
  %2489 = vmatpush.msra.mxu0 0.0
  %2490 = vmatpush.msra.mxu0 0.0
  %2491 = vmatpush.msra.mxu0 0.0
  %2492 = vmatpush.msra.mxu0 0.0
  %2493 = vmatpush.msra.mxu0 0.0
  %2494 = vmatpush.msra.mxu0 0.0
  %2495 = vmatpush.msra.mxu0 %v2475
  %2496 = vmatmul.f32.gmra.mxu0 %v2478
  %v2497 = vpop.f32.mrf.mxu0
  %v2498 = vadd.f32 0.0, %v2497
  %2499 = vdwg.mxu0
  %2502 = vrot.lane.b32.xlu0 %v1891, 64
  %v2503 = vpop.permute.xlu0 %2502
  %2504 = vrot.lane.b32.xlu0 %v1893, 64
  %v2505 = vpop.permute.xlu0 %2504
  %v2509 = vsel %vm1959, %v2472, 0
  %v2512 = vsel %vm1959, %v2498, 0
  %2514 = vmatpush.msra.mxu0 0.0
  %2515 = vmatpush.msra.mxu0 0.0
  %2516 = vmatpush.msra.mxu0 0.0
  %2517 = vmatpush.msra.mxu0 0.0
  %2518 = vmatpush.msra.mxu0 0.0
  %2519 = vmatpush.msra.mxu0 0.0
  %2520 = vmatpush.msra.mxu0 0.0
  %2521 = vmatpush.msra.mxu0 0.0
  %2522 = vmatpush.msra.mxu0 0.0
  %2523 = vmatpush.msra.mxu0 0.0
  %2524 = vmatpush.msra.mxu0 0.0
  %2525 = vmatpush.msra.mxu0 0.0
  %2526 = vmatpush.msra.mxu0 0.0
  %2527 = vmatpush.msra.mxu0 0.0
  %2528 = vmatpush.msra.mxu0 %v2505
  %2529 = vmatpush.msra.mxu0 %v2503
  %2530 = vmatmul.f32.gmra.mxu0 %v2509
  %v2531 = vpop.f32.mrf.mxu0
  %v2532 = vadd.f32 0.0, %v2531
  %2533 = vmatmul.f32.gmra.mxu0 %v2512
  %v2534 = vpop.f32.mrf.mxu0
  %v2535 = vadd.f32 0.0, %v2534
  %2536 = vdwg.mxu0
  %v2537 = vadd.f32 %v2337, %v2532
  %v2538 = vadd.f32 %v2340, %v2535
  %2539 = vrot.lane.b32.xlu0 %v1928, 80
  %v2540 = vpop.permute.xlu0 %2539
  %2541 = vrot.lane.b32.xlu0 %v1928, 16
  %v2542 = vpop.permute.xlu0 %2541
  %v2543 = vsel %vm1959, %v2540, 0
  %v2545 = vsel %vm1959, %v2542, 0
  %2547 = vmatpush.xpose.msra.mxu0 0.0
  %2548 = vmatpush.xpose.msra.mxu0 0.0
  %2549 = vmatpush.xpose.msra.mxu0 0.0
  %2550 = vmatpush.xpose.msra.mxu0 0.0
  %2551 = vmatpush.xpose.msra.mxu0 0.0
  %2552 = vmatpush.xpose.msra.mxu0 0.0
  %2553 = vmatpush.xpose.msra.mxu0 0.0
  %2554 = vmatpush.xpose.msra.mxu0 0.0
  %2555 = vmatpush.xpose.msra.mxu0 0.0
  %2556 = vmatpush.xpose.msra.mxu0 0.0
  %2557 = vmatpush.xpose.msra.mxu0 0.0
  %2558 = vmatpush.xpose.msra.mxu0 0.0
  %2559 = vmatpush.xpose.msra.mxu0 0.0
  %2560 = vmatpush.xpose.msra.mxu0 0.0
  %2561 = vmatpush.xpose.msra.mxu0 0.0
  %2562 = vmatpush.xpose.msra.mxu0 %v2545
  %2563 = vmatmul.f32.gmra.mxu0 %v2543
  %v2564 = vpop.f32.mrf.mxu0
  %v2565 = vadd.f32 0.0, %v2564
  %2566 = vdwg.mxu0
  %2567 = vrot.lane.b32.xlu0 %v1931, 80
  %v2568 = vpop.permute.xlu0 %2567
  %2569 = vrot.lane.b32.xlu0 %v1931, 16
  %v2570 = vpop.permute.xlu0 %2569
  %v2571 = vsel %vm1959, %v2568, 0
  %v2573 = vsel %vm1959, %v2570, 0
  %2575 = vmatpush.xpose.msra.mxu0 0.0
  %2576 = vmatpush.xpose.msra.mxu0 0.0
  %2577 = vmatpush.xpose.msra.mxu0 0.0
  %2578 = vmatpush.xpose.msra.mxu0 0.0
  %2579 = vmatpush.xpose.msra.mxu0 0.0
  %2580 = vmatpush.xpose.msra.mxu0 0.0
  %2581 = vmatpush.xpose.msra.mxu0 0.0
  %2582 = vmatpush.xpose.msra.mxu0 0.0
  %2583 = vmatpush.xpose.msra.mxu0 0.0
  %2584 = vmatpush.xpose.msra.mxu0 0.0
  %2585 = vmatpush.xpose.msra.mxu0 0.0
  %2586 = vmatpush.xpose.msra.mxu0 0.0
  %2587 = vmatpush.xpose.msra.mxu0 0.0
  %2588 = vmatpush.xpose.msra.mxu0 0.0
  %2589 = vmatpush.xpose.msra.mxu0 0.0
  %2590 = vmatpush.xpose.msra.mxu0 %v2573
  %2591 = vmatmul.f32.gmra.mxu0 %v2571
  %v2592 = vpop.f32.mrf.mxu0
  %v2593 = vadd.f32 0.0, %v2592
  %2594 = vdwg.mxu0
  %v2595 = vmul.f32 %v2565, 0.25
  %v2596 = vmul.f32 %v2593, 0.25
  %v2597 = vsel %vm2013, %v2595, -inf
  %2598 = vmax.xlane.f32.xlu0 %v2597
  %v2599 = vpop.xlane.xlu0 %2598
  %v2600 = vsel %vm2013, %v2596, -inf
  %2601 = vmax.xlane.f32.xlu0 %v2600
  %v2602 = vpop.xlane.xlu0 %2601
  %v2603 = vsub.f32 %v2595, %v2599
  %v2604 = vsub.f32 %v2596, %v2602
  %v2605 = vmul.f32 %v2603, 1.442695
  %v2606 = vpow.pop %v2605
  %v2607 = vmul.f32 %v2604, 1.442695
  %v2608 = vpow.pop %v2607
  %v2609 = vsel %vm2013, %v2606, 0.0
  %2610 = vadd.xlane.f32.xlu0 %v2609
  %v2611 = vpop.xlane.xlu0 %2610
  %v2612 = vsel %vm2013, %v2608, 0.0
  %2613 = vadd.xlane.f32.xlu0 %v2612
  %v2614 = vpop.xlane.xlu0 %2613
  %v2615 = vrcp.pop %v2611
  %v2616 = vmul.f32 %v2611, %v2615
  %v2617 = vsub.f32 1.0, %v2616
  %v2618 = vmul.f32 %v2615, %v2617
  %v2619 = vadd.f32 %v2615, %v2618
  %vm2620 = vweird.f32 %v2611
  %vm2621 = vweird.f32 %v2615
  %vm2622 = vmor %vm2620, %vm2621
  %v2623 = vsel %vm2622, %v2615, %v2619
  %v2624 = vand.u32 2147483647, %v2611
  %vm2625 = vcmp.eq.f32.partialorder %v2624, 8.507059e+37
  %v2626 = vand.u32 %v2611, 2147483648
  %v2627 = vor.u32 1.1754944e-38, %v2626
  %v2628 = vsel %vm2625, %v2627, %v2623
  %v2629 = vmul.f32 %v2606, %v2628
  %v2630 = vrcp.pop %v2614
  %v2631 = vmul.f32 %v2614, %v2630
  %v2632 = vsub.f32 1.0, %v2631
  %v2633 = vmul.f32 %v2630, %v2632
  %v2634 = vadd.f32 %v2630, %v2633
  %vm2635 = vweird.f32 %v2614
  %vm2636 = vweird.f32 %v2630
  %vm2637 = vmor %vm2635, %vm2636
  %v2638 = vsel %vm2637, %v2630, %v2634
  %v2639 = vand.u32 2147483647, %v2614
  %vm2640 = vcmp.eq.f32.partialorder %v2639, 8.507059e+37
  %v2641 = vand.u32 %v2614, 2147483648
  %v2642 = vor.u32 1.1754944e-38, %v2641
  %v2643 = vsel %vm2640, %v2642, %v2638
  %v2644 = vmul.f32 %v2608, %v2643
  %2645 = vrot.lane.b32.xlu0 %v1951, 80
  %v2646 = vpop.permute.xlu0 %2645
  %v2649 = vsel %vm2013, %v2629, 0
  %2651 = vmatpush.msra.mxu0 0.0
  %2652 = vmatpush.msra.mxu0 0.0
  %2653 = vmatpush.msra.mxu0 0.0
  %2654 = vmatpush.msra.mxu0 0.0
  %2655 = vmatpush.msra.mxu0 0.0
  %2656 = vmatpush.msra.mxu0 0.0
  %2657 = vmatpush.msra.mxu0 0.0
  %2658 = vmatpush.msra.mxu0 0.0
  %2659 = vmatpush.msra.mxu0 0.0
  %2660 = vmatpush.msra.mxu0 0.0
  %2661 = vmatpush.msra.mxu0 0.0
  %2662 = vmatpush.msra.mxu0 0.0
  %2663 = vmatpush.msra.mxu0 0.0
  %2664 = vmatpush.msra.mxu0 0.0
  %2665 = vmatpush.msra.mxu0 0.0
  %2666 = vmatpush.msra.mxu0 %v2646
  %2667 = vmatmul.f32.gmra.mxu0 %v2649
  %v2668 = vpop.f32.mrf.mxu0
  %v2669 = vadd.f32 0.0, %v2668
  %2670 = vdwg.mxu0
  %2671 = vrot.lane.b32.xlu0 %v1954, 80
  %v2672 = vpop.permute.xlu0 %2671
  %v2675 = vsel %vm2013, %v2644, 0
  %2677 = vmatpush.msra.mxu0 0.0
  %2678 = vmatpush.msra.mxu0 0.0
  %2679 = vmatpush.msra.mxu0 0.0
  %2680 = vmatpush.msra.mxu0 0.0
  %2681 = vmatpush.msra.mxu0 0.0
  %2682 = vmatpush.msra.mxu0 0.0
  %2683 = vmatpush.msra.mxu0 0.0
  %2684 = vmatpush.msra.mxu0 0.0
  %2685 = vmatpush.msra.mxu0 0.0
  %2686 = vmatpush.msra.mxu0 0.0
  %2687 = vmatpush.msra.mxu0 0.0
  %2688 = vmatpush.msra.mxu0 0.0
  %2689 = vmatpush.msra.mxu0 0.0
  %2690 = vmatpush.msra.mxu0 0.0
  %2691 = vmatpush.msra.mxu0 0.0
  %2692 = vmatpush.msra.mxu0 %v2672
  %2693 = vmatmul.f32.gmra.mxu0 %v2675
  %v2694 = vpop.f32.mrf.mxu0
  %v2695 = vadd.f32 0.0, %v2694
  %2696 = vdwg.mxu0
  %2699 = vrot.lane.b32.xlu0 %v1895, 64
  %v2700 = vpop.permute.xlu0 %2699
  %2701 = vrot.lane.b32.xlu0 %v1897, 64
  %v2702 = vpop.permute.xlu0 %2701
  %v2706 = vsel %vm1959, %v2669, 0
  %v2709 = vsel %vm1959, %v2695, 0
  %2711 = vmatpush.msra.mxu0 0.0
  %2712 = vmatpush.msra.mxu0 0.0
  %2713 = vmatpush.msra.mxu0 0.0
  %2714 = vmatpush.msra.mxu0 0.0
  %2715 = vmatpush.msra.mxu0 0.0
  %2716 = vmatpush.msra.mxu0 0.0
  %2717 = vmatpush.msra.mxu0 0.0
  %2718 = vmatpush.msra.mxu0 0.0
  %2719 = vmatpush.msra.mxu0 0.0
  %2720 = vmatpush.msra.mxu0 0.0
  %2721 = vmatpush.msra.mxu0 0.0
  %2722 = vmatpush.msra.mxu0 0.0
  %2723 = vmatpush.msra.mxu0 0.0
  %2724 = vmatpush.msra.mxu0 0.0
  %2725 = vmatpush.msra.mxu0 %v2702
  %2726 = vmatpush.msra.mxu0 %v2700
  %2727 = vmatmul.f32.gmra.mxu0 %v2706
  %v2728 = vpop.f32.mrf.mxu0
  %v2729 = vadd.f32 0.0, %v2728
  %2730 = vmatmul.f32.gmra.mxu0 %v2709
  %v2731 = vpop.f32.mrf.mxu0
  %v2732 = vadd.f32 0.0, %v2731
  %2733 = vdwg.mxu0
  %v2734 = vadd.f32 %v2537, %v2729
  %v2735 = vadd.f32 %v2538, %v2732
  %v2736 = vld [vmem:[%s5 + $0x7] sm:$0x1]
  %v2738 = vperm.slane %v2736, 0
  %2739 = vrot.lane.b32.xlu0 %v2738, 64
  %v2740 = vpop.permute.xlu0 %2739
  %v2742 = vadd.f32 %v2734, %v2740
  %v2743 = vadd.f32 %v2735, %v2740
  %v2744 = vld [vmem:[%s4 + $0x10] sm:$0xff]
  %v2745 = vld [vmem:[%s4 + $0x30] sm:$0xff]
  %v2746 = vld [vmem:[%s4 + $0x50] sm:$0xff]
  %v2747 = vld [vmem:[%s4 + $0x70] sm:$0xff]
  %v2748 = vld [vmem:[%s4 + $0x90] sm:$0xff]
  %v2749 = vld [vmem:[%s4 + $0xb0] sm:$0xff]
  %v2750 = vld [vmem:[%s4 + $0xd0] sm:$0xff]
  %v2751 = vld [vmem:[%s4 + $0xf0] sm:$0xff]
  %v2752 = vld [vmem:[%s5 + $0x8] sm:$0x1]
  %v2754 = vperm.slane %v2752, 0
  %v2757 = vsel %vm35, %v2742, 0
  %v2760 = vsel %vm35, %v2743, 0
  %2762 = vmatpush.msra.mxu0 0.0
  %2763 = vmatpush.msra.mxu0 0.0
  %2764 = vmatpush.msra.mxu0 0.0
  %2765 = vmatpush.msra.mxu0 0.0
  %2766 = vmatpush.msra.mxu0 0.0
  %2767 = vmatpush.msra.mxu0 0.0
  %2768 = vmatpush.msra.mxu0 0.0
  %2769 = vmatpush.msra.mxu0 0.0
  %2770 = vmatpush.msra.mxu0 %v2751
  %2771 = vmatpush.msra.mxu0 %v2750
  %2772 = vmatpush.msra.mxu0 %v2749
  %2773 = vmatpush.msra.mxu0 %v2748
  %2774 = vmatpush.msra.mxu0 %v2747
  %2775 = vmatpush.msra.mxu0 %v2746
  %2776 = vmatpush.msra.mxu0 %v2745
  %2777 = vmatpush.msra.mxu0 %v2744
  %2778 = vmatmul.f32.gmra.mxu0 %v2757
  %v2779 = vpop.f32.mrf.mxu0
  %v2780 = vadd.f32 %v2754, %v2779
  %2781 = vmatmul.f32.gmra.mxu0 %v2760
  %v2782 = vpop.f32.mrf.mxu0
  %v2783 = vadd.f32 %v2754, %v2782
  %2784 = vdwg.mxu0
  %v2785 = vld [vmem:[%s5 + $0x9] sm:$0x1]
  %vm2786 = vcmp.ge.f32.partialorder %v2780, 0.0
  %vm2787 = vcmp.ge.f32.partialorder %v2783, 0.0
  %v2789 = vperm.slane %v2785, 0
  %2790 = vset.pattern.permute.xlu0 88
  %2791 = vperm.xlu0 %2790, %v2789
  %v2792 = vpop.permute.xlu0 %2791
  %v2794 = vmul.f32 %v2792, %v2780
  %v2795 = vmul.f32 %v2792, %v2783
  %v2796 = vsel %vm2786, %v2780, %v2794
  %v2797 = vsel %vm2787, %v2783, %v2795
  %2806 = vrot.lane.b32.xlu0 %v2744, 64
  %v2807 = vpop.permute.xlu0 %2806
  %2808 = vrot.lane.b32.xlu0 %v2745, 64
  %v2809 = vpop.permute.xlu0 %2808
  %2810 = vrot.lane.b32.xlu0 %v2746, 64
  %v2811 = vpop.permute.xlu0 %2810
  %2812 = vrot.lane.b32.xlu0 %v2747, 64
  %v2813 = vpop.permute.xlu0 %2812
  %2814 = vrot.lane.b32.xlu0 %v2748, 64
  %v2815 = vpop.permute.xlu0 %2814
  %2816 = vrot.lane.b32.xlu0 %v2749, 64
  %v2817 = vpop.permute.xlu0 %2816
  %2818 = vrot.lane.b32.xlu0 %v2750, 64
  %v2819 = vpop.permute.xlu0 %2818
  %2820 = vrot.lane.b32.xlu0 %v2751, 64
  %v2821 = vpop.permute.xlu0 %2820
  %2830 = vrot.lane.b32.xlu0 %v2754, 64
  %v2831 = vpop.permute.xlu0 %2830
  %v2834 = vsel %vm35, %v2796, 0
  %v2837 = vsel %vm35, %v2797, 0
  %2839 = vmatpush.msra.mxu0 0.0
  %2840 = vmatpush.msra.mxu0 0.0
  %2841 = vmatpush.msra.mxu0 0.0
  %2842 = vmatpush.msra.mxu0 0.0
  %2843 = vmatpush.msra.mxu0 0.0
  %2844 = vmatpush.msra.mxu0 0.0
  %2845 = vmatpush.msra.mxu0 0.0
  %2846 = vmatpush.msra.mxu0 0.0
  %2847 = vmatpush.msra.mxu0 %v2821
  %2848 = vmatpush.msra.mxu0 %v2819
  %2849 = vmatpush.msra.mxu0 %v2817
  %2850 = vmatpush.msra.mxu0 %v2815
  %2851 = vmatpush.msra.mxu0 %v2813
  %2852 = vmatpush.msra.mxu0 %v2811
  %2853 = vmatpush.msra.mxu0 %v2809
  %2854 = vmatpush.msra.mxu0 %v2807
  %2855 = vmatmul.f32.gmra.mxu0 %v2834
  %v2856 = vpop.f32.mrf.mxu0
  %v2857 = vadd.f32 %v2831, %v2856
  %2858 = vmatmul.f32.gmra.mxu0 %v2837
  %v2859 = vpop.f32.mrf.mxu0
  %v2860 = vadd.f32 %v2831, %v2859
  %2861 = vdwg.mxu0
  %vm2862 = vcmp.ge.f32.partialorder %v2857, 0.0
  %vm2863 = vcmp.ge.f32.partialorder %v2860, 0.0
  %2864 = vset.pattern.permute.xlu0 89
  %2865 = vperm.xlu0 %2864, %v2789
  %v2866 = vpop.permute.xlu0 %2865
  %v2868 = vmul.f32 %v2866, %v2857
  %v2869 = vmul.f32 %v2866, %v2860
  %v2870 = vsel %vm2862, %v2857, %v2868
  %v2871 = vsel %vm2863, %v2860, %v2869
  %v2872 = vld [vmem:[%s4 + $0x18] sm:$0xff]
  %v2873 = vld [vmem:[%s4 + $0x38] sm:$0xff]
  %v2874 = vld [vmem:[%s4 + $0x58] sm:$0xff]
  %v2875 = vld [vmem:[%s4 + $0x78] sm:$0xff]
  %v2876 = vld [vmem:[%s4 + $0x98] sm:$0xff]
  %v2877 = vld [vmem:[%s4 + $0xb8] sm:$0xff]
  %v2878 = vld [vmem:[%s4 + $0xd8] sm:$0xff]
  %v2879 = vld [vmem:[%s4 + $0xf8] sm:$0xff]
  %v2882 = vsel %vm35, %v2870, 0
  %v2885 = vsel %vm35, %v2871, 0
  %2887 = vmatpush.msra.mxu0 0.0
  %2888 = vmatpush.msra.mxu0 0.0
  %2889 = vmatpush.msra.mxu0 0.0
  %2890 = vmatpush.msra.mxu0 0.0
  %2891 = vmatpush.msra.mxu0 0.0
  %2892 = vmatpush.msra.mxu0 0.0
  %2893 = vmatpush.msra.mxu0 0.0
  %2894 = vmatpush.msra.mxu0 0.0
  %2895 = vmatpush.msra.mxu0 %v2879
  %2896 = vmatpush.msra.mxu0 %v2878
  %2897 = vmatpush.msra.mxu0 %v2877
  %2898 = vmatpush.msra.mxu0 %v2876
  %2899 = vmatpush.msra.mxu0 %v2875
  %2900 = vmatpush.msra.mxu0 %v2874
  %2901 = vmatpush.msra.mxu0 %v2873
  %2902 = vmatpush.msra.mxu0 %v2872
  %2903 = vmatmul.f32.gmra.mxu0 %v2882
  %v2904 = vpop.f32.mrf.mxu0
  %v2905 = vadd.f32 %v2789, %v2904
  %2906 = vmatmul.f32.gmra.mxu0 %v2885
  %v2907 = vpop.f32.mrf.mxu0
  %v2908 = vadd.f32 %v2789, %v2907
  %2909 = vdwg.mxu0
  %v2910 = vld [vmem:[%s1] sm:$0xff]
  %v2911 = vld [vmem:[%s1 + $0x8] sm:$0xff]
  %v2912 = vmul.f32 %v2905, 0.5
  %v2913 = vmul.f32 %v2908, 0.5
  %v2914 = vmul.f32 %v2912, 1.442695
  %v2915 = vpow.pop %v2914
  %v2916 = vmul.f32 %v2913, 1.442695
  %v2917 = vpow.pop %v2916
  %2920 = vrot.lane.b32.xlu0 %v2915, 120
  %v2921 = vpop.permute.xlu0 %2920
  %2922 = vrot.lane.b32.xlu0 %v2917, 120
  %v2923 = vpop.permute.xlu0 %2922
  %v2926 = vmul.f32 %v2910, %v2921
  %v2927 = vmul.f32 %v2911, %v2923
  %v2928 = vadd.f32 %v2905, %v2926
  %v2929 = vadd.f32 %v2908, %v2927
  %v2930 = vld [vmem:[%s2 + $0x8] sm:$0xff]
  %2932 = vrot.lane.b32.xlu0 %v2930, 64
  %v2933 = vpop.permute.xlu0 %2932
  %2935 = vrot.lane.b32.xlu0 %v2789, 112
  %v2936 = vpop.permute.xlu0 %2935
  %v2939 = vsel %vm2013, %v2928, 0
  %v2942 = vsel %vm2013, %v2929, 0
  %2944 = vmatpush.msra.mxu0 0.0
  %2945 = vmatpush.msra.mxu0 0.0
  %2946 = vmatpush.msra.mxu0 0.0
  %2947 = vmatpush.msra.mxu0 0.0
  %2948 = vmatpush.msra.mxu0 0.0
  %2949 = vmatpush.msra.mxu0 0.0
  %2950 = vmatpush.msra.mxu0 0.0
  %2951 = vmatpush.msra.mxu0 0.0
  %2952 = vmatpush.msra.mxu0 0.0
  %2953 = vmatpush.msra.mxu0 0.0
  %2954 = vmatpush.msra.mxu0 0.0
  %2955 = vmatpush.msra.mxu0 0.0
  %2956 = vmatpush.msra.mxu0 0.0
  %2957 = vmatpush.msra.mxu0 0.0
  %2958 = vmatpush.msra.mxu0 0.0
  %2959 = vmatpush.msra.mxu0 %v2933
  %2960 = vmatmul.f32.gmra.mxu0 %v2939
  %v2961 = vpop.f32.mrf.mxu0
  %v2962 = vadd.f32 %v2936, %v2961
  %2963 = vmatmul.f32.gmra.mxu0 %v2942
  %v2964 = vpop.f32.mrf.mxu0
  %v2965 = vadd.f32 %v2936, %v2964
  %2966 = vdwg.mxu0
  %vm2967 = vcmp.ge.f32.partialorder %v2962, 0.0
  %vm2968 = vcmp.ge.f32.partialorder %v2965, 0.0
  %2969 = vset.pattern.permute.xlu0 90
  %2970 = vperm.xlu0 %2969, %v2789
  %v2971 = vpop.permute.xlu0 %2970
  %v2973 = vmul.f32 %v2971, %v2962
  %v2974 = vmul.f32 %v2971, %v2965
  %v2975 = vsel %vm2967, %v2962, %v2973
  %v2976 = vsel %vm2968, %v2965, %v2974
  %2985 = vrot.lane.b32.xlu0 %v2872, 112
  %v2986 = vpop.permute.xlu0 %2985
  %2987 = vrot.lane.b32.xlu0 %v2873, 112
  %v2988 = vpop.permute.xlu0 %2987
  %2989 = vrot.lane.b32.xlu0 %v2874, 112
  %v2990 = vpop.permute.xlu0 %2989
  %2991 = vrot.lane.b32.xlu0 %v2875, 112
  %v2992 = vpop.permute.xlu0 %2991
  %2993 = vrot.lane.b32.xlu0 %v2876, 112
  %v2994 = vpop.permute.xlu0 %2993
  %2995 = vrot.lane.b32.xlu0 %v2877, 112
  %v2996 = vpop.permute.xlu0 %2995
  %2997 = vrot.lane.b32.xlu0 %v2878, 112
  %v2998 = vpop.permute.xlu0 %2997
  %2999 = vrot.lane.b32.xlu0 %v2879, 112
  %v3000 = vpop.permute.xlu0 %2999
  %3009 = vrot.lane.b32.xlu0 %v2789, 48
  %v3010 = vpop.permute.xlu0 %3009
  %v3013 = vsel %vm35, %v2975, 0
  %v3016 = vsel %vm35, %v2976, 0
  %3018 = vmatpush.msra.mxu0 0.0
  %3019 = vmatpush.msra.mxu0 0.0
  %3020 = vmatpush.msra.mxu0 0.0
  %3021 = vmatpush.msra.mxu0 0.0
  %3022 = vmatpush.msra.mxu0 0.0
  %3023 = vmatpush.msra.mxu0 0.0
  %3024 = vmatpush.msra.mxu0 0.0
  %3025 = vmatpush.msra.mxu0 0.0
  %3026 = vmatpush.msra.mxu0 %v3000
  %3027 = vmatpush.msra.mxu0 %v2998
  %3028 = vmatpush.msra.mxu0 %v2996
  %3029 = vmatpush.msra.mxu0 %v2994
  %3030 = vmatpush.msra.mxu0 %v2992
  %3031 = vmatpush.msra.mxu0 %v2990
  %3032 = vmatpush.msra.mxu0 %v2988
  %3033 = vmatpush.msra.mxu0 %v2986
  %3034 = vmatmul.f32.gmra.mxu0 %v3013
  %v3035 = vpop.f32.mrf.mxu0
  %v3036 = vadd.f32 %v3010, %v3035
  %3037 = vmatmul.f32.gmra.mxu0 %v3016
  %v3038 = vpop.f32.mrf.mxu0
  %v3039 = vadd.f32 %v3010, %v3038
  %3040 = vdwg.mxu0
  %3043 = vrot.lane.b32.xlu0 %v3036, 16
  %v3044 = vpop.permute.xlu0 %3043
  %3045 = vrot.lane.b32.xlu0 %v3039, 16
  %v3046 = vpop.permute.xlu0 %3045
  %v3049 = vsel %vm1959, %v2905, %v3044
  %v3050 = vsel %vm1959, %v2908, %v3046
  %vm3051 = vcmask 195584
  %3052 = vst.msk [vmem:[%s6] sm:$0xff] %vm3051, %v3049
  %3053 = vst.msk [vmem:[%s6 + $0x8] sm:$0xff] %vm3051, %v3050
  // Predicated region
  $region26: #{vae_forward_pallas.1} parent=0 // pred_check
    _
  $region27: #{vae_forward_pallas.1} parent=0 // pred_check_branch
    %3055 = sbr.rel (0) target = $region29
  $region28: #{vae_forward_pallas.1} parent=0 // pred_region
    _
  $region29: #{vae_forward_pallas.1} parent=0 // pred_fallthru
    _
  // Predicated region
  $region30: #{vae_forward_pallas.1} parent=0 // pred_check
    _
  $region31: #{vae_forward_pallas.1} parent=0 // pred_check_branch
    %3057 = sbr.rel (0) target = $region33
  $region32: #{vae_forward_pallas.1} parent=0 // pred_region
    _
  $region33: #{vae_forward_pallas.1} parent=0 // pred_fallthru
    _

</llo_original>
